<compile_context>
chip_gen: v7x
topology: tpu7x:2x2x1
jax: 0.10.0
libtpu: 0.0.40
codegen_flags: <defaults>
</compile_context>

<pallas_src>
import functools

import jax
import jax.numpy as jnp
from jax import lax
from jax.experimental import pallas as pl
from jax.experimental.pallas import tpu as pltpu

EPS = 1e-5
LANE = 128


# ---------------------------------------------------------------------------
# per-generation sizing (VMEM-gated tile caps; safe fallback if query fails)
# ---------------------------------------------------------------------------
def _tpu_vmem_capacity():
    try:
        cap = int(pltpu.get_tpu_info().vmem_capacity_bytes)
        if cap > 0:
            return cap
    except Exception:
        pass
    return 64 << 20            # conservative (v7x-sized) fallback


_VMEM_CAP = _tpu_vmem_capacity()
_VMEM_LIMIT = int(min(max(_VMEM_CAP - (16 << 20), 32 << 20), 100 << 20))
_BIG_VMEM = _VMEM_CAP >= (100 << 20)      # v5e / v6e: 128 MiB; v7x: 64 MiB
_TM_CAP = 1024 if _BIG_VMEM else 512       # 1x1-conv row-tile cap
_TM_CAP_PROJ = 512 if _BIG_VMEM else 256   # fused conv3+shortcut row-tile cap

_PARAMS1 = pltpu.CompilerParams(dimension_semantics=("parallel",),
                                vmem_limit_bytes=_VMEM_LIMIT)
_PARAMS2 = pltpu.CompilerParams(dimension_semantics=("parallel", "parallel"),
                                vmem_limit_bytes=_VMEM_LIMIT)


# ---------------------------------------------------------------------------
# static helpers
# ---------------------------------------------------------------------------
def _cdiv(a, b):
    return -(-a // b)


def _rup(x, m):
    return ((x + m - 1) // m) * m


def _plan_rows(m, cap):
    """Pick (tm, padded_m): tm % 8 == 0, padded_m % tm == 0, tm <= cap.

    Prefers an even tile count so both v7x TensorCores get work.
    """
    cap = max(8, (cap // 8) * 8)
    if m <= cap:
        if m >= 512:                       # split -> 2 tiles for the 2 v7x TCs
            tm = _rup(_cdiv(m, 2), 8)
            return tm, 2 * tm
        tm = _rup(m, 8)
        return tm, tm
    nt = _cdiv(m, cap)
    if nt % 2:
        nt += 1
    tm = _rup(_cdiv(m, nt), 8)
    return tm, nt * tm


def _choose_conv2_tiles(n, ho, wo, m_target=256, m_cap=2048):
    """(nb images, hb output rows) per conv2 grid step; M = nb*hb*wo >= 256."""
    if ho * wo >= m_target:
        hb = 1
        for cand in range(1, ho + 1):
            if ho % cand == 0 and cand * wo <= m_cap:
                hb = cand
        return 1, hb
    nb = n
    for cand in range(1, n + 1):
        if n % cand == 0:
            nb = cand
            if cand * ho * wo >= m_target:
                break
    return nb, ho


def _pad_last(a, c):
    pad = c - a.shape[-1]
    if pad == 0:
        return a
    return jnp.pad(a, [(0, 0)] * (a.ndim - 1) + [(0, pad)])


def _pad_rows(a, mp):
    if a.shape[0] == mp:
        return a
    return jnp.pad(a, ((0, mp - a.shape[0]),) + ((0, 0),) * (a.ndim - 1))


def _pad1(v, c):
    return jnp.pad(v.astype(jnp.float32), (0, c - v.shape[0]))


def _pad2d(m, r, c):
    return jnp.pad(m, ((0, r - m.shape[0]), (0, c - m.shape[1])))


def _prep_w1x1(w, cin_p, cout_p):
    # (Cout, Cin, 1, 1) -> (Cin_p, Cout_p) bf16
    return _pad2d(jnp.transpose(w[:, :, 0, 0], (1, 0)), cin_p, cout_p).astype(jnp.bfloat16)


def _prep_w3x3(w, cin_p, cout_p):
    # (Cout, Cin, 3, 3) -> (9, Cin_p, Cout_p) bf16, tap index = 3*dh + dw
    co, ci = w.shape[0], w.shape[1]
    m = jnp.transpose(w, (2, 3, 1, 0)).reshape(9, ci, co)
    m = jnp.pad(m, ((0, 0), (0, cin_p - ci), (0, cout_p - co)))
    return m.astype(jnp.bfloat16)


# ---------------------------------------------------------------------------
# Pallas kernels
# ---------------------------------------------------------------------------
def _stats_slab(acc):
    """Per-channel (sum, sum-of-squares) of the f32 accumulator as one (2,C) slab."""
    return jnp.concatenate(
        [jnp.sum(acc, axis=0, keepdims=True),
         jnp.sum(acc * acc, axis=0, keepdims=True)], axis=0)


def _mm_stats_kernel(x_ref, w_ref, y_ref, st_ref):
    """(TM, K)@(K, C) on the MXU; bf16 tile out + f32-accumulator BN stats."""
    acc = jnp.dot(x_ref[...], w_ref[...], preferred_element_type=jnp.float32)
    y_ref[...] = acc.astype(y_ref.dtype)
    st_ref[...] = _stats_slab(acc).reshape(st_ref.shape)


def _mm_norm_stats_kernel(x_ref, w_ref, s_ref, b_ref, y_ref, st_ref, *, tm, m_valid):
    """Same, with BN-normalize + ReLU of the input tile fused into the load.

    m_valid (static) masks padded rows out of the stats when M was padded.
    """
    xn = jnp.maximum(x_ref[...].astype(jnp.float32) * s_ref[...] + b_ref[...], 0.0)
    if m_valid is not None:
        row = pl.program_id(0) * tm + lax.broadcasted_iota(jnp.int32, (tm, 1), 0)
        xn = jnp.where(row < m_valid, xn, 0.0)
    acc = jnp.dot(xn.astype(jnp.bfloat16), w_ref[...],
                  preferred_element_type=jnp.float32)
    y_ref[...] = acc.astype(y_ref.dtype)
    st_ref[...] = _stats_slab(acc).reshape(st_ref.shape)


def _proj_stats_kernel(y2_ref, xs_ref, w3_ref, ws_ref, s2_ref, b2_ref,
                       y3_ref, st3_ref, sc_ref, stsc_ref, *, tm, m_valid):
    """Fused: conv3 (1x1) on bn2+relu-normalized y2 AND projection-shortcut conv."""
    y2n = jnp.maximum(y2_ref[...].astype(jnp.float32) * s2_ref[...] + b2_ref[...], 0.0)
    if m_valid is not None:
        row = pl.program_id(0) * tm + lax.broadcasted_iota(jnp.int32, (tm, 1), 0)
        y2n = jnp.where(row < m_valid, y2n, 0.0)
    y3 = jnp.dot(y2n.astype(jnp.bfloat16), w3_ref[...],
                 preferred_element_type=jnp.float32)
    y3_ref[...] = y3.astype(y3_ref.dtype)
    st3_ref[...] = _stats_slab(y3).reshape(st3_ref.shape)

    sc = jnp.dot(xs_ref[...], ws_ref[...], preferred_element_type=jnp.float32)
    sc_ref[...] = sc.astype(sc_ref.dtype)
    stsc_ref[...] = _stats_slab(sc).reshape(stsc_ref.shape)


def _conv3x3_stats_kernel(x_ref, w_ref, y_ref, st_ref, *,
                          stride, nb, hb, wo, cin_p, cout_p):
    """3x3 conv as 9 accumulated tap matmuls over a padded image block.

    stride==1: x_ref = (nb, H+2, W+2, Cin_p), zero-padded normalized activations.
    stride==2: x_ref = (4, nb, Hh, Wh, Cin_p), plane-major parity split where
               plane[ph*2+pw][b, ih, iw] == padded[b, 2*ih+ph, 2*iw+pw].
    M = nb*hb*wo rows per tap matmul (batch merged in for small spatial stages).
    """
    j = pl.program_id(1)
    m = nb * hb * wo
    acc = jnp.zeros((m, cout_p), jnp.float32)
    for di in range(3):
        for dj in range(3):
            if stride == 1:
                r0, c0 = j * hb + di, dj
                win = x_ref[:, pl.ds(r0, hb), c0:c0 + wo, :]
            else:
                poff = (di % 2) * 2 + (dj % 2)
                r0, c0 = j * hb + di // 2, dj // 2
                win = x_ref[poff, :, pl.ds(r0, hb), c0:c0 + wo, :]
            acc = acc + jnp.dot(win.reshape(m, cin_p), w_ref[di * 3 + dj],
                                preferred_element_type=jnp.float32)
    y_ref[...] = acc.reshape(nb, hb, wo, cout_p).astype(y_ref.dtype)
    st_ref[...] = _stats_slab(acc).reshape(st_ref.shape)


def _bn2_add_relu_kernel(a_ref, b_ref, sa_ref, ba_ref, sb_ref, bb_ref, o_ref):
    a = a_ref[...].astype(jnp.float32) * sa_ref[...] + ba_ref[...]
    b = b_ref[...].astype(jnp.float32) * sb_ref[...] + bb_ref[...]
    o_ref[...] = jnp.maximum(a + b, 0.0)


def _bn_add_raw_relu_kernel(a_ref, r_ref, sa_ref, ba_ref, o_ref):
    a = a_ref[...].astype(jnp.float32) * sa_ref[...] + ba_ref[...]
    o_ref[...] = jnp.maximum(a + r_ref[...].astype(jnp.float32), 0.0)


# ---------------------------------------------------------------------------
# pallas_call wrappers
# ---------------------------------------------------------------------------
def _matmul_stats(x, w, tm):
    m, k = x.shape
    c = w.shape[1]
    nt = m // tm
    return pl.pallas_call(
        _mm_stats_kernel,
        grid=(nt,),
        in_specs=[pl.BlockSpec((tm, k), lambda i: (i, 0)),
                  pl.BlockSpec((k, c), lambda i: (0, 0))],
        out_specs=[pl.BlockSpec((tm, c), lambda i: (i, 0)),
                   pl.BlockSpec((1, 2, c), lambda i: (i, 0, 0))],
        out_shape=[jax.ShapeDtypeStruct((m, c), jnp.bfloat16),
                   jax.ShapeDtypeStruct((nt, 2, c), jnp.float32)],
        compiler_params=_PARAMS1,
    )(x, w)


def _matmul_norm_stats(x, w, scale, bias, tm, m_true):
    m, k = x.shape
    c = w.shape[1]
    nt = m // tm
    kernel = functools.partial(_mm_norm_stats_kernel, tm=tm,
                               m_valid=None if m_true == m else m_true)
    return pl.pallas_call(
        kernel,
        grid=(nt,),
        in_specs=[pl.BlockSpec((tm, k), lambda i: (i, 0)),
                  pl.BlockSpec((k, c), lambda i: (0, 0)),
                  pl.BlockSpec((1, k), lambda i: (0, 0)),
                  pl.BlockSpec((1, k), lambda i: (0, 0))],
        out_specs=[pl.BlockSpec((tm, c), lambda i: (i, 0)),
                   pl.BlockSpec((1, 2, c), lambda i: (i, 0, 0))],
        out_shape=[jax.ShapeDtypeStruct((m, c), jnp.bfloat16),
                   jax.ShapeDtypeStruct((nt, 2, c), jnp.float32)],
        compiler_params=_PARAMS1,
    )(x, w, scale, bias)


def _proj_stats(y2, xs, w3, ws, s2, b2, tm, m_true):
    m, cmid_p = y2.shape
    cin_p = xs.shape[1]
    cexp_p = w3.shape[1]
    nt = m // tm
    kernel = functools.partial(_proj_stats_kernel, tm=tm,
                               m_valid=None if m_true == m else m_true)
    return pl.pallas_call(
        kernel,
        grid=(nt,),
        in_specs=[pl.BlockSpec((tm, cmid_p), lambda i: (i, 0)),
                  pl.BlockSpec((tm, cin_p), lambda i: (i, 0)),
                  pl.BlockSpec((cmid_p, cexp_p), lambda i: (0, 0)),
                  pl.BlockSpec((cin_p, cexp_p), lambda i: (0, 0)),
                  pl.BlockSpec((1, cmid_p), lambda i: (0, 0)),
                  pl.BlockSpec((1, cmid_p), lambda i: (0, 0))],
        out_specs=[pl.BlockSpec((tm, cexp_p), lambda i: (i, 0)),
                   pl.BlockSpec((1, 2, cexp_p), lambda i: (i, 0, 0)),
                   pl.BlockSpec((tm, cexp_p), lambda i: (i, 0)),
                   pl.BlockSpec((1, 2, cexp_p), lambda i: (i, 0, 0))],
        out_shape=[jax.ShapeDtypeStruct((m, cexp_p), jnp.bfloat16),
                   jax.ShapeDtypeStruct((nt, 2, cexp_p), jnp.float32),
                   jax.ShapeDtypeStruct((m, cexp_p), jnp.bfloat16),
                   jax.ShapeDtypeStruct((nt, 2, cexp_p), jnp.float32)],
        compiler_params=_PARAMS1,
    )(y2, xs, w3, ws, s2, b2)


def _conv3x3_stats(xin, w9, stride, n, ho, wo, nb, hb):
    cin_p = xin.shape[-1]
    cout_p = w9.shape[-1]
    n_g = n // nb
    n_jb = ho // hb
    if stride == 1:
        x_spec = pl.BlockSpec((nb,) + xin.shape[1:], lambda g, j: (g, 0, 0, 0))
    else:
        x_spec = pl.BlockSpec((4, nb) + xin.shape[2:], lambda g, j: (0, g, 0, 0, 0))
    kernel = functools.partial(_conv3x3_stats_kernel, stride=stride, nb=nb,
                               hb=hb, wo=wo, cin_p=cin_p, cout_p=cout_p)
    return pl.pallas_call(
        kernel,
        grid=(n_g, n_jb),
        in_specs=[x_spec,
                  pl.BlockSpec((9, cin_p, cout_p), lambda g, j: (0, 0, 0))],
        out_specs=[pl.BlockSpec((nb, hb, wo, cout_p), lambda g, j: (g, j, 0, 0)),
                   pl.BlockSpec((1, 2, cout_p),
                                lambda g, j: (g * n_jb + j, 0, 0))],
        out_shape=[jax.ShapeDtypeStruct((n, ho, wo, cout_p), jnp.bfloat16),
                   jax.ShapeDtypeStruct((n_g * n_jb, 2, cout_p), jnp.float32)],
        compiler_params=_PARAMS2,
    )(xin, w9)


def _bn2_add_relu(a, b, sa, ba, sb, bb, tm):
    m, c = a.shape
    nt = m // tm
    row = pl.BlockSpec((tm, c), lambda i: (i, 0))
    vec = pl.BlockSpec((1, c), lambda i: (0, 0))
    return pl.pallas_call(
        _bn2_add_relu_kernel,
        grid=(nt,),
        in_specs=[row, row, vec, vec, vec, vec],
        out_specs=pl.BlockSpec((tm, c), lambda i: (i, 0)),
        out_shape=jax.ShapeDtypeStruct((m, c), jnp.float32),
        compiler_params=_PARAMS1,
    )(a, b, sa, ba, sb, bb)


def _bn_add_raw_relu(a, r, sa, ba, tm):
    m, c = a.shape
    nt = m // tm
    row = pl.BlockSpec((tm, c), lambda i: (i, 0))
    vec = pl.BlockSpec((1, c), lambda i: (0, 0))
    return pl.pallas_call(
        _bn_add_raw_relu_kernel,
        grid=(nt,),
        in_specs=[row, row, vec, vec],
        out_specs=pl.BlockSpec((tm, c), lambda i: (i, 0)),
        out_shape=jax.ShapeDtypeStruct((m, c), jnp.float32),
        compiler_params=_PARAMS1,
    )(a, r, sa, ba)


# ---------------------------------------------------------------------------
# wrapper glue (tiny per-channel math / layout, fused by XLA)
# ---------------------------------------------------------------------------
def _finalize_bn(stats, count, gamma_p, beta_p):
    """Cross-tile reduction of per-tile (sum, sumsq) -> folded BN (scale, bias)."""
    s = jnp.sum(stats[:, 0, :], axis=0)
    ss = jnp.sum(stats[:, 1, :], axis=0)
    mean = s / count
    var = jnp.maximum(ss / count - mean * mean, 0.0)   # biased variance (training BN)
    scale = gamma_p * lax.rsqrt(var + EPS)
    bias = beta_p - mean * scale
    return scale.reshape(1, -1), bias.reshape(1, -1)


def _prep_conv2_input(y1_flat, n, h, w, cp, scale, bias, stride):
    """bn1-normalize + ReLU + spatial zero-pad (+ stride-2 parity split) of y1.
    One fused XLA pass over y1 (the 3x3 halo must be materialized anyway).
    TODO(synk): fold into the conv2 kernel via manual halo DMA to drop this pass."""
    y = y1_flat.astype(jnp.float32).reshape(n, h, w, cp)
    y = jnp.maximum(y * scale.reshape(1, 1, 1, -1) + bias.reshape(1, 1, 1, -1), 0.0)
    y = jnp.pad(y, ((0, 0), (1, 1), (1, 1), (0, 0)))
    if stride == 1:
        return y.astype(jnp.bfloat16)                       # (N, H+2, W+2, Cp)
    hp, wp = h + 2, w + 2
    y = jnp.pad(y, ((0, 0), (0, hp % 2), (0, wp % 2), (0, 0)))
    hh, wh = (hp + 1) // 2, (wp + 1) // 2
    y = y.reshape(n, hh, 2, wh, 2, cp).transpose(2, 4, 0, 1, 3, 5)
    return y.reshape(4, n, hh, wh, cp).astype(jnp.bfloat16)  # (4, N, Hh, Wh, Cp)


# ---------------------------------------------------------------------------
# Bottleneck forward
# ---------------------------------------------------------------------------
@functools.partial(jax.jit, static_argnums=(2,))
def bottleneck_forward(x_nchw, params, stride):
    assert stride in (1, 2)
    n, cin, h, w = x_nchw.shape
    cmid = params["w1"].shape[0]
    cexp = params["w3"].shape[0]
    cin_p, cmid_p, cexp_p = _rup(cin, LANE), _rup(cmid, LANE), _rup(cexp, LANE)
    has_down = (stride != 1) or (cin != cexp)
    ho = (h - 1) // stride + 1
    wo = (w - 1) // stride + 1
    m0, m1 = n * h * w, n * ho * wo

    # one-time parameter prep (padded / bf16; cached by jit)
    w1 = _prep_w1x1(params["w1"], cin_p, cmid_p)
    w2 = _prep_w3x3(params["w2"], cmid_p, cmid_p)
    w3 = _prep_w1x1(params["w3"], cmid_p, cexp_p)
    g1, b1 = _pad1(params["g1"], cmid_p), _pad1(params["b1"], cmid_p)
    g2, b2 = _pad1(params["g2"], cmid_p), _pad1(params["b2"], cmid_p)
    g3, b3 = _pad1(params["g3"], cexp_p), _pad1(params["b3"], cexp_p)

    # NCHW -> NHWC boundary, channel pad to 128, row pad to the tile, bf16
    x_nhwc = jnp.transpose(x_nchw, (0, 2, 3, 1)).astype(jnp.float32)
    tm0, m0p = _plan_rows(m0, _TM_CAP)
    x2d = _pad_rows(_pad_last(x_nhwc, cin_p).reshape(m0, cin_p), m0p)
    x2d = x2d.astype(jnp.bfloat16)

    # conv1 (1x1) + batch statistics (zero pad rows are stats-neutral)
    y1, st1 = _matmul_stats(x2d, w1, tm0)
    s1, bi1 = _finalize_bn(st1, m0, g1, b1)

    # bn1 + relu + halo pad (+ parity split): one fused XLA pass over y1
    xin2 = _prep_conv2_input(y1[:m0], n, h, w, cmid_p, s1, bi1, stride)

    # conv2 (3x3, stride) + batch statistics: in-kernel 9-tap accumulation,
    # M = nb*hb*wo >= 256 per tap matmul
    nb, hb = _choose_conv2_tiles(n, ho, wo)
    y2, st2 = _conv3x3_stats(xin2, w2, stride, n, ho, wo, nb, hb)
    s2, bi2 = _finalize_bn(st2, m1, g2, b2)

    tm1, m1p = _plan_rows(m1, _TM_CAP_PROJ if has_down else _TM_CAP)
    y2f = _pad_rows(y2.reshape(m1, cmid_p), m1p)

    if has_down:
        ws = _prep_w1x1(params["ws"], cin_p, cexp_p)
        gs, bs = _pad1(params["gs"], cexp_p), _pad1(params["bs"], cexp_p)
        # shortcut subsample of x (fused by XLA with the NHWC/pad/cast prep)
        xs = _pad_last(x_nhwc[:, ::stride, ::stride, :], cin_p).reshape(m1, cin_p)
        xs = _pad_rows(xs, m1p).astype(jnp.bfloat16)
        # conv3 (bn2+relu fused on load) and shortcut conv share one kernel
        y3, st3, sc, stsc = _proj_stats(y2f, xs, w3, ws, s2, bi2, tm1, m1)
        s3, bi3 = _finalize_bn(st3, m1, g3, b3)
        ssc, bisc = _finalize_bn(stsc, m1, gs, bs)
        out2d = _bn2_add_relu(y3, sc, s3, bi3, ssc, bisc, tm1)
    else:
        # identity shortcut (stride == 1 and cin == cexp): add raw x, no BN
        y3, st3 = _matmul_norm_stats(y2f, w3, s2, bi2, tm1, m1)
        s3, bi3 = _finalize_bn(st3, m1, g3, b3)
        xres = _pad_rows(_pad_last(x_nhwc, cexp_p).reshape(m1, cexp_p), m1p)
        out2d = _bn_add_raw_relu(y3, xres, s3, bi3, tm1)

    out = out2d[:m1].reshape(n, ho, wo, cexp_p)[..., :cexp]
    return jnp.transpose(out, (0, 3, 1, 2))


# ---------------------------------------------------------------------------
# pure-JAX references (for self-check)
# ---------------------------------------------------------------------------
def _ref_conv(x, w, stride, pad, to_bf16=False):
    if to_bf16:
        x = x.astype(jnp.bfloat16)
        w = w.astype(jnp.bfloat16)
    return lax.conv_general_dilated(
        x, w, (stride, stride), ((pad, pad), (pad, pad)),
        dimension_numbers=("NCHW", "OIHW", "NCHW"),
        preferred_element_type=jnp.float32)


def _ref_bn(y, g, b):
    mean = jnp.mean(y, axis=(0, 2, 3), keepdims=True)
    var = jnp.mean(jnp.square(y - mean), axis=(0, 2, 3), keepdims=True)
    return (y - mean) * lax.rsqrt(var + EPS) * g.reshape(1, -1, 1, 1) + b.reshape(1, -1, 1, 1)


def _ref_bottleneck_f32(x, p, stride, has_down):
    y = jax.nn.relu(_ref_bn(_ref_conv(x, p["w1"], 1, 0), p["g1"], p["b1"]))
    y = jax.nn.relu(_ref_bn(_ref_conv(y, p["w2"], stride, 1), p["g2"], p["b2"]))
    y = _ref_bn(_ref_conv(y, p["w3"], 1, 0), p["g3"], p["b3"])
    sc = _ref_bn(_ref_conv(x, p["ws"], stride, 0), p["gs"], p["bs"]) if has_down else x
    return jax.nn.relu(y + sc)


def _bf(x):
    return x.astype(jnp.bfloat16).astype(jnp.float32)


def _ref_bn_mirror(acc, stored, g, b):
    """BN with stats taken from the f32 accumulator, applied to the stored values
    (mirrors the kernel's E[x^2]-E[x]^2 / folded scale-bias formulation)."""
    mean = jnp.mean(acc, axis=(0, 2, 3), keepdims=True)
    var = jnp.maximum(jnp.mean(acc * acc, axis=(0, 2, 3), keepdims=True) - mean * mean, 0.0)
    scale = g.reshape(1, -1, 1, 1) * lax.rsqrt(var + EPS)
    bias = b.reshape(1, -1, 1, 1) - mean * scale
    return stored * scale + bias


def _ref_bottleneck_mirror(x, p, stride, has_down):
    """Reference mirroring the kernel's bf16 rounding points (tight check)."""
    y1 = _ref_conv(x, p["w1"], 1, 0, True)
    y1n = _bf(jax.nn.relu(_ref_bn_mirror(y1, _bf(y1), p["g1"], p["b1"])))
    y2 = _ref_conv(y1n, p["w2"], stride, 1, True)
    y2n = _bf(jax.nn.relu(_ref_bn_mirror(y2, _bf(y2), p["g2"], p["b2"])))
    y3 = _ref_conv(y2n, p["w3"], 1, 0, True)
    main = _ref_bn_mirror(y3, _bf(y3), p["g3"], p["b3"])
    if has_down:
        sc_acc = _ref_conv(x, p["ws"], stride, 0, True)
        sc = _ref_bn_mirror(sc_acc, _bf(sc_acc), p["gs"], p["bs"])
    else:
        sc = x
    return jax.nn.relu(main + sc)


# ---------------------------------------------------------------------------
# main
# ---------------------------------------------------------------------------
def _make_params(key, cin, cmid, cexp, has_down):
    ks = jax.random.split(key, 12)
    p = {
        "w1": 0.1 * jax.random.normal(ks[0], (cmid, cin, 1, 1), jnp.float32),
        "w2": 0.1 * jax.random.normal(ks[1], (cmid, cmid, 3, 3), jnp.float32),
        "w3": 0.1 * jax.random.normal(ks[2], (cexp, cmid, 1, 1), jnp.float32),
        "g1": 1.0 + 0.1 * jax.random.normal(ks[3], (cmid,), jnp.float32),
        "b1": 0.1 * jax.random.normal(ks[4], (cmid,), jnp.float32),
        "g2": 1.0 + 0.1 * jax.random.normal(ks[5], (cmid,), jnp.float32),
        "b2": 0.1 * jax.random.normal(ks[6], (cmid,), jnp.float32),
        "g3": 1.0 + 0.1 * jax.random.normal(ks[7], (cexp,), jnp.float32),
        "b3": 0.1 * jax.random.normal(ks[8], (cexp,), jnp.float32),
    }
    if has_down:
        p["ws"] = 0.1 * jax.random.normal(ks[9], (cexp, cin, 1, 1), jnp.float32)
        p["gs"] = 1.0 + 0.1 * jax.random.normal(ks[10], (cexp,), jnp.float32)
        p["bs"] = 0.1 * jax.random.normal(ks[11], (cexp,), jnp.float32)
    return p


if __name__ == "__main__":
    key = jax.random.PRNGKey(0)
    n, h, w = 2, 16, 16
    # (in_channels, out_channels, stride): projection-shortcut and identity-shortcut cases
    configs = [(8, 4, 2), (16, 4, 1)]
    for cin, cout, stride in configs:
        cexp = cout * 4
        has_down = (stride != 1) or (cin != cexp)
        key, kp, kx = jax.random.split(key, 3)
        params = _make_params(kp, cin, cout, cexp, has_down)
        x = jax.random.normal(kx, (n, cin, h, w), jnp.float32)

        out = jax.block_until_ready(bottleneck_forward(x, params, stride))

        ho = (h - 1) // stride + 1
        assert out.shape == (n, cexp, ho, ho), out.shape

        ref_mirror = _ref_bottleneck_mirror(x, params, stride, has_down)
        ref_f32 = _ref_bottleneck_f32(x, params, stride, has_down)
        err_m = float(jnp.max(jnp.abs(out - ref_mirror)))
        err_f = float(jnp.max(jnp.abs(out - ref_f32)))
        # Tight check vs a reference that mirrors the kernel's bf16 rounding points,
        # loose check vs the exact f32 PyTorch-semantics reference.
        assert jnp.allclose(out, ref_mirror, rtol=3e-2, atol=3e-2), (stride, err_m)
        assert jnp.allclose(out, ref_f32, rtol=1e-1, atol=1e-1), (stride, err_f)

    print("KERNEL_OK")
</pallas_src>

<mosaic_0001>
module attributes {stable_mosaic.version = 11 : i64} {
  func.func @_mm_stats_kernel(%arg0: i32, %arg1: memref<256x128xbf16, #tpu.memory_space<vmem>>, %arg2: memref<128x128xbf16, #tpu.memory_space<vmem>>, %arg3: memref<256x128xbf16, #tpu.memory_space<vmem>>, %arg4: memref<1x2x128xf32, #tpu.memory_space<vmem>>) attributes {dimension_semantics = [#tpu.dimension_semantics<parallel>], iteration_bounds = array<i64: 2>, scalar_prefetch = 0 : i64, scratch_operands = 0 : i64, tpu.core_type = #tpu.core_type<tc>, window_params = [{transform_indices = @transform_0, window_bounds = array<i64: 256, 128>}, {pipeline_mode = #tpu.pipeline_mode<synchronous>, transform_indices = @transform_1, window_bounds = array<i64: 128, 128>}, {transform_indices = @transform_2, window_bounds = array<i64: 256, 128>}, {transform_indices = @transform_3, window_bounds = array<i64: 1, 2, 128>}]} {
    %c0 = arith.constant 0 : index
    %c0_0 = arith.constant 0 : index
    %0 = vector.load %arg1[%c0, %c0_0] : memref<256x128xbf16, #tpu.memory_space<vmem>>, vector<256x128xbf16>
    %c0_1 = arith.constant 0 : index
    %c0_2 = arith.constant 0 : index
    %1 = vector.load %arg2[%c0_1, %c0_2] : memref<128x128xbf16, #tpu.memory_space<vmem>>, vector<128x128xbf16>
    %cst = arith.constant dense<0.000000e+00> : vector<256x128xf32>
    %2 = tpu.matmul %0, %1, %cst {dimension_numbers = #tpu.dot_dimension_numbers<[1], [0], [0], [1], [0, 0, 1, 1], [], []>} : vector<256x128xbf16>, vector<128x128xbf16>, vector<256x128xf32> -> vector<256x128xf32>
    %3 = arith.truncf %2 : vector<256x128xf32> to vector<256x128xbf16>
    %c0_3 = arith.constant 0 : index
    %c0_4 = arith.constant 0 : index
    %4 = vector.load %arg3[%c0_3, %c0_4] : memref<256x128xbf16, #tpu.memory_space<vmem>>, vector<256x128xbf16>
    tpu.vector_store %arg3[%c0_3, %c0_4], %3 {strides = array<i32>} : memref<256x128xbf16, #tpu.memory_space<vmem>>, vector<256x128xbf16>,
    %cst_5 = arith.constant dense<0.000000e+00> : vector<128xf32>
    %5 = vector.multi_reduction <add>, %2, %cst_5 [0] : vector<256x128xf32> to vector<128xf32>
    %6 = vector.shape_cast %5 : vector<128xf32> to vector<1x128xf32>
    %7 = arith.mulf %2, %2 : vector<256x128xf32>
    %cst_6 = arith.constant dense<0.000000e+00> : vector<128xf32>
    %8 = vector.multi_reduction <add>, %7, %cst_6 [0] : vector<256x128xf32> to vector<128xf32>
    %9 = vector.shape_cast %8 : vector<128xf32> to vector<1x128xf32>
    %10 = tpu.concatenate %6, %9 in 0 : vector<1x128xf32>, vector<1x128xf32> -> vector<2x128xf32>
    %11 = vector.shape_cast %10 : vector<2x128xf32> to vector<1x2x128xf32>
    %c0_7 = arith.constant 0 : index
    %c0_8 = arith.constant 0 : index
    %c0_9 = arith.constant 0 : index
    %12 = vector.load %arg4[%c0_7, %c0_8, %c0_9] : memref<1x2x128xf32, #tpu.memory_space<vmem>>, vector<1x2x128xf32>
    tpu.vector_store %arg4[%c0_7, %c0_8, %c0_9], %11 {strides = array<i32>} : memref<1x2x128xf32, #tpu.memory_space<vmem>>, vector<1x2x128xf32>,
    return
  }
  func.func @transform_0(%arg0: i32) -> (i32, i32) {
    %c0_i32 = arith.constant 0 : i32
    %c0_i32_0 = arith.constant 0 : i32
    return %arg0, %c0_i32 : i32, i32
  }
  func.func @transform_1(%arg0: i32) -> (i32, i32) {
    %c0_i32 = arith.constant 0 : i32
    %c0_i32_0 = arith.constant 0 : i32
    %c0_i32_1 = arith.constant 0 : i32
    return %c0_i32, %c0_i32_0 : i32, i32
  }
  func.func @transform_2(%arg0: i32) -> (i32, i32) {
    %c0_i32 = arith.constant 0 : i32
    %c0_i32_0 = arith.constant 0 : i32
    return %arg0, %c0_i32 : i32, i32
  }
  func.func @transform_3(%arg0: i32) -> (i32, i32, i32) {
    %c0_i32 = arith.constant 0 : i32
    %c0_i32_0 = arith.constant 0 : i32
    %c0_i32_1 = arith.constant 0 : i32
    return %arg0, %c0_i32, %c0_i32_0 : i32, i32, i32
  }
}

module attributes {stable_mosaic.version = 11 : i64} {
  func.func @_conv3x3_stats_kernel(%arg0: i32, %arg1: i32, %arg2: memref<4x2x9x9x128xbf16, #tpu.memory_space<vmem>>, %arg3: memref<9x128x128xbf16, #tpu.memory_space<vmem>>, %arg4: memref<2x8x8x128xbf16, #tpu.memory_space<vmem>>, %arg5: memref<1x2x128xf32, #tpu.memory_space<vmem>>) attributes {dimension_semantics = [#tpu.dimension_semantics<parallel>, #tpu.dimension_semantics<parallel>], iteration_bounds = array<i64: 1, 1>, scalar_prefetch = 0 : i64, scratch_operands = 0 : i64, tpu.core_type = #tpu.core_type<tc>, window_params = [{transform_indices = @transform_0, window_bounds = array<i64: 4, 2, 9, 9, 128>}, {pipeline_mode = #tpu.pipeline_mode<synchronous>, transform_indices = @transform_1, window_bounds = array<i64: 9, 128, 128>}, {transform_indices = @transform_2, window_bounds = array<i64: 2, 8, 8, 128>}, {transform_indices = @transform_3, window_bounds = array<i64: 1, 2, 128>}]} {
    %cst = arith.constant 0.000000e+00 : f32
    %0 = vector.broadcast %cst : f32 to vector<128x128xf32>
    %c8_i32 = arith.constant 8 : i32
    %1 = arith.muli %arg1, %c8_i32 : i32
    %c0_i32 = arith.constant 0 : i32
    %2 = arith.addi %1, %c0_i32 : i32
    %c0 = arith.constant 0 : index
    %c0_0 = arith.constant 0 : index
    %3 = arith.index_cast %2 : i32 to index
    %c0_1 = arith.constant 0 : index
    %c0_2 = arith.constant 0 : index
    %4 = vector.load %arg2[%c0, %c0_0, %3, %c0_1, %c0_2] : memref<4x2x9x9x128xbf16, #tpu.memory_space<vmem>>, vector<1x2x8x8x128xbf16>
    %5 = vector.shape_cast %4 : vector<1x2x8x8x128xbf16> to vector<2x8x8x128xbf16>
    %6 = vector.shape_cast %5 : vector<2x8x8x128xbf16> to vector<128x128xbf16>
    %c0_3 = arith.constant 0 : index
    %c0_4 = arith.constant 0 : index
    %c0_5 = arith.constant 0 : index
    %7 = vector.load %arg3[%c0_3, %c0_4, %c0_5] : memref<9x128x128xbf16, #tpu.memory_space<vmem>>, vector<1x128x128xbf16>
    %8 = vector.shape_cast %7 : vector<1x128x128xbf16> to vector<128x128xbf16>
    %cst_6 = arith.constant dense<0.000000e+00> : vector<128x128xf32>
    %9 = tpu.matmul %6, %8, %cst_6 {dimension_numbers = #tpu.dot_dimension_numbers<[1], [0], [0], [1], [0, 0, 1, 1], [], []>} : vector<128x128xbf16>, vector<128x128xbf16>, vector<128x128xf32> -> vector<128x128xf32>
    %10 = arith.addf %0, %9 : vector<128x128xf32>
    %c8_i32_7 = arith.constant 8 : i32
    %11 = arith.muli %arg1, %c8_i32_7 : i32
    %c0_i32_8 = arith.constant 0 : i32
    %12 = arith.addi %11, %c0_i32_8 : i32
    %c1 = arith.constant 1 : index
    %c0_9 = arith.constant 0 : index
    %13 = arith.index_cast %12 : i32 to index
    %c0_10 = arith.constant 0 : index
    %c0_11 = arith.constant 0 : index
    %14 = vector.load %arg2[%c1, %c0_9, %13, %c0_10, %c0_11] : memref<4x2x9x9x128xbf16, #tpu.memory_space<vmem>>, vector<1x2x8x8x128xbf16>
    %15 = vector.shape_cast %14 : vector<1x2x8x8x128xbf16> to vector<2x8x8x128xbf16>
    %16 = vector.shape_cast %15 : vector<2x8x8x128xbf16> to vector<128x128xbf16>
    %c1_12 = arith.constant 1 : index
    %c0_13 = arith.constant 0 : index
    %c0_14 = arith.constant 0 : index
    %17 = vector.load %arg3[%c1_12, %c0_13, %c0_14] : memref<9x128x128xbf16, #tpu.memory_space<vmem>>, vector<1x128x128xbf16>
    %18 = vector.shape_cast %17 : vector<1x128x128xbf16> to vector<128x128xbf16>
    %cst_15 = arith.constant dense<0.000000e+00> : vector<128x128xf32>
    %19 = tpu.matmul %16, %18, %cst_15 {dimension_numbers = #tpu.dot_dimension_numbers<[1], [0], [0], [1], [0, 0, 1, 1], [], []>} : vector<128x128xbf16>, vector<128x128xbf16>, vector<128x128xf32> -> vector<128x128xf32>
    %20 = arith.addf %10, %19 : vector<128x128xf32>
    %c8_i32_16 = arith.constant 8 : i32
    %21 = arith.muli %arg1, %c8_i32_16 : i32
    %c0_i32_17 = arith.constant 0 : i32
    %22 = arith.addi %21, %c0_i32_17 : i32
    %c0_18 = arith.constant 0 : index
    %c0_19 = arith.constant 0 : index
    %23 = arith.index_cast %22 : i32 to index
    %c1_20 = arith.constant 1 : index
    %c0_21 = arith.constant 0 : index
    %24 = vector.load %arg2[%c0_18, %c0_19, %23, %c1_20, %c0_21] : memref<4x2x9x9x128xbf16, #tpu.memory_space<vmem>>, vector<1x2x8x8x128xbf16>
    %25 = vector.shape_cast %24 : vector<1x2x8x8x128xbf16> to vector<2x8x8x128xbf16>
    %26 = vector.shape_cast %25 : vector<2x8x8x128xbf16> to vector<128x128xbf16>
    %c2 = arith.constant 2 : index
    %c0_22 = arith.constant 0 : index
    %c0_23 = arith.constant 0 : index
    %27 = vector.load %arg3[%c2, %c0_22, %c0_23] : memref<9x128x128xbf16, #tpu.memory_space<vmem>>, vector<1x128x128xbf16>
    %28 = vector.shape_cast %27 : vector<1x128x128xbf16> to vector<128x128xbf16>
    %cst_24 = arith.constant dense<0.000000e+00> : vector<128x128xf32>
    %29 = tpu.matmul %26, %28, %cst_24 {dimension_numbers = #tpu.dot_dimension_numbers<[1], [0], [0], [1], [0, 0, 1, 1], [], []>} : vector<128x128xbf16>, vector<128x128xbf16>, vector<128x128xf32> -> vector<128x128xf32>
    %30 = arith.addf %20, %29 : vector<128x128xf32>
    %c8_i32_25 = arith.constant 8 : i32
    %31 = arith.muli %arg1, %c8_i32_25 : i32
    %c0_i32_26 = arith.constant 0 : i32
    %32 = arith.addi %31, %c0_i32_26 : i32
    %c2_27 = arith.constant 2 : index
    %c0_28 = arith.constant 0 : index
    %33 = arith.index_cast %32 : i32 to index
    %c0_29 = arith.constant 0 : index
    %c0_30 = arith.constant 0 : index
    %34 = vector.load %arg2[%c2_27, %c0_28, %33, %c0_29, %c0_30] : memref<4x2x9x9x128xbf16, #tpu.memory_space<vmem>>, vector<1x2x8x8x128xbf16>
    %35 = vector.shape_cast %34 : vector<1x2x8x8x128xbf16> to vector<2x8x8x128xbf16>
    %36 = vector.shape_cast %35 : vector<2x8x8x128xbf16> to vector<128x128xbf16>
    %c3 = arith.constant 3 : index
    %c0_31 = arith.constant 0 : index
    %c0_32 = arith.constant 0 : index
    %37 = vector.load %arg3[%c3, %c0_31, %c0_32] : memref<9x128x128xbf16, #tpu.memory_space<vmem>>, vector<1x128x128xbf16>
    %38 = vector.shape_cast %37 : vector<1x128x128xbf16> to vector<128x128xbf16>
    %cst_33 = arith.constant dense<0.000000e+00> : vector<128x128xf32>
    %39 = tpu.matmul %36, %38, %cst_33 {dimension_numbers = #tpu.dot_dimension_numbers<[1], [0], [0], [1], [0, 0, 1, 1], [], []>} : vector<128x128xbf16>, vector<128x128xbf16>, vector<128x128xf32> -> vector<128x128xf32>
    %40 = arith.addf %30, %39 : vector<128x128xf32>
    %c8_i32_34 = arith.constant 8 : i32
    %41 = arith.muli %arg1, %c8_i32_34 : i32
    %c0_i32_35 = arith.constant 0 : i32
    %42 = arith.addi %41, %c0_i32_35 : i32
    %c3_36 = arith.constant 3 : index
    %c0_37 = arith.constant 0 : index
    %43 = arith.index_cast %42 : i32 to index
    %c0_38 = arith.constant 0 : index
    %c0_39 = arith.constant 0 : index
    %44 = vector.load %arg2[%c3_36, %c0_37, %43, %c0_38, %c0_39] : memref<4x2x9x9x128xbf16, #tpu.memory_space<vmem>>, vector<1x2x8x8x128xbf16>
    %45 = vector.shape_cast %44 : vector<1x2x8x8x128xbf16> to vector<2x8x8x128xbf16>
    %46 = vector.shape_cast %45 : vector<2x8x8x128xbf16> to vector<128x128xbf16>
    %c4 = arith.constant 4 : index
    %c0_40 = arith.constant 0 : index
    %c0_41 = arith.constant 0 : index
    %47 = vector.load %arg3[%c4, %c0_40, %c0_41] : memref<9x128x128xbf16, #tpu.memory_space<vmem>>, vector<1x128x128xbf16>
    %48 = vector.shape_cast %47 : vector<1x128x128xbf16> to vector<128x128xbf16>
    %cst_42 = arith.constant dense<0.000000e+00> : vector<128x128xf32>
    %49 = tpu.matmul %46, %48, %cst_42 {dimension_numbers = #tpu.dot_dimension_numbers<[1], [0], [0], [1], [0, 0, 1, 1], [], []>} : vector<128x128xbf16>, vector<128x128xbf16>, vector<128x128xf32> -> vector<128x128xf32>
    %50 = arith.addf %40, %49 : vector<128x128xf32>
    %c8_i32_43 = arith.constant 8 : i32
    %51 = arith.muli %arg1, %c8_i32_43 : i32
    %c0_i32_44 = arith.constant 0 : i32
    %52 = arith.addi %51, %c0_i32_44 : i32
    %c2_45 = arith.constant 2 : index
    %c0_46 = arith.constant 0 : index
    %53 = arith.index_cast %52 : i32 to index
    %c1_47 = arith.constant 1 : index
    %c0_48 = arith.constant 0 : index
    %54 = vector.load %arg2[%c2_45, %c0_46, %53, %c1_47, %c0_48] : memref<4x2x9x9x128xbf16, #tpu.memory_space<vmem>>, vector<1x2x8x8x128xbf16>
    %55 = vector.shape_cast %54 : vector<1x2x8x8x128xbf16> to vector<2x8x8x128xbf16>
    %56 = vector.shape_cast %55 : vector<2x8x8x128xbf16> to vector<128x128xbf16>
    %c5 = arith.constant 5 : index
    %c0_49 = arith.constant 0 : index
    %c0_50 = arith.constant 0 : index
    %57 = vector.load %arg3[%c5, %c0_49, %c0_50] : memref<9x128x128xbf16, #tpu.memory_space<vmem>>, vector<1x128x128xbf16>
    %58 = vector.shape_cast %57 : vector<1x128x128xbf16> to vector<128x128xbf16>
    %cst_51 = arith.constant dense<0.000000e+00> : vector<128x128xf32>
    %59 = tpu.matmul %56, %58, %cst_51 {dimension_numbers = #tpu.dot_dimension_numbers<[1], [0], [0], [1], [0, 0, 1, 1], [], []>} : vector<128x128xbf16>, vector<128x128xbf16>, vector<128x128xf32> -> vector<128x128xf32>
    %60 = arith.addf %50, %59 : vector<128x128xf32>
    %c8_i32_52 = arith.constant 8 : i32
    %61 = arith.muli %arg1, %c8_i32_52 : i32
    %c1_i32 = arith.constant 1 : i32
    %62 = arith.addi %61, %c1_i32 : i32
    %c0_53 = arith.constant 0 : index
    %c0_54 = arith.constant 0 : index
    %63 = arith.index_cast %62 : i32 to index
    %c0_55 = arith.constant 0 : index
    %c0_56 = arith.constant 0 : index
    %64 = vector.load %arg2[%c0_53, %c0_54, %63, %c0_55, %c0_56] : memref<4x2x9x9x128xbf16, #tpu.memory_space<vmem>>, vector<1x2x8x8x128xbf16>
    %65 = vector.shape_cast %64 : vector<1x2x8x8x128xbf16> to vector<2x8x8x128xbf16>
    %66 = vector.shape_cast %65 : vector<2x8x8x128xbf16> to vector<128x128xbf16>
    %c6 = arith.constant 6 : index
    %c0_57 = arith.constant 0 : index
    %c0_58 = arith.constant 0 : index
    %67 = vector.load %arg3[%c6, %c0_57, %c0_58] : memref<9x128x128xbf16, #tpu.memory_space<vmem>>, vector<1x128x128xbf16>
    %68 = vector.shape_cast %67 : vector<1x128x128xbf16> to vector<128x128xbf16>
    %cst_59 = arith.constant dense<0.000000e+00> : vector<128x128xf32>
    %69 = tpu.matmul %66, %68, %cst_59 {dimension_numbers = #tpu.dot_dimension_numbers<[1], [0], [0], [1], [0, 0, 1, 1], [], []>} : vector<128x128xbf16>, vector<128x128xbf16>, vector<128x128xf32> -> vector<128x128xf32>
    %70 = arith.addf %60, %69 : vector<128x128xf32>
    %c8_i32_60 = arith.constant 8 : i32
    %71 = arith.muli %arg1, %c8_i32_60 : i32
    %c1_i32_61 = arith.constant 1 : i32
    %72 = arith.addi %71, %c1_i32_61 : i32
    %c1_62 = arith.constant 1 : index
    %c0_63 = arith.constant 0 : index
    %73 = arith.index_cast %72 : i32 to index
    %c0_64 = arith.constant 0 : index
    %c0_65 = arith.constant 0 : index
    %74 = vector.load %arg2[%c1_62, %c0_63, %73, %c0_64, %c0_65] : memref<4x2x9x9x128xbf16, #tpu.memory_space<vmem>>, vector<1x2x8x8x128xbf16>
    %75 = vector.shape_cast %74 : vector<1x2x8x8x128xbf16> to vector<2x8x8x128xbf16>
    %76 = vector.shape_cast %75 : vector<2x8x8x128xbf16> to vector<128x128xbf16>
    %c7 = arith.constant 7 : index
    %c0_66 = arith.constant 0 : index
    %c0_67 = arith.constant 0 : index
    %77 = vector.load %arg3[%c7, %c0_66, %c0_67] : memref<9x128x128xbf16, #tpu.memory_space<vmem>>, vector<1x128x128xbf16>
    %78 = vector.shape_cast %77 : vector<1x128x128xbf16> to vector<128x128xbf16>
    %cst_68 = arith.constant dense<0.000000e+00> : vector<128x128xf32>
    %79 = tpu.matmul %76, %78, %cst_68 {dimension_numbers = #tpu.dot_dimension_numbers<[1], [0], [0], [1], [0, 0, 1, 1], [], []>} : vector<128x128xbf16>, vector<128x128xbf16>, vector<128x128xf32> -> vector<128x128xf32>
    %80 = arith.addf %70, %79 : vector<128x128xf32>
    %c8_i32_69 = arith.constant 8 : i32
    %81 = arith.muli %arg1, %c8_i32_69 : i32
    %c1_i32_70 = arith.constant 1 : i32
    %82 = arith.addi %81, %c1_i32_70 : i32
    %c0_71 = arith.constant 0 : index
    %c0_72 = arith.constant 0 : index
    %83 = arith.index_cast %82 : i32 to index
    %c1_73 = arith.constant 1 : index
    %c0_74 = arith.constant 0 : index
    %84 = vector.load %arg2[%c0_71, %c0_72, %83, %c1_73, %c0_74] : memref<4x2x9x9x128xbf16, #tpu.memory_space<vmem>>, vector<1x2x8x8x128xbf16>
    %85 = vector.shape_cast %84 : vector<1x2x8x8x128xbf16> to vector<2x8x8x128xbf16>
    %86 = vector.shape_cast %85 : vector<2x8x8x128xbf16> to vector<128x128xbf16>
    %c8 = arith.constant 8 : index
    %c0_75 = arith.constant 0 : index
    %c0_76 = arith.constant 0 : index
    %87 = vector.load %arg3[%c8, %c0_75, %c0_76] : memref<9x128x128xbf16, #tpu.memory_space<vmem>>, vector<1x128x128xbf16>
    %88 = vector.shape_cast %87 : vector<1x128x128xbf16> to vector<128x128xbf16>
    %cst_77 = arith.constant dense<0.000000e+00> : vector<128x128xf32>
    %89 = tpu.matmul %86, %88, %cst_77 {dimension_numbers = #tpu.dot_dimension_numbers<[1], [0], [0], [1], [0, 0, 1, 1], [], []>} : vector<128x128xbf16>, vector<128x128xbf16>, vector<128x128xf32> -> vector<128x128xf32>
    %90 = arith.addf %80, %89 : vector<128x128xf32>
    %91 = vector.shape_cast %90 : vector<128x128xf32> to vector<2x8x8x128xf32>
    %92 = arith.truncf %91 : vector<2x8x8x128xf32> to vector<2x8x8x128xbf16>
    %c0_78 = arith.constant 0 : index
    %c0_79 = arith.constant 0 : index
    %c0_80 = arith.constant 0 : index
    %c0_81 = arith.constant 0 : index
    %93 = vector.load %arg4[%c0_78, %c0_79, %c0_80, %c0_81] : memref<2x8x8x128xbf16, #tpu.memory_space<vmem>>, vector<2x8x8x128xbf16>
    tpu.vector_store %arg4[%c0_78, %c0_79, %c0_80, %c0_81], %92 {strides = array<i32>} : memref<2x8x8x128xbf16, #tpu.memory_space<vmem>>, vector<2x8x8x128xbf16>,
    %cst_82 = arith.constant dense<0.000000e+00> : vector<128xf32>
    %94 = vector.multi_reduction <add>, %90, %cst_82 [0] : vector<128x128xf32> to vector<128xf32>
    %95 = vector.shape_cast %94 : vector<128xf32> to vector<1x128xf32>
    %96 = arith.mulf %90, %90 : vector<128x128xf32>
    %cst_83 = arith.constant dense<0.000000e+00> : vector<128xf32>
    %97 = vector.multi_reduction <add>, %96, %cst_83 [0] : vector<128x128xf32> to vector<128xf32>
    %98 = vector.shape_cast %97 : vector<128xf32> to vector<1x128xf32>
    %99 = tpu.concatenate %95, %98 in 0 : vector<1x128xf32>, vector<1x128xf32> -> vector<2x128xf32>
    %100 = vector.shape_cast %99 : vector<2x128xf32> to vector<1x2x128xf32>
    %c0_84 = arith.constant 0 : index
    %c0_85 = arith.constant 0 : index
    %c0_86 = arith.constant 0 : index
    %101 = vector.load %arg5[%c0_84, %c0_85, %c0_86] : memref<1x2x128xf32, #tpu.memory_space<vmem>>, vector<1x2x128xf32>
    tpu.vector_store %arg5[%c0_84, %c0_85, %c0_86], %100 {strides = array<i32>} : memref<1x2x128xf32, #tpu.memory_space<vmem>>, vector<1x2x128xf32>,
    return
  }
  func.func @transform_0(%arg0: i32, %arg1: i32) -> (i32, i32, i32, i32, i32) {
    %c0_i32 = arith.constant 0 : i32
    %c0_i32_0 = arith.constant 0 : i32
    %c0_i32_1 = arith.constant 0 : i32
    %c0_i32_2 = arith.constant 0 : i32
    %c0_i32_3 = arith.constant 0 : i32
    return %c0_i32, %arg0, %c0_i32_0, %c0_i32_1, %c0_i32_2 : i32, i32, i32, i32, i32
  }
  func.func @transform_1(%arg0: i32, %arg1: i32) -> (i32, i32, i32) {
    %c0_i32 = arith.constant 0 : i32
    %c0_i32_0 = arith.constant 0 : i32
    %c0_i32_1 = arith.constant 0 : i32
    %c0_i32_2 = arith.constant 0 : i32
    return %c0_i32, %c0_i32_0, %c0_i32_1 : i32, i32, i32
  }
  func.func @transform_2(%arg0: i32, %arg1: i32) -> (i32, i32, i32, i32) {
    %c0_i32 = arith.constant 0 : i32
    %c0_i32_0 = arith.constant 0 : i32
    %c0_i32_1 = arith.constant 0 : i32
    return %arg0, %arg1, %c0_i32, %c0_i32_0 : i32, i32, i32, i32
  }
  func.func @transform_3(%arg0: i32, %arg1: i32) -> (i32, i32, i32) {
    %c1_i32 = arith.constant 1 : i32
    %0 = arith.muli %arg0, %c1_i32 : i32
    %1 = arith.addi %0, %arg1 : i32
    %c0_i32 = arith.constant 0 : i32
    %c0_i32_0 = arith.constant 0 : i32
    %c0_i32_1 = arith.constant 0 : i32
    return %1, %c0_i32, %c0_i32_0 : i32, i32, i32
  }
}

module attributes {stable_mosaic.version = 11 : i64} {
  func.func @_bn2_add_relu_kernel(%arg0: i32, %arg1: memref<128x128xbf16, #tpu.memory_space<vmem>>, %arg2: memref<128x128xbf16, #tpu.memory_space<vmem>>, %arg3: memref<1x128xf32, #tpu.memory_space<vmem>>, %arg4: memref<1x128xf32, #tpu.memory_space<vmem>>, %arg5: memref<1x128xf32, #tpu.memory_space<vmem>>, %arg6: memref<1x128xf32, #tpu.memory_space<vmem>>, %arg7: memref<128x128xf32, #tpu.memory_space<vmem>>) attributes {dimension_semantics = [#tpu.dimension_semantics<parallel>], iteration_bounds = array<i64: 1>, scalar_prefetch = 0 : i64, scratch_operands = 0 : i64, tpu.core_type = #tpu.core_type<tc>, window_params = [{transform_indices = @transform_0, window_bounds = array<i64: 128, 128>}, {transform_indices = @transform_1, window_bounds = array<i64: 128, 128>}, {pipeline_mode = #tpu.pipeline_mode<synchronous>, transform_indices = @transform_2, window_bounds = array<i64: 1, 128>}, {pipeline_mode = #tpu.pipeline_mode<synchronous>, transform_indices = @transform_3, window_bounds = array<i64: 1, 128>}, {pipeline_mode = #tpu.pipeline_mode<synchronous>, transform_indices = @transform_4, window_bounds = array<i64: 1, 128>}, {pipeline_mode = #tpu.pipeline_mode<synchronous>, transform_indices = @transform_5, window_bounds = array<i64: 1, 128>}, {transform_indices = @transform_6, window_bounds = array<i64: 128, 128>}]} {
    %c0 = arith.constant 0 : index
    %c0_0 = arith.constant 0 : index
    %0 = vector.load %arg1[%c0, %c0_0] : memref<128x128xbf16, #tpu.memory_space<vmem>>, vector<128x128xbf16>
    %1 = arith.extf %0 : vector<128x128xbf16> to vector<128x128xf32>
    %c0_1 = arith.constant 0 : index
    %c0_2 = arith.constant 0 : index
    %2 = vector.load %arg3[%c0_1, %c0_2] : memref<1x128xf32, #tpu.memory_space<vmem>>, vector<1x128xf32>
    %3 = vector.broadcast %2 : vector<1x128xf32> to vector<128x128xf32>
    %4 = arith.mulf %1, %3 : vector<128x128xf32>
    %c0_3 = arith.constant 0 : index
    %c0_4 = arith.constant 0 : index
    %5 = vector.load %arg4[%c0_3, %c0_4] : memref<1x128xf32, #tpu.memory_space<vmem>>, vector<1x128xf32>
    %6 = vector.broadcast %5 : vector<1x128xf32> to vector<128x128xf32>
    %7 = arith.addf %4, %6 : vector<128x128xf32>
    %c0_5 = arith.constant 0 : index
    %c0_6 = arith.constant 0 : index
    %8 = vector.load %arg2[%c0_5, %c0_6] : memref<128x128xbf16, #tpu.memory_space<vmem>>, vector<128x128xbf16>
    %9 = arith.extf %8 : vector<128x128xbf16> to vector<128x128xf32>
    %c0_7 = arith.constant 0 : index
    %c0_8 = arith.constant 0 : index
    %10 = vector.load %arg5[%c0_7, %c0_8] : memref<1x128xf32, #tpu.memory_space<vmem>>, vector<1x128xf32>
    %11 = vector.broadcast %10 : vector<1x128xf32> to vector<128x128xf32>
    %12 = arith.mulf %9, %11 : vector<128x128xf32>
    %c0_9 = arith.constant 0 : index
    %c0_10 = arith.constant 0 : index
    %13 = vector.load %arg6[%c0_9, %c0_10] : memref<1x128xf32, #tpu.memory_space<vmem>>, vector<1x128xf32>
    %14 = vector.broadcast %13 : vector<1x128xf32> to vector<128x128xf32>
    %15 = arith.addf %12, %14 : vector<128x128xf32>
    %16 = arith.addf %7, %15 : vector<128x128xf32>
    %cst = arith.constant 0.000000e+00 : f32
    %17 = vector.broadcast %cst : f32 to vector<128x128xf32>
    %18 = arith.maximumf %16, %17 : vector<128x128xf32>
    %c0_11 = arith.constant 0 : index
    %c0_12 = arith.constant 0 : index
    %19 = vector.load %arg7[%c0_11, %c0_12] : memref<128x128xf32, #tpu.memory_space<vmem>>, vector<128x128xf32>
    tpu.vector_store %arg7[%c0_11, %c0_12], %18 {strides = array<i32>} : memref<128x128xf32, #tpu.memory_space<vmem>>, vector<128x128xf32>,
    return
  }
  func.func @transform_0(%arg0: i32) -> (i32, i32) {
    %c0_i32 = arith.constant 0 : i32
    %c0_i32_0 = arith.constant 0 : i32
    return %arg0, %c0_i32 : i32, i32
  }
  func.func @transform_1(%arg0: i32) -> (i32, i32) {
    %c0_i32 = arith.constant 0 : i32
    %c0_i32_0 = arith.constant 0 : i32
    return %arg0, %c0_i32 : i32, i32
  }
  func.func @transform_2(%arg0: i32) -> (i32, i32) {
    %c0_i32 = arith.constant 0 : i32
    %c0_i32_0 = arith.constant 0 : i32
    %c0_i32_1 = arith.constant 0 : i32
    return %c0_i32, %c0_i32_0 : i32, i32
  }
  func.func @transform_3(%arg0: i32) -> (i32, i32) {
    %c0_i32 = arith.constant 0 : i32
    %c0_i32_0 = arith.constant 0 : i32
    %c0_i32_1 = arith.constant 0 : i32
    return %c0_i32, %c0_i32_0 : i32, i32
  }
  func.func @transform_4(%arg0: i32) -> (i32, i32) {
    %c0_i32 = arith.constant 0 : i32
    %c0_i32_0 = arith.constant 0 : i32
    %c0_i32_1 = arith.constant 0 : i32
    return %c0_i32, %c0_i32_0 : i32, i32
  }
  func.func @transform_5(%arg0: i32) -> (i32, i32) {
    %c0_i32 = arith.constant 0 : i32
    %c0_i32_0 = arith.constant 0 : i32
    %c0_i32_1 = arith.constant 0 : i32
    return %c0_i32, %c0_i32_0 : i32, i32
  }
  func.func @transform_6(%arg0: i32) -> (i32, i32) {
    %c0_i32 = arith.constant 0 : i32
    %c0_i32_0 = arith.constant 0 : i32
    return %arg0, %c0_i32 : i32, i32
  }
}

module attributes {stable_mosaic.version = 11 : i64} {
  func.func @_proj_stats_kernel(%arg0: i32, %arg1: memref<128x128xbf16, #tpu.memory_space<vmem>>, %arg2: memref<128x128xbf16, #tpu.memory_space<vmem>>, %arg3: memref<128x128xbf16, #tpu.memory_space<vmem>>, %arg4: memref<128x128xbf16, #tpu.memory_space<vmem>>, %arg5: memref<1x128xf32, #tpu.memory_space<vmem>>, %arg6: memref<1x128xf32, #tpu.memory_space<vmem>>, %arg7: memref<128x128xbf16, #tpu.memory_space<vmem>>, %arg8: memref<1x2x128xf32, #tpu.memory_space<vmem>>, %arg9: memref<128x128xbf16, #tpu.memory_space<vmem>>, %arg10: memref<1x2x128xf32, #tpu.memory_space<vmem>>) attributes {dimension_semantics = [#tpu.dimension_semantics<parallel>], iteration_bounds = array<i64: 1>, scalar_prefetch = 0 : i64, scratch_operands = 0 : i64, tpu.core_type = #tpu.core_type<tc>, window_params = [{transform_indices = @transform_0, window_bounds = array<i64: 128, 128>}, {transform_indices = @transform_1, window_bounds = array<i64: 128, 128>}, {pipeline_mode = #tpu.pipeline_mode<synchronous>, transform_indices = @transform_2, window_bounds = array<i64: 128, 128>}, {pipeline_mode = #tpu.pipeline_mode<synchronous>, transform_indices = @transform_3, window_bounds = array<i64: 128, 128>}, {pipeline_mode = #tpu.pipeline_mode<synchronous>, transform_indices = @transform_4, window_bounds = array<i64: 1, 128>}, {pipeline_mode = #tpu.pipeline_mode<synchronous>, transform_indices = @transform_5, window_bounds = array<i64: 1, 128>}, {transform_indices = @transform_6, window_bounds = array<i64: 128, 128>}, {transform_indices = @transform_7, window_bounds = array<i64: 1, 2, 128>}, {transform_indices = @transform_8, window_bounds = array<i64: 128, 128>}, {transform_indices = @transform_9, window_bounds = array<i64: 1, 2, 128>}]} {
    %c0 = arith.constant 0 : index
    %c0_0 = arith.constant 0 : index
    %0 = vector.load %arg1[%c0, %c0_0] : memref<128x128xbf16, #tpu.memory_space<vmem>>, vector<128x128xbf16>
    %1 = arith.extf %0 : vector<128x128xbf16> to vector<128x128xf32>
    %c0_1 = arith.constant 0 : index
    %c0_2 = arith.constant 0 : index
    %2 = vector.load %arg5[%c0_1, %c0_2] : memref<1x128xf32, #tpu.memory_space<vmem>>, vector<1x128xf32>
    %3 = vector.broadcast %2 : vector<1x128xf32> to vector<128x128xf32>
    %4 = arith.mulf %1, %3 : vector<128x128xf32>
    %c0_3 = arith.constant 0 : index
    %c0_4 = arith.constant 0 : index
    %5 = vector.load %arg6[%c0_3, %c0_4] : memref<1x128xf32, #tpu.memory_space<vmem>>, vector<1x128xf32>
    %6 = vector.broadcast %5 : vector<1x128xf32> to vector<128x128xf32>
    %7 = arith.addf %4, %6 : vector<128x128xf32>
    %cst = arith.constant 0.000000e+00 : f32
    %8 = vector.broadcast %cst : f32 to vector<128x128xf32>
    %9 = arith.maximumf %7, %8 : vector<128x128xf32>
    %10 = arith.truncf %9 : vector<128x128xf32> to vector<128x128xbf16>
    %c0_5 = arith.constant 0 : index
    %c0_6 = arith.constant 0 : index
    %11 = vector.load %arg3[%c0_5, %c0_6] : memref<128x128xbf16, #tpu.memory_space<vmem>>, vector<128x128xbf16>
    %cst_7 = arith.constant dense<0.000000e+00> : vector<128x128xf32>
    %12 = tpu.matmul %10, %11, %cst_7 {dimension_numbers = #tpu.dot_dimension_numbers<[1], [0], [0], [1], [0, 0, 1, 1], [], []>} : vector<128x128xbf16>, vector<128x128xbf16>, vector<128x128xf32> -> vector<128x128xf32>
    %13 = arith.truncf %12 : vector<128x128xf32> to vector<128x128xbf16>
    %c0_8 = arith.constant 0 : index
    %c0_9 = arith.constant 0 : index
    %14 = vector.load %arg7[%c0_8, %c0_9] : memref<128x128xbf16, #tpu.memory_space<vmem>>, vector<128x128xbf16>
    tpu.vector_store %arg7[%c0_8, %c0_9], %13 {strides = array<i32>} : memref<128x128xbf16, #tpu.memory_space<vmem>>, vector<128x128xbf16>,
    %cst_10 = arith.constant dense<0.000000e+00> : vector<128xf32>
    %15 = vector.multi_reduction <add>, %12, %cst_10 [0] : vector<128x128xf32> to vector<128xf32>
    %16 = vector.shape_cast %15 : vector<128xf32> to vector<1x128xf32>
    %17 = arith.mulf %12, %12 : vector<128x128xf32>
    %cst_11 = arith.constant dense<0.000000e+00> : vector<128xf32>
    %18 = vector.multi_reduction <add>, %17, %cst_11 [0] : vector<128x128xf32> to vector<128xf32>
    %19 = vector.shape_cast %18 : vector<128xf32> to vector<1x128xf32>
    %20 = tpu.concatenate %16, %19 in 0 : vector<1x128xf32>, vector<1x128xf32> -> vector<2x128xf32>
    %21 = vector.shape_cast %20 : vector<2x128xf32> to vector<1x2x128xf32>
    %c0_12 = arith.constant 0 : index
    %c0_13 = arith.constant 0 : index
    %c0_14 = arith.constant 0 : index
    %22 = vector.load %arg8[%c0_12, %c0_13, %c0_14] : memref<1x2x128xf32, #tpu.memory_space<vmem>>, vector<1x2x128xf32>
    tpu.vector_store %arg8[%c0_12, %c0_13, %c0_14], %21 {strides = array<i32>} : memref<1x2x128xf32, #tpu.memory_space<vmem>>, vector<1x2x128xf32>,
    %c0_15 = arith.constant 0 : index
    %c0_16 = arith.constant 0 : index
    %23 = vector.load %arg2[%c0_15, %c0_16] : memref<128x128xbf16, #tpu.memory_space<vmem>>, vector<128x128xbf16>
    %c0_17 = arith.constant 0 : index
    %c0_18 = arith.constant 0 : index
    %24 = vector.load %arg4[%c0_17, %c0_18] : memref<128x128xbf16, #tpu.memory_space<vmem>>, vector<128x128xbf16>
    %cst_19 = arith.constant dense<0.000000e+00> : vector<128x128xf32>
    %25 = tpu.matmul %23, %24, %cst_19 {dimension_numbers = #tpu.dot_dimension_numbers<[1], [0], [0], [1], [0, 0, 1, 1], [], []>} : vector<128x128xbf16>, vector<128x128xbf16>, vector<128x128xf32> -> vector<128x128xf32>
    %26 = arith.truncf %25 : vector<128x128xf32> to vector<128x128xbf16>
    %c0_20 = arith.constant 0 : index
    %c0_21 = arith.constant 0 : index
    %27 = vector.load %arg9[%c0_20, %c0_21] : memref<128x128xbf16, #tpu.memory_space<vmem>>, vector<128x128xbf16>
    tpu.vector_store %arg9[%c0_20, %c0_21], %26 {strides = array<i32>} : memref<128x128xbf16, #tpu.memory_space<vmem>>, vector<128x128xbf16>,
    %cst_22 = arith.constant dense<0.000000e+00> : vector<128xf32>
    %28 = vector.multi_reduction <add>, %25, %cst_22 [0] : vector<128x128xf32> to vector<128xf32>
    %29 = vector.shape_cast %28 : vector<128xf32> to vector<1x128xf32>
    %30 = arith.mulf %25, %25 : vector<128x128xf32>
    %cst_23 = arith.constant dense<0.000000e+00> : vector<128xf32>
    %31 = vector.multi_reduction <add>, %30, %cst_23 [0] : vector<128x128xf32> to vector<128xf32>
    %32 = vector.shape_cast %31 : vector<128xf32> to vector<1x128xf32>
    %33 = tpu.concatenate %29, %32 in 0 : vector<1x128xf32>, vector<1x128xf32> -> vector<2x128xf32>
    %34 = vector.shape_cast %33 : vector<2x128xf32> to vector<1x2x128xf32>
    %c0_24 = arith.constant 0 : index
    %c0_25 = arith.constant 0 : index
    %c0_26 = arith.constant 0 : index
    %35 = vector.load %arg10[%c0_24, %c0_25, %c0_26] : memref<1x2x128xf32, #tpu.memory_space<vmem>>, vector<1x2x128xf32>
    tpu.vector_store %arg10[%c0_24, %c0_25, %c0_26], %34 {strides = array<i32>} : memref<1x2x128xf32, #tpu.memory_space<vmem>>, vector<1x2x128xf32>,
    return
  }
  func.func @transform_0(%arg0: i32) -> (i32, i32) {
    %c0_i32 = arith.constant 0 : i32
    %c0_i32_0 = arith.constant 0 : i32
    return %arg0, %c0_i32 : i32, i32
  }
  func.func @transform_1(%arg0: i32) -> (i32, i32) {
    %c0_i32 = arith.constant 0 : i32
    %c0_i32_0 = arith.constant 0 : i32
    return %arg0, %c0_i32 : i32, i32
  }
  func.func @transform_2(%arg0: i32) -> (i32, i32) {
    %c0_i32 = arith.constant 0 : i32
    %c0_i32_0 = arith.constant 0 : i32
    %c0_i32_1 = arith.constant 0 : i32
    return %c0_i32, %c0_i32_0 : i32, i32
  }
  func.func @transform_3(%arg0: i32) -> (i32, i32) {
    %c0_i32 = arith.constant 0 : i32
    %c0_i32_0 = arith.constant 0 : i32
    %c0_i32_1 = arith.constant 0 : i32
    return %c0_i32, %c0_i32_0 : i32, i32
  }
  func.func @transform_4(%arg0: i32) -> (i32, i32) {
    %c0_i32 = arith.constant 0 : i32
    %c0_i32_0 = arith.constant 0 : i32
    %c0_i32_1 = arith.constant 0 : i32
    return %c0_i32, %c0_i32_0 : i32, i32
  }
  func.func @transform_5(%arg0: i32) -> (i32, i32) {
    %c0_i32 = arith.constant 0 : i32
    %c0_i32_0 = arith.constant 0 : i32
    %c0_i32_1 = arith.constant 0 : i32
    return %c0_i32, %c0_i32_0 : i32, i32
  }
  func.func @transform_6(%arg0: i32) -> (i32, i32) {
    %c0_i32 = arith.constant 0 : i32
    %c0_i32_0 = arith.constant 0 : i32
    return %arg0, %c0_i32 : i32, i32
  }
  func.func @transform_7(%arg0: i32) -> (i32, i32, i32) {
    %c0_i32 = arith.constant 0 : i32
    %c0_i32_0 = arith.constant 0 : i32
    %c0_i32_1 = arith.constant 0 : i32
    return %arg0, %c0_i32, %c0_i32_0 : i32, i32, i32
  }
  func.func @transform_8(%arg0: i32) -> (i32, i32) {
    %c0_i32 = arith.constant 0 : i32
    %c0_i32_0 = arith.constant 0 : i32
    return %arg0, %c0_i32 : i32, i32
  }
  func.func @transform_9(%arg0: i32) -> (i32, i32, i32) {
    %c0_i32 = arith.constant 0 : i32
    %c0_i32_0 = arith.constant 0 : i32
    %c0_i32_1 = arith.constant 0 : i32
    return %arg0, %c0_i32, %c0_i32_0 : i32, i32, i32
  }
}

</mosaic_0001>

<llo_original>
// kernel: bottleneck_forward.4
$region0: #{bottleneck_forward.4}
  #allocation0 [shape = 'u32[]', space=smem, size = 0x4, offset = 0x4, fixed_abs, tag = 'smem constant byte address 0x4 - core index']
  #allocation1 [shape = 'u32[144,128]{1,0:T(1,128)}', space=vmem, size = 0x12000, scoped, tag = 'internal scratch']
  %s0 = inlined_call_operand.vmem [shape: bf16[512,128], index: 0, kind: input, shape index: {}]
  %s1 = inlined_call_operand.vmem [shape: bf16[128,128], index: 1, kind: input, shape index: {}]
  %s2 = inlined_call_operand.vmem [shape: bf16[512,128], index: 2, kind: output, shape index: {0}]
  %s3 = inlined_call_operand.vmem [shape: f32[2,2,128], index: 3, kind: output, shape index: {1}]
  %4 = xla_tuple %s2, %s3
  %s5 = sld [smem:[#allocation0]]
  $region49: #{bottleneck_forward.4} parent=0
    _
  %s7 = ssub.s32 1, %s5
  %s8 = scalar_select 0, %s7, %s5
  loop: start=0, step=1, limit=4
  $region2: #{bottleneck_forward.4} parent=0 // loop_pre_header
    _
  $region3: #{bottleneck_forward.4} parent=0 // loop_header
    %s10 = sphi 0, %s14
    %p11 = scmp.ge.s32.totalorder %s10, 4
    %s20 = sphi 0, %s22
    %s23 = sphi 0, %s20
    %s24 = sphi 0, %s23
    %s40 = sphi 0, %s24
    %s44 = sphi 0, %s44
    %s46 = sphi 0, %s44
    %s47 = sphi 0, %s46
    %s61 = sphi 0, %s47
    %s67 = sphi 0, %s69
    %s70 = sphi 0, %s67
    %s71 = sphi 0, %s70
    %s87 = sphi 0, %s71
    %s93 = sphi 0, %s95
    %s96 = sphi 0, %s93
    %s97 = sphi 0, %s96
    %s113 = sphi 0, %s97
  $region4: #{bottleneck_forward.4} parent=0 // loop_header_branch
    %13 = sbr.rel (%p11) target = $region8
  $region5: #{bottleneck_forward.4} parent=0 // loop_body
    %s15 = ssub.s32 %s10, 1
    %s16 = ssub.s32 %s10, 2
    %s17 = sadd.s32 %s10, 1
    %s18 = ssub.s32 %s10, %s17
    %p19 = scmp.eq.s32.totalorder %s18, 0
    %s21 = sadd.s32 %s20, 1
    %s22 = scalar_select %p19, %s20, %s21
    %p25 = pneg %p19
    %p26 = scmp.eq.s32.totalorder %s10, 1
    %p27 = por %p25, %p26
    %p28 = scmp.ne.s32.totalorder %s20, %s23
    %p29 = scmp.eq.s32.totalorder %s10, 0
    %p30 = por %p28, %p29
    %p31 = scmp.ne.s32.totalorder %s20, %s23
    %p32 = scmp.eq.s32.totalorder %s15, 1
    %p33 = por %p31, %p32
    %p34 = scmp.ne.s32.totalorder %s23, %s24
    %p35 = scmp.eq.s32.totalorder %s15, 0
    %p36 = por %p34, %p35
    %p37 = scmp.ne.s32.totalorder %s23, %s24
    %p38 = scmp.eq.s32.totalorder %s16, 1
    %p39 = por %p37, %p38
    %p41 = scmp.ne.s32.totalorder %s24, %s40
    %p42 = scmp.eq.s32.totalorder %s16, 0
    %p43 = por %p41, %p42
    %s45 = sadd.s32 %s44, 1
    %p48 = scmp.eq.s32.totalorder %s10, 1
    %p49 = scmp.ne.s32.totalorder %s44, %s46
    %p50 = scmp.eq.s32.totalorder %s10, 0
    %p51 = por %p49, %p50
    %p52 = scmp.ne.s32.totalorder %s44, %s46
    %p53 = scmp.eq.s32.totalorder %s15, 1
    %p54 = por %p52, %p53
    %p55 = scmp.ne.s32.totalorder %s46, %s47
    %p56 = scmp.eq.s32.totalorder %s15, 0
    %p57 = por %p55, %p56
    %p58 = scmp.ne.s32.totalorder %s46, %s47
    %p59 = scmp.eq.s32.totalorder %s16, 1
    %p60 = por %p58, %p59
    %p62 = scmp.ne.s32.totalorder %s47, %s61
    %p63 = scmp.eq.s32.totalorder %s16, 0
    %p64 = por %p62, %p63
    %s65 = ssub.s32 %s10, %s17
    %p66 = scmp.eq.s32.totalorder %s65, 0
    %s68 = sadd.s32 %s67, 1
    %s69 = scalar_select %p66, %s67, %s68
    %p72 = pneg %p66
    %p73 = scmp.eq.s32.totalorder %s10, 1
    %p74 = por %p72, %p73
    %p75 = scmp.ne.s32.totalorder %s67, %s70
    %p76 = scmp.eq.s32.totalorder %s10, 0
    %p77 = por %p75, %p76
    %p78 = scmp.ne.s32.totalorder %s67, %s70
    %p79 = scmp.eq.s32.totalorder %s15, 1
    %p80 = por %p78, %p79
    %p81 = scmp.ne.s32.totalorder %s70, %s71
    %p82 = scmp.eq.s32.totalorder %s15, 0
    %p83 = por %p81, %p82
    %p84 = scmp.ne.s32.totalorder %s70, %s71
    %p85 = scmp.eq.s32.totalorder %s16, 1
    %p86 = por %p84, %p85
    %p88 = scmp.ne.s32.totalorder %s71, %s87
    %p89 = scmp.eq.s32.totalorder %s16, 0
    %p90 = por %p88, %p89
    %s91 = ssub.s32 %s10, %s17
    %p92 = scmp.eq.s32.totalorder %s91, 0
    %s94 = sadd.s32 %s93, 1
    %s95 = scalar_select %p92, %s93, %s94
    %p98 = pneg %p92
    %p99 = scmp.eq.s32.totalorder %s10, 1
    %p100 = por %p98, %p99
    %p101 = scmp.ne.s32.totalorder %s93, %s96
    %p102 = scmp.eq.s32.totalorder %s10, 0
    %p103 = por %p101, %p102
    %p104 = scmp.ne.s32.totalorder %s93, %s96
    %p105 = scmp.eq.s32.totalorder %s15, 1
    %p106 = por %p104, %p105
    %p107 = scmp.ne.s32.totalorder %s96, %s97
    %p108 = scmp.eq.s32.totalorder %s15, 0
    %p109 = por %p107, %p108
    %p110 = scmp.ne.s32.totalorder %s96, %s97
    %p111 = scmp.eq.s32.totalorder %s16, 1
    %p112 = por %p110, %p111
    %p114 = scmp.ne.s32.totalorder %s97, %s113
    %p115 = scmp.eq.s32.totalorder %s16, 0
    %p116 = por %p114, %p115
    %p117 = scmp.le.s32.totalorder 1, %s10
    %p118 = scmp.lt.s32.totalorder %s10, 3
    %p119 = pnand %p117, %p118
    %p120 = pneg %p119
    // Predicated region
    $region9: #{bottleneck_forward.4} parent=5 // pred_check
      _
    $region10: #{bottleneck_forward.4} parent=5 // pred_check_branch
      %122 = sbr.rel (%p119) target = $region12
    $region11: #{bottleneck_forward.4} parent=5 // pred_region
      %s123 = ssub.s32 %s10, 1
      // Predicated region
      $region13: #{bottleneck_forward.4} parent=11 // pred_check
        %p124 = pneg %p57
      $region14: #{bottleneck_forward.4} parent=11 // pred_check_branch
        %126 = sbr.rel (%p124) target = $region16
      $region15: #{bottleneck_forward.4} parent=11 // pred_region
        _
      $region16: #{bottleneck_forward.4} parent=11 // pred_fallthru
        _
    $region12: #{bottleneck_forward.4} parent=5 // pred_fallthru
      _
    %p127 = scmp.lt.s32.totalorder %s10, 2
    // Predicated region
    $region17: #{bottleneck_forward.4} parent=5 // pred_check
      %p128 = pneg %p127
    $region18: #{bottleneck_forward.4} parent=5 // pred_check_branch
      %130 = sbr.rel (%p128) target = $region20
    $region19: #{bottleneck_forward.4} parent=5 // pred_region
      // Predicated region
      $region21: #{bottleneck_forward.4} parent=19 // pred_check
        %p131 = pneg %p30
      $region22: #{bottleneck_forward.4} parent=19 // pred_check_branch
        %133 = sbr.rel (%p131) target = $region24
      $region23: #{bottleneck_forward.4} parent=19 // pred_region
        %s134 = smul.u32 32, %s10
        %p135 = scmp.lt.s32.totalorder %s134, 63
        %s136 = scalar_select %p135, %s134, 63
        %s137 = smul.addr %s136, 4
        %s138 = scalar_lea.vmem %s0, %s137
        %s139 = smul.u32 32, %s10
      $region24: #{bottleneck_forward.4} parent=19 // pred_fallthru
        _
    $region20: #{bottleneck_forward.4} parent=5 // pred_fallthru
      _
    %p140 = scmp.le.s32.totalorder 1, %s10
    %p141 = scmp.lt.s32.totalorder %s10, 3
    %p142 = pnand %p140, %p141
    %p143 = pneg %p142
    // Predicated region
    $region25: #{bottleneck_forward.4} parent=5 // pred_check
      _
    $region26: #{bottleneck_forward.4} parent=5 // pred_check_branch
      %145 = sbr.rel (%p142) target = $region28
    $region27: #{bottleneck_forward.4} parent=5 // pred_region
      %s146 = ssub.s32 %s10, 1
      %s147 = smul.u32 32, %s15
      %p148 = scmp.lt.s32.totalorder %s147, 63
      %s149 = scalar_select %p148, %s147, 63
      %s150 = smul.addr %s149, 4
      %s151 = scalar_lea.vmem %s0, %s150
      %p152 = pneg %p36
      %p153 = pneg %p33
      %p154 = pneg %p57
      %p155 = pneg %p54
      %p156 = pneg %p83
      %p157 = pneg %p80
      %s158 = smul.u32 32, %s15
      %p159 = scmp.lt.s32.totalorder %s158, 63
      %s160 = scalar_select %p159, %s158, 63
      %s161 = smul.addr %s160, 4
      %s162 = scalar_lea.vmem %s2, %s161
      %p163 = pneg %p109
      %p164 = pneg %p106
      %p165 = scmp.lt.s32.totalorder %s15, 1
      %s166 = scalar_select %p165, %s15, 1
      %s167 = smul.addr %s166, 2
      %s168 = scalar_lea.vmem %s3, %s167
      %s169 = smul.u32 32, %s15
      %p170 = scmp.lt.s32.totalorder %s169, 63
      %s171 = scalar_select %p170, %s169, 63
      %s172 = smul.addr %s171, 4
      %s173 = scalar_lea.vmem %s0, %s172
      %s174 = smul.u32 32, %s15
      %s175 = smul.u32 32, %s15
      %p176 = scmp.lt.s32.totalorder %s175, 63
      %s177 = scalar_select %p176, %s175, 63
      %s178 = smul.addr %s177, 4
      %s179 = scalar_lea.vmem %s2, %s178
      %s180 = smul.u32 32, %s15
      %p181 = scmp.lt.s32.totalorder %s15, 1
      %s182 = scalar_select %p181, %s15, 1
      %s183 = smul.addr %s182, 2
      %s184 = scalar_lea.vmem %s3, %s183
      %v186 = vld [vmem:[%s173] sm:$0xf]
      %v187 = vld [vmem:[%s173 + $0x4] sm:$0xf]
      %v188 = vld [vmem:[%s173 + $0x8] sm:$0xf]
      %v189 = vld [vmem:[%s173 + $0xc] sm:$0xf]
      %v190 = vld [vmem:[%s173 + $0x10] sm:$0xf]
      %v191 = vld [vmem:[%s173 + $0x14] sm:$0xf]
      %v192 = vld [vmem:[%s173 + $0x18] sm:$0xf]
      %v193 = vld [vmem:[%s173 + $0x1c] sm:$0xf]
      %v194 = vld [vmem:[%s173 + $0x20] sm:$0xf]
      %v195 = vld [vmem:[%s173 + $0x24] sm:$0xf]
      %v196 = vld [vmem:[%s173 + $0x28] sm:$0xf]
      %v197 = vld [vmem:[%s173 + $0x2c] sm:$0xf]
      %v198 = vld [vmem:[%s173 + $0x30] sm:$0xf]
      %v199 = vld [vmem:[%s173 + $0x34] sm:$0xf]
      %v200 = vld [vmem:[%s173 + $0x38] sm:$0xf]
      %v201 = vld [vmem:[%s173 + $0x3c] sm:$0xf]
      %v202 = vld [vmem:[%s173 + $0x40] sm:$0xf]
      %v203 = vld [vmem:[%s173 + $0x44] sm:$0xf]
      %v204 = vld [vmem:[%s173 + $0x48] sm:$0xf]
      %v205 = vld [vmem:[%s173 + $0x4c] sm:$0xf]
      %v206 = vld [vmem:[%s173 + $0x50] sm:$0xf]
      %v207 = vld [vmem:[%s173 + $0x54] sm:$0xf]
      %v208 = vld [vmem:[%s173 + $0x58] sm:$0xf]
      %v209 = vld [vmem:[%s173 + $0x5c] sm:$0xf]
      %v210 = vld [vmem:[%s173 + $0x60] sm:$0xf]
      %v211 = vld [vmem:[%s173 + $0x64] sm:$0xf]
      %v212 = vld [vmem:[%s173 + $0x68] sm:$0xf]
      %v213 = vld [vmem:[%s173 + $0x6c] sm:$0xf]
      %v214 = vld [vmem:[%s173 + $0x70] sm:$0xf]
      %v215 = vld [vmem:[%s173 + $0x74] sm:$0xf]
      %v216 = vld [vmem:[%s173 + $0x78] sm:$0xf]
      %v217 = vld [vmem:[%s173 + $0x7c] sm:$0xf]
      %v218 = vld [vmem:[%s1] sm:$0xf]
      %v219 = vld [vmem:[%s1 + $0x4] sm:$0xf]
      %v220 = vld [vmem:[%s1 + $0x8] sm:$0xf]
      %v221 = vld [vmem:[%s1 + $0xc] sm:$0xf]
      %v222 = vld [vmem:[%s1 + $0x10] sm:$0xf]
      %v223 = vld [vmem:[%s1 + $0x14] sm:$0xf]
      %v224 = vld [vmem:[%s1 + $0x18] sm:$0xf]
      %v225 = vld [vmem:[%s1 + $0x1c] sm:$0xf]
      %v226 = vld [vmem:[%s1 + $0x20] sm:$0xf]
      %v227 = vld [vmem:[%s1 + $0x24] sm:$0xf]
      %v228 = vld [vmem:[%s1 + $0x28] sm:$0xf]
      %v229 = vld [vmem:[%s1 + $0x2c] sm:$0xf]
      %v230 = vld [vmem:[%s1 + $0x30] sm:$0xf]
      %v231 = vld [vmem:[%s1 + $0x34] sm:$0xf]
      %v232 = vld [vmem:[%s1 + $0x38] sm:$0xf]
      %v233 = vld [vmem:[%s1 + $0x3c] sm:$0xf]
      %v266 = vunpack.c.l.b16 %v186
      %v267 = vunpack.c.l.b16 %v187
      %v268 = vunpack.c.l.b16 %v188
      %v269 = vunpack.c.l.b16 %v189
      %v270 = vunpack.c.l.b16 %v190
      %v271 = vunpack.c.l.b16 %v191
      %v272 = vunpack.c.l.b16 %v192
      %v273 = vunpack.c.l.b16 %v193
      %v274 = vunpack.c.l.b16 %v194
      %v275 = vunpack.c.l.b16 %v195
      %v276 = vunpack.c.l.b16 %v196
      %v277 = vunpack.c.l.b16 %v197
      %v278 = vunpack.c.l.b16 %v198
      %v279 = vunpack.c.l.b16 %v199
      %v280 = vunpack.c.l.b16 %v200
      %v281 = vunpack.c.l.b16 %v201
      %v282 = vunpack.c.l.b16 %v202
      %v283 = vunpack.c.l.b16 %v203
      %v284 = vunpack.c.l.b16 %v204
      %v285 = vunpack.c.l.b16 %v205
      %v286 = vunpack.c.l.b16 %v206
      %v287 = vunpack.c.l.b16 %v207
      %v288 = vunpack.c.l.b16 %v208
      %v289 = vunpack.c.l.b16 %v209
      %v290 = vunpack.c.l.b16 %v210
      %v291 = vunpack.c.l.b16 %v211
      %v292 = vunpack.c.l.b16 %v212
      %v293 = vunpack.c.l.b16 %v213
      %v294 = vunpack.c.l.b16 %v214
      %v295 = vunpack.c.l.b16 %v215
      %v296 = vunpack.c.l.b16 %v216
      %v297 = vunpack.c.l.b16 %v217
      %v298 = vpack.c.b16 %v267, %v266
      %v299 = vpack.c.b16 %v269, %v268
      %v300 = vpack.c.b16 %v271, %v270
      %v301 = vpack.c.b16 %v273, %v272
      %v302 = vpack.c.b16 %v275, %v274
      %v303 = vpack.c.b16 %v277, %v276
      %v304 = vpack.c.b16 %v279, %v278
      %v305 = vpack.c.b16 %v281, %v280
      %v306 = vpack.c.b16 %v283, %v282
      %v307 = vpack.c.b16 %v285, %v284
      %v308 = vpack.c.b16 %v287, %v286
      %v309 = vpack.c.b16 %v289, %v288
      %v310 = vpack.c.b16 %v291, %v290
      %v311 = vpack.c.b16 %v293, %v292
      %v312 = vpack.c.b16 %v295, %v294
      %v313 = vpack.c.b16 %v297, %v296
      %v346 = vunpack.c.l.b16 %v218
      %v347 = vunpack.c.l.b16 %v219
      %v348 = vunpack.c.l.b16 %v220
      %v349 = vunpack.c.l.b16 %v221
      %v350 = vunpack.c.l.b16 %v222
      %v351 = vunpack.c.l.b16 %v223
      %v352 = vunpack.c.l.b16 %v224
      %v353 = vunpack.c.l.b16 %v225
      %v354 = vunpack.c.l.b16 %v226
      %v355 = vunpack.c.l.b16 %v227
      %v356 = vunpack.c.l.b16 %v228
      %v357 = vunpack.c.l.b16 %v229
      %v358 = vunpack.c.l.b16 %v230
      %v359 = vunpack.c.l.b16 %v231
      %v360 = vunpack.c.l.b16 %v232
      %v361 = vunpack.c.l.b16 %v233
      %v362 = vpack.c.b16 %v347, %v346
      %v363 = vpack.c.b16 %v349, %v348
      %v364 = vpack.c.b16 %v351, %v350
      %v365 = vpack.c.b16 %v353, %v352
      %v366 = vpack.c.b16 %v355, %v354
      %v367 = vpack.c.b16 %v357, %v356
      %v368 = vpack.c.b16 %v359, %v358
      %v369 = vpack.c.b16 %v361, %v360
      %378 = vmatprep.subr.bf16.mxu0 0
      %379 = vmatpush1.bf16.msra.mxu0 %v362
      %380 = vmatprep.subr.bf16.mxu0 0
      %381 = vmatpush1.bf16.msra.mxu0 %v363
      %382 = vmatprep.subr.bf16.mxu0 0
      %383 = vmatpush1.bf16.msra.mxu0 %v364
      %384 = vmatprep.subr.bf16.mxu0 0
      %385 = vmatpush1.bf16.msra.mxu0 %v365
      %386 = vmatprep.subr.bf16.mxu0 0
      %387 = vmatpush1.bf16.msra.mxu0 %v366
      %388 = vmatprep.subr.bf16.mxu0 0
      %389 = vmatpush1.bf16.msra.mxu0 %v367
      %390 = vmatprep.subr.bf16.mxu0 0
      %391 = vmatpush1.bf16.msra.mxu0 %v368
      %392 = vmatprep.subr.bf16.mxu0 0
      %393 = vmatpush1.bf16.msra.mxu0 %v369
      %394 = vmatprep.subr.bf16.mxu0 0
      %395 = vmatpush1.bf16.msra.mxu0 0
      %396 = vmatprep.subr.bf16.mxu0 0
      %397 = vmatpush1.bf16.msra.mxu0 0
      %398 = vmatprep.subr.bf16.mxu0 0
      %399 = vmatpush1.bf16.msra.mxu0 0
      %400 = vmatprep.subr.bf16.mxu0 0
      %401 = vmatpush1.bf16.msra.mxu0 0
      %402 = vmatprep.subr.bf16.mxu0 0
      %403 = vmatpush1.bf16.msra.mxu0 0
      %404 = vmatprep.subr.bf16.mxu0 0
      %405 = vmatpush1.bf16.msra.mxu0 0
      %406 = vmatprep.subr.bf16.mxu0 0
      %407 = vmatpush1.bf16.msra.mxu0 0
      %408 = vmatprep.subr.bf16.mxu0 0
      %409 = vmatpush1.bf16.msra.mxu0 0
      %410 = vmatprep.mubr.bf16.mxu0 0
      %411 = vmatmul.mubr.bf16.gmra.mrb[0].mxu0 %v298
      %v412 = vpop.f32.mrb[0].mxu0
      %v413 = vadd.f32 0.0, %v412
      %v414 = vpop.f32.mrb[0].mxu0
      %v415 = vpop.f32.mrb[0].mxu0
      %v416 = vadd.f32 0.0, %v415
      %v417 = vpop.f32.mrb[0].mxu0
      %418 = vmatprep.mubr.bf16.mxu0 0
      %419 = vmatmul.mubr.bf16.gmra.mrb[0].mxu0 %v299
      %v420 = vpop.f32.mrb[0].mxu0
      %v421 = vadd.f32 0.0, %v420
      %v422 = vpop.f32.mrb[0].mxu0
      %v423 = vpop.f32.mrb[0].mxu0
      %v424 = vadd.f32 0.0, %v423
      %v425 = vpop.f32.mrb[0].mxu0
      %426 = vmatprep.mubr.bf16.mxu0 0
      %427 = vmatmul.mubr.bf16.gmra.mrb[0].mxu0 %v300
      %v428 = vpop.f32.mrb[0].mxu0
      %v429 = vadd.f32 0.0, %v428
      %v430 = vpop.f32.mrb[0].mxu0
      %v431 = vpop.f32.mrb[0].mxu0
      %v432 = vadd.f32 0.0, %v431
      %v433 = vpop.f32.mrb[0].mxu0
      %434 = vmatprep.mubr.bf16.mxu0 0
      %435 = vmatmul.mubr.bf16.gmra.mrb[0].mxu0 %v301
      %v436 = vpop.f32.mrb[0].mxu0
      %v437 = vadd.f32 0.0, %v436
      %v438 = vpop.f32.mrb[0].mxu0
      %v439 = vpop.f32.mrb[0].mxu0
      %v440 = vadd.f32 0.0, %v439
      %v441 = vpop.f32.mrb[0].mxu0
      %442 = vmatprep.mubr.bf16.mxu0 0
      %443 = vmatmul.mubr.bf16.gmra.mrb[0].mxu0 %v302
      %v444 = vpop.f32.mrb[0].mxu0
      %v445 = vadd.f32 0.0, %v444
      %v446 = vpop.f32.mrb[0].mxu0
      %v447 = vpop.f32.mrb[0].mxu0
      %v448 = vadd.f32 0.0, %v447
      %v449 = vpop.f32.mrb[0].mxu0
      %450 = vmatprep.mubr.bf16.mxu0 0
      %451 = vmatmul.mubr.bf16.gmra.mrb[0].mxu0 %v303
      %v452 = vpop.f32.mrb[0].mxu0
      %v453 = vadd.f32 0.0, %v452
      %v454 = vpop.f32.mrb[0].mxu0
      %v455 = vpop.f32.mrb[0].mxu0
      %v456 = vadd.f32 0.0, %v455
      %v457 = vpop.f32.mrb[0].mxu0
      %458 = vmatprep.mubr.bf16.mxu0 0
      %459 = vmatmul.mubr.bf16.gmra.mrb[0].mxu0 %v304
      %v460 = vpop.f32.mrb[0].mxu0
      %v461 = vadd.f32 0.0, %v460
      %v462 = vpop.f32.mrb[0].mxu0
      %v463 = vpop.f32.mrb[0].mxu0
      %v464 = vadd.f32 0.0, %v463
      %v465 = vpop.f32.mrb[0].mxu0
      %466 = vmatprep.mubr.bf16.mxu0 0
      %467 = vmatmul.mubr.bf16.gmra.mrb[0].mxu0 %v305
      %v468 = vpop.f32.mrb[0].mxu0
      %v469 = vadd.f32 0.0, %v468
      %v470 = vpop.f32.mrb[0].mxu0
      %v471 = vpop.f32.mrb[0].mxu0
      %v472 = vadd.f32 0.0, %v471
      %v473 = vpop.f32.mrb[0].mxu0
      %474 = vmatprep.mubr.bf16.mxu0 0
      %475 = vmatmul.mubr.bf16.gmra.mrb[0].mxu0 %v306
      %v476 = vpop.f32.mrb[0].mxu0
      %v477 = vadd.f32 0.0, %v476
      %v478 = vpop.f32.mrb[0].mxu0
      %v479 = vpop.f32.mrb[0].mxu0
      %v480 = vadd.f32 0.0, %v479
      %v481 = vpop.f32.mrb[0].mxu0
      %482 = vmatprep.mubr.bf16.mxu0 0
      %483 = vmatmul.mubr.bf16.gmra.mrb[0].mxu0 %v307
      %v484 = vpop.f32.mrb[0].mxu0
      %v485 = vadd.f32 0.0, %v484
      %v486 = vpop.f32.mrb[0].mxu0
      %v487 = vpop.f32.mrb[0].mxu0
      %v488 = vadd.f32 0.0, %v487
      %v489 = vpop.f32.mrb[0].mxu0
      %490 = vmatprep.mubr.bf16.mxu0 0
      %491 = vmatmul.mubr.bf16.gmra.mrb[0].mxu0 %v308
      %v492 = vpop.f32.mrb[0].mxu0
      %v493 = vadd.f32 0.0, %v492
      %v494 = vpop.f32.mrb[0].mxu0
      %v495 = vpop.f32.mrb[0].mxu0
      %v496 = vadd.f32 0.0, %v495
      %v497 = vpop.f32.mrb[0].mxu0
      %498 = vmatprep.mubr.bf16.mxu0 0
      %499 = vmatmul.mubr.bf16.gmra.mrb[0].mxu0 %v309
      %v500 = vpop.f32.mrb[0].mxu0
      %v501 = vadd.f32 0.0, %v500
      %v502 = vpop.f32.mrb[0].mxu0
      %v503 = vpop.f32.mrb[0].mxu0
      %v504 = vadd.f32 0.0, %v503
      %v505 = vpop.f32.mrb[0].mxu0
      %506 = vmatprep.mubr.bf16.mxu0 0
      %507 = vmatmul.mubr.bf16.gmra.mrb[0].mxu0 %v310
      %v508 = vpop.f32.mrb[0].mxu0
      %v509 = vadd.f32 0.0, %v508
      %v510 = vpop.f32.mrb[0].mxu0
      %v511 = vpop.f32.mrb[0].mxu0
      %v512 = vadd.f32 0.0, %v511
      %v513 = vpop.f32.mrb[0].mxu0
      %514 = vmatprep.mubr.bf16.mxu0 0
      %515 = vmatmul.mubr.bf16.gmra.mrb[0].mxu0 %v311
      %v516 = vpop.f32.mrb[0].mxu0
      %v517 = vadd.f32 0.0, %v516
      %v518 = vpop.f32.mrb[0].mxu0
      %v519 = vpop.f32.mrb[0].mxu0
      %v520 = vadd.f32 0.0, %v519
      %v521 = vpop.f32.mrb[0].mxu0
      %522 = vmatprep.mubr.bf16.mxu0 0
      %523 = vmatmul.mubr.bf16.gmra.mrb[0].mxu0 %v312
      %v524 = vpop.f32.mrb[0].mxu0
      %v525 = vadd.f32 0.0, %v524
      %v526 = vpop.f32.mrb[0].mxu0
      %v527 = vpop.f32.mrb[0].mxu0
      %v528 = vadd.f32 0.0, %v527
      %v529 = vpop.f32.mrb[0].mxu0
      %530 = vmatprep.mubr.bf16.mxu0 0
      %531 = vmatmul.mubr.bf16.gmra.mrb[0].mxu0 %v313
      %v532 = vpop.f32.mrb[0].mxu0
      %v533 = vadd.f32 0.0, %v532
      %v534 = vpop.f32.mrb[0].mxu0
      %v535 = vpop.f32.mrb[0].mxu0
      %v536 = vadd.f32 0.0, %v535
      %v537 = vpop.f32.mrb[0].mxu0
      %538 = vdwg.mxu0
      %v539 = vpack.c.bf16 %v416, %v413
      %v540 = vpack.c.bf16 %v424, %v421
      %v541 = vpack.c.bf16 %v432, %v429
      %v542 = vpack.c.bf16 %v440, %v437
      %v543 = vpack.c.bf16 %v448, %v445
      %v544 = vpack.c.bf16 %v456, %v453
      %v545 = vpack.c.bf16 %v464, %v461
      %v546 = vpack.c.bf16 %v472, %v469
      %v547 = vpack.c.bf16 %v480, %v477
      %v548 = vpack.c.bf16 %v488, %v485
      %v549 = vpack.c.bf16 %v496, %v493
      %v550 = vpack.c.bf16 %v504, %v501
      %v551 = vpack.c.bf16 %v512, %v509
      %v552 = vpack.c.bf16 %v520, %v517
      %v553 = vpack.c.bf16 %v528, %v525
      %v554 = vpack.c.bf16 %v536, %v533
      %v571 = vunpack.c.l.b16 %v539
      %v572 = vunpack.c.h.b16 %v539
      %v573 = vunpack.c.l.b16 %v540
      %v574 = vunpack.c.h.b16 %v540
      %v575 = vunpack.c.l.b16 %v541
      %v576 = vunpack.c.h.b16 %v541
      %v577 = vunpack.c.l.b16 %v542
      %v578 = vunpack.c.h.b16 %v542
      %v579 = vunpack.c.l.b16 %v543
      %v580 = vunpack.c.h.b16 %v543
      %v581 = vunpack.c.l.b16 %v544
      %v582 = vunpack.c.h.b16 %v544
      %v583 = vunpack.c.l.b16 %v545
      %v584 = vunpack.c.h.b16 %v545
      %v585 = vunpack.c.l.b16 %v546
      %v586 = vunpack.c.h.b16 %v546
      %v587 = vunpack.c.l.b16 %v547
      %v588 = vunpack.c.h.b16 %v547
      %v589 = vunpack.c.l.b16 %v548
      %v590 = vunpack.c.h.b16 %v548
      %v591 = vunpack.c.l.b16 %v549
      %v592 = vunpack.c.h.b16 %v549
      %v593 = vunpack.c.l.b16 %v550
      %v594 = vunpack.c.h.b16 %v550
      %v595 = vunpack.c.l.b16 %v551
      %v596 = vunpack.c.h.b16 %v551
      %v597 = vunpack.c.l.b16 %v552
      %v598 = vunpack.c.h.b16 %v552
      %v599 = vunpack.c.l.b16 %v553
      %v600 = vunpack.c.h.b16 %v553
      %v601 = vunpack.c.l.b16 %v554
      %v602 = vunpack.c.h.b16 %v554
      %v603 = vpack.c.b16 %v571, %v571
      %v604 = vpack.c.b16 %v572, %v572
      %v605 = vpack.c.b16 %v573, %v573
      %v606 = vpack.c.b16 %v574, %v574
      %v607 = vpack.c.b16 %v575, %v575
      %v608 = vpack.c.b16 %v576, %v576
      %v609 = vpack.c.b16 %v577, %v577
      %v610 = vpack.c.b16 %v578, %v578
      %v611 = vpack.c.b16 %v579, %v579
      %v612 = vpack.c.b16 %v580, %v580
      %v613 = vpack.c.b16 %v581, %v581
      %v614 = vpack.c.b16 %v582, %v582
      %v615 = vpack.c.b16 %v583, %v583
      %v616 = vpack.c.b16 %v584, %v584
      %v617 = vpack.c.b16 %v585, %v585
      %v618 = vpack.c.b16 %v586, %v586
      %v619 = vpack.c.b16 %v587, %v587
      %v620 = vpack.c.b16 %v588, %v588
      %v621 = vpack.c.b16 %v589, %v589
      %v622 = vpack.c.b16 %v590, %v590
      %v623 = vpack.c.b16 %v591, %v591
      %v624 = vpack.c.b16 %v592, %v592
      %v625 = vpack.c.b16 %v593, %v593
      %v626 = vpack.c.b16 %v594, %v594
      %v627 = vpack.c.b16 %v595, %v595
      %v628 = vpack.c.b16 %v596, %v596
      %v629 = vpack.c.b16 %v597, %v597
      %v630 = vpack.c.b16 %v598, %v598
      %v631 = vpack.c.b16 %v599, %v599
      %v632 = vpack.c.b16 %v600, %v600
      %v633 = vpack.c.b16 %v601, %v601
      %v634 = vpack.c.b16 %v602, %v602
      %667 = vst [vmem:[%s179] sm:$0xf] %v603
      %668 = vst [vmem:[%s179 + $0x4] sm:$0xf] %v604
      %669 = vst [vmem:[%s179 + $0x8] sm:$0xf] %v605
      %670 = vst [vmem:[%s179 + $0xc] sm:$0xf] %v606
      %671 = vst [vmem:[%s179 + $0x10] sm:$0xf] %v607
      %672 = vst [vmem:[%s179 + $0x14] sm:$0xf] %v608
      %673 = vst [vmem:[%s179 + $0x18] sm:$0xf] %v609
      %674 = vst [vmem:[%s179 + $0x1c] sm:$0xf] %v610
      %675 = vst [vmem:[%s179 + $0x20] sm:$0xf] %v611
      %676 = vst [vmem:[%s179 + $0x24] sm:$0xf] %v612
      %677 = vst [vmem:[%s179 + $0x28] sm:$0xf] %v613
      %678 = vst [vmem:[%s179 + $0x2c] sm:$0xf] %v614
      %679 = vst [vmem:[%s179 + $0x30] sm:$0xf] %v615
      %680 = vst [vmem:[%s179 + $0x34] sm:$0xf] %v616
      %681 = vst [vmem:[%s179 + $0x38] sm:$0xf] %v617
      %682 = vst [vmem:[%s179 + $0x3c] sm:$0xf] %v618
      %683 = vst [vmem:[%s179 + $0x40] sm:$0xf] %v619
      %684 = vst [vmem:[%s179 + $0x44] sm:$0xf] %v620
      %685 = vst [vmem:[%s179 + $0x48] sm:$0xf] %v621
      %686 = vst [vmem:[%s179 + $0x4c] sm:$0xf] %v622
      %687 = vst [vmem:[%s179 + $0x50] sm:$0xf] %v623
      %688 = vst [vmem:[%s179 + $0x54] sm:$0xf] %v624
      %689 = vst [vmem:[%s179 + $0x58] sm:$0xf] %v625
      %690 = vst [vmem:[%s179 + $0x5c] sm:$0xf] %v626
      %691 = vst [vmem:[%s179 + $0x60] sm:$0xf] %v627
      %692 = vst [vmem:[%s179 + $0x64] sm:$0xf] %v628
      %693 = vst [vmem:[%s179 + $0x68] sm:$0xf] %v629
      %694 = vst [vmem:[%s179 + $0x6c] sm:$0xf] %v630
      %695 = vst [vmem:[%s179 + $0x70] sm:$0xf] %v631
      %696 = vst [vmem:[%s179 + $0x74] sm:$0xf] %v632
      %697 = vst [vmem:[%s179 + $0x78] sm:$0xf] %v633
      %698 = vst [vmem:[%s179 + $0x7c] sm:$0xf] %v634
      %v699 = vadd.f32 %v413, %v416
      %v700 = vadd.f32 %v699, %v421
      %v701 = vadd.f32 %v700, %v424
      %v702 = vadd.f32 %v701, %v429
      %v703 = vadd.f32 %v702, %v432
      %v704 = vadd.f32 %v703, %v437
      %v705 = vadd.f32 %v704, %v440
      %v706 = vadd.f32 %v705, %v445
      %v707 = vadd.f32 %v706, %v448
      %v708 = vadd.f32 %v707, %v453
      %v709 = vadd.f32 %v708, %v456
      %v710 = vadd.f32 %v709, %v461
      %v711 = vadd.f32 %v710, %v464
      %v712 = vadd.f32 %v711, %v469
      %v713 = vadd.f32 %v712, %v472
      %v714 = vadd.f32 %v713, %v477
      %v715 = vadd.f32 %v714, %v480
      %v716 = vadd.f32 %v715, %v485
      %v717 = vadd.f32 %v716, %v488
      %v718 = vadd.f32 %v717, %v493
      %v719 = vadd.f32 %v718, %v496
      %v720 = vadd.f32 %v719, %v501
      %v721 = vadd.f32 %v720, %v504
      %v722 = vadd.f32 %v721, %v509
      %v723 = vadd.f32 %v722, %v512
      %v724 = vadd.f32 %v723, %v517
      %v725 = vadd.f32 %v724, %v520
      %v726 = vadd.f32 %v725, %v525
      %v727 = vadd.f32 %v726, %v528
      %v728 = vadd.f32 %v727, %v533
      %v729 = vadd.f32 %v728, %v536
      %v730 = vrot.slane %v729, 4
      %v731 = vadd.f32 %v729, %v730
      %v732 = vrot.slane %v731, 2
      %v733 = vadd.f32 %v731, %v732
      %v734 = vrot.slane %v733, 1
      %v735 = vadd.f32 %v733, %v734
      %v736 = vmul.f32 %v413, %v413
      %v737 = vmul.f32 %v416, %v416
      %v738 = vmul.f32 %v421, %v421
      %v739 = vmul.f32 %v424, %v424
      %v740 = vmul.f32 %v429, %v429
      %v741 = vmul.f32 %v432, %v432
      %v742 = vmul.f32 %v437, %v437
      %v743 = vmul.f32 %v440, %v440
      %v744 = vmul.f32 %v445, %v445
      %v745 = vmul.f32 %v448, %v448
      %v746 = vmul.f32 %v453, %v453
      %v747 = vmul.f32 %v456, %v456
      %v748 = vmul.f32 %v461, %v461
      %v749 = vmul.f32 %v464, %v464
      %v750 = vmul.f32 %v469, %v469
      %v751 = vmul.f32 %v472, %v472
      %v752 = vmul.f32 %v477, %v477
      %v753 = vmul.f32 %v480, %v480
      %v754 = vmul.f32 %v485, %v485
      %v755 = vmul.f32 %v488, %v488
      %v756 = vmul.f32 %v493, %v493
      %v757 = vmul.f32 %v496, %v496
      %v758 = vmul.f32 %v501, %v501
      %v759 = vmul.f32 %v504, %v504
      %v760 = vmul.f32 %v509, %v509
      %v761 = vmul.f32 %v512, %v512
      %v762 = vmul.f32 %v517, %v517
      %v763 = vmul.f32 %v520, %v520
      %v764 = vmul.f32 %v525, %v525
      %v765 = vmul.f32 %v528, %v528
      %v766 = vmul.f32 %v533, %v533
      %v767 = vmul.f32 %v536, %v536
      %v768 = vadd.f32 %v736, %v737
      %v769 = vadd.f32 %v768, %v738
      %v770 = vadd.f32 %v769, %v739
      %v771 = vadd.f32 %v770, %v740
      %v772 = vadd.f32 %v771, %v741
      %v773 = vadd.f32 %v772, %v742
      %v774 = vadd.f32 %v773, %v743
      %v775 = vadd.f32 %v774, %v744
      %v776 = vadd.f32 %v775, %v745
      %v777 = vadd.f32 %v776, %v746
      %v778 = vadd.f32 %v777, %v747
      %v779 = vadd.f32 %v778, %v748
      %v780 = vadd.f32 %v779, %v749
      %v781 = vadd.f32 %v780, %v750
      %v782 = vadd.f32 %v781, %v751
      %v783 = vadd.f32 %v782, %v752
      %v784 = vadd.f32 %v783, %v753
      %v785 = vadd.f32 %v784, %v754
      %v786 = vadd.f32 %v785, %v755
      %v787 = vadd.f32 %v786, %v756
      %v788 = vadd.f32 %v787, %v757
      %v789 = vadd.f32 %v788, %v758
      %v790 = vadd.f32 %v789, %v759
      %v791 = vadd.f32 %v790, %v760
      %v792 = vadd.f32 %v791, %v761
      %v793 = vadd.f32 %v792, %v762
      %v794 = vadd.f32 %v793, %v763
      %v795 = vadd.f32 %v794, %v764
      %v796 = vadd.f32 %v795, %v765
      %v797 = vadd.f32 %v796, %v766
      %v798 = vadd.f32 %v797, %v767
      %v799 = vrot.slane %v798, 4
      %v800 = vadd.f32 %v798, %v799
      %v801 = vrot.slane %v800, 2
      %v802 = vadd.f32 %v800, %v801
      %v803 = vrot.slane %v802, 1
      %v804 = vadd.f32 %v802, %v803
      %vm805 = vcmask 1040384
      %v806 = vsel %vm805, %v735, %v804
      %807 = vst [vmem:[%s184] sm:$0x3] %v806
      %s808 = smul.u32 32, %s15
      %p809 = scmp.lt.s32.totalorder %s808, 63
      %s810 = scalar_select %p809, %s808, 63
      %s811 = smul.addr %s810, 4
      %s812 = scalar_lea.vmem %s2, %s811
      %p813 = scmp.lt.s32.totalorder %s15, 1
      %s814 = scalar_select %p813, %s15, 1
      %s815 = smul.addr %s814, 2
      %s816 = scalar_lea.vmem %s3, %s815
      // Predicated region
      $region29: #{bottleneck_forward.4} parent=27 // pred_check
        %p817 = pneg %p80
      $region30: #{bottleneck_forward.4} parent=27 // pred_check_branch
        %819 = sbr.rel (%p817) target = $region32
      $region31: #{bottleneck_forward.4} parent=27 // pred_region
        %s820 = smul.u32 32, %s15
      $region32: #{bottleneck_forward.4} parent=27 // pred_fallthru
        _
      // Predicated region
      $region33: #{bottleneck_forward.4} parent=27 // pred_check
        %p821 = pneg %p106
      $region34: #{bottleneck_forward.4} parent=27 // pred_check_branch
        %823 = sbr.rel (%p821) target = $region36
      $region35: #{bottleneck_forward.4} parent=27 // pred_region
        _
      $region36: #{bottleneck_forward.4} parent=27 // pred_fallthru
        _
    $region28: #{bottleneck_forward.4} parent=5 // pred_fallthru
      _
    %p824 = scmp.le.s32.totalorder 2, %s10
    // Predicated region
    $region37: #{bottleneck_forward.4} parent=5 // pred_check
      %p825 = pneg %p824
    $region38: #{bottleneck_forward.4} parent=5 // pred_check_branch
      %827 = sbr.rel (%p825) target = $region40
    $region39: #{bottleneck_forward.4} parent=5 // pred_region
      %s828 = ssub.s32 %s10, 2
      // Predicated region
      $region41: #{bottleneck_forward.4} parent=39 // pred_check
        %p829 = pneg %p86
      $region42: #{bottleneck_forward.4} parent=39 // pred_check_branch
        %831 = sbr.rel (%p829) target = $region44
      $region43: #{bottleneck_forward.4} parent=39 // pred_region
        %s832 = smul.u32 32, %s16
        %p833 = scmp.lt.s32.totalorder %s832, 63
        %s834 = scalar_select %p833, %s832, 63
        %s835 = smul.addr %s834, 4
        %s836 = scalar_lea.vmem %s2, %s835
      $region44: #{bottleneck_forward.4} parent=39 // pred_fallthru
        _
      // Predicated region
      $region45: #{bottleneck_forward.4} parent=39 // pred_check
        %p837 = pneg %p112
      $region46: #{bottleneck_forward.4} parent=39 // pred_check_branch
        %839 = sbr.rel (%p837) target = $region48
      $region47: #{bottleneck_forward.4} parent=39 // pred_region
        %p840 = scmp.lt.s32.totalorder %s16, 1
        %s841 = scalar_select %p840, %s16, 1
        %s842 = smul.addr %s841, 2
        %s843 = scalar_lea.vmem %s3, %s842
      $region48: #{bottleneck_forward.4} parent=39 // pred_fallthru
        _
    $region40: #{bottleneck_forward.4} parent=5 // pred_fallthru
      _
  $region6: #{bottleneck_forward.4} parent=0 // loop_footer
    %s14 = sadd.s32 1, %s10
  $region7: #{bottleneck_forward.4} parent=0 // loop_footer_branch
    %9 = sbr.rel target = $region3
  $region8: #{bottleneck_forward.4} parent=0 // loop_exit
    _

// kernel: bottleneck_forward.7
$region0: #{bottleneck_forward.7}
  #allocation0 [shape = 'u32[]', space=smem, size = 0x4, offset = 0x4, fixed_abs, tag = 'smem constant byte address 0x4 - core index']
  #allocation1 [shape = 'u32[144,128]{1,0:T(1,128)}', space=vmem, size = 0x12000, scoped, tag = 'internal scratch']
  %s0 = inlined_call_operand.vmem [shape: bf16[128,128], index: 0, kind: input, shape index: {}]
  %s1 = inlined_call_operand.vmem [shape: bf16[128,128], index: 1, kind: input, shape index: {}]
  %s2 = inlined_call_operand.vmem [shape: f32[1,128], index: 2, kind: input, shape index: {}]
  %s3 = inlined_call_operand.vmem [shape: f32[1,128], index: 3, kind: input, shape index: {}]
  %s4 = inlined_call_operand.vmem [shape: f32[1,128], index: 4, kind: input, shape index: {}]
  %s5 = inlined_call_operand.vmem [shape: f32[1,128], index: 5, kind: input, shape index: {}]
  %s6 = inlined_call_operand.vmem [shape: f32[128,128], index: 6, kind: output, shape index: {}]
  %s7 = sld [smem:[#allocation0]]
  $region34: #{bottleneck_forward.7} parent=0
    _
  %s9 = ssub.s32 1, %s7
  %s10 = scalar_select 0, %s9, %s7
  // Predicated region
  $region2: #{bottleneck_forward.7} parent=0 // pred_check
    _
  $region3: #{bottleneck_forward.7} parent=0 // pred_check_branch
    %12 = sbr.rel (0) target = $region5
  $region4: #{bottleneck_forward.7} parent=0 // pred_region
    _
  $region5: #{bottleneck_forward.7} parent=0 // pred_fallthru
    _
  // Predicated region
  $region6: #{bottleneck_forward.7} parent=0 // pred_check
    _
  $region7: #{bottleneck_forward.7} parent=0 // pred_check_branch
    %14 = sbr.rel (0) target = $region9
  $region8: #{bottleneck_forward.7} parent=0 // pred_region
    _
  $region9: #{bottleneck_forward.7} parent=0 // pred_fallthru
    _
  // Predicated region
  $region10: #{bottleneck_forward.7} parent=0 // pred_check
    _
  $region11: #{bottleneck_forward.7} parent=0 // pred_check_branch
    %16 = sbr.rel (0) target = $region13
  $region12: #{bottleneck_forward.7} parent=0 // pred_region
    _
  $region13: #{bottleneck_forward.7} parent=0 // pred_fallthru
    _
  // Predicated region
  $region14: #{bottleneck_forward.7} parent=0 // pred_check
    _
  $region15: #{bottleneck_forward.7} parent=0 // pred_check_branch
    %18 = sbr.rel (0) target = $region17
  $region16: #{bottleneck_forward.7} parent=0 // pred_region
    _
  $region17: #{bottleneck_forward.7} parent=0 // pred_fallthru
    _
  // Predicated region
  $region18: #{bottleneck_forward.7} parent=0 // pred_check
    _
  $region19: #{bottleneck_forward.7} parent=0 // pred_check_branch
    %20 = sbr.rel (0) target = $region21
  $region20: #{bottleneck_forward.7} parent=0 // pred_region
    _
  $region21: #{bottleneck_forward.7} parent=0 // pred_fallthru
    _
  // Predicated region
  $region22: #{bottleneck_forward.7} parent=0 // pred_check
    _
  $region23: #{bottleneck_forward.7} parent=0 // pred_check_branch
    %22 = sbr.rel (0) target = $region25
  $region24: #{bottleneck_forward.7} parent=0 // pred_region
    _
  $region25: #{bottleneck_forward.7} parent=0 // pred_fallthru
    _
  %v23 = vld [vmem:[%s0] sm:$0xf]
  %v24 = vld [vmem:[%s0 + $0x4] sm:$0xf]
  %v25 = vld [vmem:[%s0 + $0x8] sm:$0xf]
  %v26 = vld [vmem:[%s0 + $0xc] sm:$0xf]
  %v27 = vld [vmem:[%s0 + $0x10] sm:$0xf]
  %v28 = vld [vmem:[%s0 + $0x14] sm:$0xf]
  %v29 = vld [vmem:[%s0 + $0x18] sm:$0xf]
  %v30 = vld [vmem:[%s0 + $0x1c] sm:$0xf]
  %v31 = vld [vmem:[%s0 + $0x20] sm:$0xf]
  %v32 = vld [vmem:[%s0 + $0x24] sm:$0xf]
  %v33 = vld [vmem:[%s0 + $0x28] sm:$0xf]
  %v34 = vld [vmem:[%s0 + $0x2c] sm:$0xf]
  %v35 = vld [vmem:[%s0 + $0x30] sm:$0xf]
  %v36 = vld [vmem:[%s0 + $0x34] sm:$0xf]
  %v37 = vld [vmem:[%s0 + $0x38] sm:$0xf]
  %v38 = vld [vmem:[%s0 + $0x3c] sm:$0xf]
  %v39 = vunpack.c.l.bf16 %v23
  %v40 = vunpack.c.l.bf16 %v24
  %v41 = vunpack.c.l.bf16 %v25
  %v42 = vunpack.c.l.bf16 %v26
  %v43 = vunpack.c.l.bf16 %v27
  %v44 = vunpack.c.l.bf16 %v28
  %v45 = vunpack.c.l.bf16 %v29
  %v46 = vunpack.c.l.bf16 %v30
  %v47 = vunpack.c.l.bf16 %v31
  %v48 = vunpack.c.l.bf16 %v32
  %v49 = vunpack.c.l.bf16 %v33
  %v50 = vunpack.c.l.bf16 %v34
  %v51 = vunpack.c.l.bf16 %v35
  %v52 = vunpack.c.l.bf16 %v36
  %v53 = vunpack.c.l.bf16 %v37
  %v54 = vunpack.c.l.bf16 %v38
  %v55 = vld [vmem:[%s2] sm:$0x1]
  %v57 = vlaneseq
  %v58 = vshrl.u32 %v57, 7
  %v59 = vsub.s32 0, %v58
  %v60 = vrot.slane %v55, %v59
  %v62 = vmul.f32 %v39, %v60
  %v63 = vmul.f32 %v40, %v60
  %v64 = vmul.f32 %v41, %v60
  %v65 = vmul.f32 %v42, %v60
  %v66 = vmul.f32 %v43, %v60
  %v67 = vmul.f32 %v44, %v60
  %v68 = vmul.f32 %v45, %v60
  %v69 = vmul.f32 %v46, %v60
  %v70 = vmul.f32 %v47, %v60
  %v71 = vmul.f32 %v48, %v60
  %v72 = vmul.f32 %v49, %v60
  %v73 = vmul.f32 %v50, %v60
  %v74 = vmul.f32 %v51, %v60
  %v75 = vmul.f32 %v52, %v60
  %v76 = vmul.f32 %v53, %v60
  %v77 = vmul.f32 %v54, %v60
  %v78 = vld [vmem:[%s3] sm:$0x1]
  %v80 = vlaneseq
  %v81 = vshrl.u32 %v80, 7
  %v82 = vsub.s32 0, %v81
  %v83 = vrot.slane %v78, %v82
  %v85 = vadd.f32 %v62, %v83
  %v86 = vadd.f32 %v63, %v83
  %v87 = vadd.f32 %v64, %v83
  %v88 = vadd.f32 %v65, %v83
  %v89 = vadd.f32 %v66, %v83
  %v90 = vadd.f32 %v67, %v83
  %v91 = vadd.f32 %v68, %v83
  %v92 = vadd.f32 %v69, %v83
  %v93 = vadd.f32 %v70, %v83
  %v94 = vadd.f32 %v71, %v83
  %v95 = vadd.f32 %v72, %v83
  %v96 = vadd.f32 %v73, %v83
  %v97 = vadd.f32 %v74, %v83
  %v98 = vadd.f32 %v75, %v83
  %v99 = vadd.f32 %v76, %v83
  %v100 = vadd.f32 %v77, %v83
  %v101 = vld [vmem:[%s1] sm:$0xf]
  %v102 = vld [vmem:[%s1 + $0x4] sm:$0xf]
  %v103 = vld [vmem:[%s1 + $0x8] sm:$0xf]
  %v104 = vld [vmem:[%s1 + $0xc] sm:$0xf]
  %v105 = vld [vmem:[%s1 + $0x10] sm:$0xf]
  %v106 = vld [vmem:[%s1 + $0x14] sm:$0xf]
  %v107 = vld [vmem:[%s1 + $0x18] sm:$0xf]
  %v108 = vld [vmem:[%s1 + $0x1c] sm:$0xf]
  %v109 = vld [vmem:[%s1 + $0x20] sm:$0xf]
  %v110 = vld [vmem:[%s1 + $0x24] sm:$0xf]
  %v111 = vld [vmem:[%s1 + $0x28] sm:$0xf]
  %v112 = vld [vmem:[%s1 + $0x2c] sm:$0xf]
  %v113 = vld [vmem:[%s1 + $0x30] sm:$0xf]
  %v114 = vld [vmem:[%s1 + $0x34] sm:$0xf]
  %v115 = vld [vmem:[%s1 + $0x38] sm:$0xf]
  %v116 = vld [vmem:[%s1 + $0x3c] sm:$0xf]
  %v117 = vunpack.c.l.bf16 %v101
  %v118 = vunpack.c.l.bf16 %v102
  %v119 = vunpack.c.l.bf16 %v103
  %v120 = vunpack.c.l.bf16 %v104
  %v121 = vunpack.c.l.bf16 %v105
  %v122 = vunpack.c.l.bf16 %v106
  %v123 = vunpack.c.l.bf16 %v107
  %v124 = vunpack.c.l.bf16 %v108
  %v125 = vunpack.c.l.bf16 %v109
  %v126 = vunpack.c.l.bf16 %v110
  %v127 = vunpack.c.l.bf16 %v111
  %v128 = vunpack.c.l.bf16 %v112
  %v129 = vunpack.c.l.bf16 %v113
  %v130 = vunpack.c.l.bf16 %v114
  %v131 = vunpack.c.l.bf16 %v115
  %v132 = vunpack.c.l.bf16 %v116
  %v133 = vld [vmem:[%s4] sm:$0x1]
  %v135 = vlaneseq
  %v136 = vshrl.u32 %v135, 7
  %v137 = vsub.s32 0, %v136
  %v138 = vrot.slane %v133, %v137
  %v140 = vmul.f32 %v117, %v138
  %v141 = vmul.f32 %v118, %v138
  %v142 = vmul.f32 %v119, %v138
  %v143 = vmul.f32 %v120, %v138
  %v144 = vmul.f32 %v121, %v138
  %v145 = vmul.f32 %v122, %v138
  %v146 = vmul.f32 %v123, %v138
  %v147 = vmul.f32 %v124, %v138
  %v148 = vmul.f32 %v125, %v138
  %v149 = vmul.f32 %v126, %v138
  %v150 = vmul.f32 %v127, %v138
  %v151 = vmul.f32 %v128, %v138
  %v152 = vmul.f32 %v129, %v138
  %v153 = vmul.f32 %v130, %v138
  %v154 = vmul.f32 %v131, %v138
  %v155 = vmul.f32 %v132, %v138
  %v156 = vld [vmem:[%s5] sm:$0x1]
  %v158 = vlaneseq
  %v159 = vshrl.u32 %v158, 7
  %v160 = vsub.s32 0, %v159
  %v161 = vrot.slane %v156, %v160
  %v163 = vadd.f32 %v140, %v161
  %v164 = vadd.f32 %v141, %v161
  %v165 = vadd.f32 %v142, %v161
  %v166 = vadd.f32 %v143, %v161
  %v167 = vadd.f32 %v144, %v161
  %v168 = vadd.f32 %v145, %v161
  %v169 = vadd.f32 %v146, %v161
  %v170 = vadd.f32 %v147, %v161
  %v171 = vadd.f32 %v148, %v161
  %v172 = vadd.f32 %v149, %v161
  %v173 = vadd.f32 %v150, %v161
  %v174 = vadd.f32 %v151, %v161
  %v175 = vadd.f32 %v152, %v161
  %v176 = vadd.f32 %v153, %v161
  %v177 = vadd.f32 %v154, %v161
  %v178 = vadd.f32 %v155, %v161
  %v179 = vadd.f32 %v85, %v163
  %v180 = vadd.f32 %v86, %v164
  %v181 = vadd.f32 %v87, %v165
  %v182 = vadd.f32 %v88, %v166
  %v183 = vadd.f32 %v89, %v167
  %v184 = vadd.f32 %v90, %v168
  %v185 = vadd.f32 %v91, %v169
  %v186 = vadd.f32 %v92, %v170
  %v187 = vadd.f32 %v93, %v171
  %v188 = vadd.f32 %v94, %v172
  %v189 = vadd.f32 %v95, %v173
  %v190 = vadd.f32 %v96, %v174
  %v191 = vadd.f32 %v97, %v175
  %v192 = vadd.f32 %v98, %v176
  %v193 = vadd.f32 %v99, %v177
  %v194 = vadd.f32 %v100, %v178
  %v195 = vmax.f32 %v179, 0.0
  %v196 = vmax.f32 %v180, 0.0
  %v197 = vmax.f32 %v181, 0.0
  %v198 = vmax.f32 %v182, 0.0
  %v199 = vmax.f32 %v183, 0.0
  %v200 = vmax.f32 %v184, 0.0
  %v201 = vmax.f32 %v185, 0.0
  %v202 = vmax.f32 %v186, 0.0
  %v203 = vmax.f32 %v187, 0.0
  %v204 = vmax.f32 %v188, 0.0
  %v205 = vmax.f32 %v189, 0.0
  %v206 = vmax.f32 %v190, 0.0
  %v207 = vmax.f32 %v191, 0.0
  %v208 = vmax.f32 %v192, 0.0
  %v209 = vmax.f32 %v193, 0.0
  %v210 = vmax.f32 %v194, 0.0
  %211 = vst [vmem:[%s6] sm:$0xff] %v195
  %212 = vst [vmem:[%s6 + $0x8] sm:$0xff] %v196
  %213 = vst [vmem:[%s6 + $0x10] sm:$0xff] %v197
  %214 = vst [vmem:[%s6 + $0x18] sm:$0xff] %v198
  %215 = vst [vmem:[%s6 + $0x20] sm:$0xff] %v199
  %216 = vst [vmem:[%s6 + $0x28] sm:$0xff] %v200
  %217 = vst [vmem:[%s6 + $0x30] sm:$0xff] %v201
  %218 = vst [vmem:[%s6 + $0x38] sm:$0xff] %v202
  %219 = vst [vmem:[%s6 + $0x40] sm:$0xff] %v203
  %220 = vst [vmem:[%s6 + $0x48] sm:$0xff] %v204
  %221 = vst [vmem:[%s6 + $0x50] sm:$0xff] %v205
  %222 = vst [vmem:[%s6 + $0x58] sm:$0xff] %v206
  %223 = vst [vmem:[%s6 + $0x60] sm:$0xff] %v207
  %224 = vst [vmem:[%s6 + $0x68] sm:$0xff] %v208
  %225 = vst [vmem:[%s6 + $0x70] sm:$0xff] %v209
  %226 = vst [vmem:[%s6 + $0x78] sm:$0xff] %v210
  // Predicated region
  $region26: #{bottleneck_forward.7} parent=0 // pred_check
    _
  $region27: #{bottleneck_forward.7} parent=0 // pred_check_branch
    %228 = sbr.rel (0) target = $region29
  $region28: #{bottleneck_forward.7} parent=0 // pred_region
    _
  $region29: #{bottleneck_forward.7} parent=0 // pred_fallthru
    _
  // Predicated region
  $region30: #{bottleneck_forward.7} parent=0 // pred_check
    _
  $region31: #{bottleneck_forward.7} parent=0 // pred_check_branch
    %230 = sbr.rel (0) target = $region33
  $region32: #{bottleneck_forward.7} parent=0 // pred_region
    _
  $region33: #{bottleneck_forward.7} parent=0 // pred_fallthru
    _

// kernel: bottleneck_forward.6
$region0: #{bottleneck_forward.6}
  #allocation0 [shape = 'u32[]', space=smem, size = 0x4, offset = 0x4, fixed_abs, tag = 'smem constant byte address 0x4 - core index']
  #allocation1 [shape = 'u32[144,128]{1,0:T(1,128)}', space=vmem, size = 0x12000, scoped, tag = 'internal scratch']
  %s0 = inlined_call_operand.vmem [shape: bf16[128,128], index: 0, kind: input, shape index: {}]
  %s1 = inlined_call_operand.vmem [shape: bf16[128,128], index: 1, kind: input, shape index: {}]
  %s2 = inlined_call_operand.vmem [shape: bf16[128,128], index: 2, kind: input, shape index: {}]
  %s3 = inlined_call_operand.vmem [shape: bf16[128,128], index: 3, kind: input, shape index: {}]
  %s4 = inlined_call_operand.vmem [shape: f32[1,128], index: 4, kind: input, shape index: {}]
  %s5 = inlined_call_operand.vmem [shape: f32[1,128], index: 5, kind: input, shape index: {}]
  %s6 = inlined_call_operand.vmem [shape: bf16[128,128], index: 6, kind: output, shape index: {0}]
  %s7 = inlined_call_operand.vmem [shape: f32[1,2,128], index: 7, kind: output, shape index: {1}]
  %s8 = inlined_call_operand.vmem [shape: bf16[128,128], index: 8, kind: output, shape index: {2}]
  %s9 = inlined_call_operand.vmem [shape: f32[1,2,128], index: 9, kind: output, shape index: {3}]
  %10 = xla_tuple %s6, %s7, %s8, %s9
  %s11 = sld [smem:[#allocation0]]
  $region58: #{bottleneck_forward.6} parent=0
    _
  %s13 = ssub.s32 1, %s11
  %s14 = scalar_select 0, %s13, %s11
  // Predicated region
  $region2: #{bottleneck_forward.6} parent=0 // pred_check
    _
  $region3: #{bottleneck_forward.6} parent=0 // pred_check_branch
    %16 = sbr.rel (0) target = $region5
  $region4: #{bottleneck_forward.6} parent=0 // pred_region
    _
  $region5: #{bottleneck_forward.6} parent=0 // pred_fallthru
    _
  // Predicated region
  $region6: #{bottleneck_forward.6} parent=0 // pred_check
    _
  $region7: #{bottleneck_forward.6} parent=0 // pred_check_branch
    %18 = sbr.rel (0) target = $region9
  $region8: #{bottleneck_forward.6} parent=0 // pred_region
    _
  $region9: #{bottleneck_forward.6} parent=0 // pred_fallthru
    _
  // Predicated region
  $region10: #{bottleneck_forward.6} parent=0 // pred_check
    _
  $region11: #{bottleneck_forward.6} parent=0 // pred_check_branch
    %20 = sbr.rel (0) target = $region13
  $region12: #{bottleneck_forward.6} parent=0 // pred_region
    _
  $region13: #{bottleneck_forward.6} parent=0 // pred_fallthru
    _
  // Predicated region
  $region14: #{bottleneck_forward.6} parent=0 // pred_check
    _
  $region15: #{bottleneck_forward.6} parent=0 // pred_check_branch
    %22 = sbr.rel (0) target = $region17
  $region16: #{bottleneck_forward.6} parent=0 // pred_region
    _
  $region17: #{bottleneck_forward.6} parent=0 // pred_fallthru
    _
  // Predicated region
  $region18: #{bottleneck_forward.6} parent=0 // pred_check
    _
  $region19: #{bottleneck_forward.6} parent=0 // pred_check_branch
    %24 = sbr.rel (0) target = $region21
  $region20: #{bottleneck_forward.6} parent=0 // pred_region
    _
  $region21: #{bottleneck_forward.6} parent=0 // pred_fallthru
    _
  // Predicated region
  $region22: #{bottleneck_forward.6} parent=0 // pred_check
    _
  $region23: #{bottleneck_forward.6} parent=0 // pred_check_branch
    %26 = sbr.rel (0) target = $region25
  $region24: #{bottleneck_forward.6} parent=0 // pred_region
    _
  $region25: #{bottleneck_forward.6} parent=0 // pred_fallthru
    _
  %v28 = vld [vmem:[%s0] sm:$0xf]
  %v29 = vld [vmem:[%s0 + $0x4] sm:$0xf]
  %v30 = vld [vmem:[%s0 + $0x8] sm:$0xf]
  %v31 = vld [vmem:[%s0 + $0xc] sm:$0xf]
  %v32 = vld [vmem:[%s0 + $0x10] sm:$0xf]
  %v33 = vld [vmem:[%s0 + $0x14] sm:$0xf]
  %v34 = vld [vmem:[%s0 + $0x18] sm:$0xf]
  %v35 = vld [vmem:[%s0 + $0x1c] sm:$0xf]
  %v36 = vld [vmem:[%s0 + $0x20] sm:$0xf]
  %v37 = vld [vmem:[%s0 + $0x24] sm:$0xf]
  %v38 = vld [vmem:[%s0 + $0x28] sm:$0xf]
  %v39 = vld [vmem:[%s0 + $0x2c] sm:$0xf]
  %v40 = vld [vmem:[%s0 + $0x30] sm:$0xf]
  %v41 = vld [vmem:[%s0 + $0x34] sm:$0xf]
  %v42 = vld [vmem:[%s0 + $0x38] sm:$0xf]
  %v43 = vld [vmem:[%s0 + $0x3c] sm:$0xf]
  %v44 = vunpack.c.l.bf16 %v28
  %v45 = vunpack.c.l.bf16 %v29
  %v46 = vunpack.c.l.bf16 %v30
  %v47 = vunpack.c.l.bf16 %v31
  %v48 = vunpack.c.l.bf16 %v32
  %v49 = vunpack.c.l.bf16 %v33
  %v50 = vunpack.c.l.bf16 %v34
  %v51 = vunpack.c.l.bf16 %v35
  %v52 = vunpack.c.l.bf16 %v36
  %v53 = vunpack.c.l.bf16 %v37
  %v54 = vunpack.c.l.bf16 %v38
  %v55 = vunpack.c.l.bf16 %v39
  %v56 = vunpack.c.l.bf16 %v40
  %v57 = vunpack.c.l.bf16 %v41
  %v58 = vunpack.c.l.bf16 %v42
  %v59 = vunpack.c.l.bf16 %v43
  %v60 = vld [vmem:[%s4] sm:$0x1]
  %v62 = vlaneseq
  %v63 = vshrl.u32 %v62, 7
  %v64 = vsub.s32 0, %v63
  %v65 = vrot.slane %v60, %v64
  %v67 = vmul.f32 %v44, %v65
  %v68 = vmul.f32 %v45, %v65
  %v69 = vmul.f32 %v46, %v65
  %v70 = vmul.f32 %v47, %v65
  %v71 = vmul.f32 %v48, %v65
  %v72 = vmul.f32 %v49, %v65
  %v73 = vmul.f32 %v50, %v65
  %v74 = vmul.f32 %v51, %v65
  %v75 = vmul.f32 %v52, %v65
  %v76 = vmul.f32 %v53, %v65
  %v77 = vmul.f32 %v54, %v65
  %v78 = vmul.f32 %v55, %v65
  %v79 = vmul.f32 %v56, %v65
  %v80 = vmul.f32 %v57, %v65
  %v81 = vmul.f32 %v58, %v65
  %v82 = vmul.f32 %v59, %v65
  %v83 = vld [vmem:[%s5] sm:$0x1]
  %v85 = vlaneseq
  %v86 = vshrl.u32 %v85, 7
  %v87 = vsub.s32 0, %v86
  %v88 = vrot.slane %v83, %v87
  %v90 = vadd.f32 %v67, %v88
  %v91 = vadd.f32 %v68, %v88
  %v92 = vadd.f32 %v69, %v88
  %v93 = vadd.f32 %v70, %v88
  %v94 = vadd.f32 %v71, %v88
  %v95 = vadd.f32 %v72, %v88
  %v96 = vadd.f32 %v73, %v88
  %v97 = vadd.f32 %v74, %v88
  %v98 = vadd.f32 %v75, %v88
  %v99 = vadd.f32 %v76, %v88
  %v100 = vadd.f32 %v77, %v88
  %v101 = vadd.f32 %v78, %v88
  %v102 = vadd.f32 %v79, %v88
  %v103 = vadd.f32 %v80, %v88
  %v104 = vadd.f32 %v81, %v88
  %v105 = vadd.f32 %v82, %v88
  %v106 = vmax.f32 %v90, 0.0
  %v107 = vmax.f32 %v91, 0.0
  %v108 = vmax.f32 %v92, 0.0
  %v109 = vmax.f32 %v93, 0.0
  %v110 = vmax.f32 %v94, 0.0
  %v111 = vmax.f32 %v95, 0.0
  %v112 = vmax.f32 %v96, 0.0
  %v113 = vmax.f32 %v97, 0.0
  %v114 = vmax.f32 %v98, 0.0
  %v115 = vmax.f32 %v99, 0.0
  %v116 = vmax.f32 %v100, 0.0
  %v117 = vmax.f32 %v101, 0.0
  %v118 = vmax.f32 %v102, 0.0
  %v119 = vmax.f32 %v103, 0.0
  %v120 = vmax.f32 %v104, 0.0
  %v121 = vmax.f32 %v105, 0.0
  %v122 = vpack.c.bf16 %v107, %v106
  %v123 = vpack.c.bf16 %v109, %v108
  %v124 = vpack.c.bf16 %v111, %v110
  %v125 = vpack.c.bf16 %v113, %v112
  %v126 = vpack.c.bf16 %v115, %v114
  %v127 = vpack.c.bf16 %v117, %v116
  %v128 = vpack.c.bf16 %v119, %v118
  %v129 = vpack.c.bf16 %v121, %v120
  %v130 = vld [vmem:[%s2] sm:$0xf]
  %v131 = vld [vmem:[%s2 + $0x4] sm:$0xf]
  %v132 = vld [vmem:[%s2 + $0x8] sm:$0xf]
  %v133 = vld [vmem:[%s2 + $0xc] sm:$0xf]
  %v134 = vld [vmem:[%s2 + $0x10] sm:$0xf]
  %v135 = vld [vmem:[%s2 + $0x14] sm:$0xf]
  %v136 = vld [vmem:[%s2 + $0x18] sm:$0xf]
  %v137 = vld [vmem:[%s2 + $0x1c] sm:$0xf]
  %v138 = vld [vmem:[%s2 + $0x20] sm:$0xf]
  %v139 = vld [vmem:[%s2 + $0x24] sm:$0xf]
  %v140 = vld [vmem:[%s2 + $0x28] sm:$0xf]
  %v141 = vld [vmem:[%s2 + $0x2c] sm:$0xf]
  %v142 = vld [vmem:[%s2 + $0x30] sm:$0xf]
  %v143 = vld [vmem:[%s2 + $0x34] sm:$0xf]
  %v144 = vld [vmem:[%s2 + $0x38] sm:$0xf]
  %v145 = vld [vmem:[%s2 + $0x3c] sm:$0xf]
  %v162 = vunpack.c.l.b16 %v130
  %v163 = vunpack.c.l.b16 %v131
  %v164 = vunpack.c.l.b16 %v132
  %v165 = vunpack.c.l.b16 %v133
  %v166 = vunpack.c.l.b16 %v134
  %v167 = vunpack.c.l.b16 %v135
  %v168 = vunpack.c.l.b16 %v136
  %v169 = vunpack.c.l.b16 %v137
  %v170 = vunpack.c.l.b16 %v138
  %v171 = vunpack.c.l.b16 %v139
  %v172 = vunpack.c.l.b16 %v140
  %v173 = vunpack.c.l.b16 %v141
  %v174 = vunpack.c.l.b16 %v142
  %v175 = vunpack.c.l.b16 %v143
  %v176 = vunpack.c.l.b16 %v144
  %v177 = vunpack.c.l.b16 %v145
  %v178 = vpack.c.b16 %v163, %v162
  %v179 = vpack.c.b16 %v165, %v164
  %v180 = vpack.c.b16 %v167, %v166
  %v181 = vpack.c.b16 %v169, %v168
  %v182 = vpack.c.b16 %v171, %v170
  %v183 = vpack.c.b16 %v173, %v172
  %v184 = vpack.c.b16 %v175, %v174
  %v185 = vpack.c.b16 %v177, %v176
  %194 = vmatprep.subr.bf16.mxu0 0
  %195 = vmatpush1.bf16.msra.mxu0 %v178
  %196 = vmatprep.subr.bf16.mxu0 0
  %197 = vmatpush1.bf16.msra.mxu0 %v179
  %198 = vmatprep.subr.bf16.mxu0 0
  %199 = vmatpush1.bf16.msra.mxu0 %v180
  %200 = vmatprep.subr.bf16.mxu0 0
  %201 = vmatpush1.bf16.msra.mxu0 %v181
  %202 = vmatprep.subr.bf16.mxu0 0
  %203 = vmatpush1.bf16.msra.mxu0 %v182
  %204 = vmatprep.subr.bf16.mxu0 0
  %205 = vmatpush1.bf16.msra.mxu0 %v183
  %206 = vmatprep.subr.bf16.mxu0 0
  %207 = vmatpush1.bf16.msra.mxu0 %v184
  %208 = vmatprep.subr.bf16.mxu0 0
  %209 = vmatpush1.bf16.msra.mxu0 %v185
  %210 = vmatprep.subr.bf16.mxu0 0
  %211 = vmatpush1.bf16.msra.mxu0 0
  %212 = vmatprep.subr.bf16.mxu0 0
  %213 = vmatpush1.bf16.msra.mxu0 0
  %214 = vmatprep.subr.bf16.mxu0 0
  %215 = vmatpush1.bf16.msra.mxu0 0
  %216 = vmatprep.subr.bf16.mxu0 0
  %217 = vmatpush1.bf16.msra.mxu0 0
  %218 = vmatprep.subr.bf16.mxu0 0
  %219 = vmatpush1.bf16.msra.mxu0 0
  %220 = vmatprep.subr.bf16.mxu0 0
  %221 = vmatpush1.bf16.msra.mxu0 0
  %222 = vmatprep.subr.bf16.mxu0 0
  %223 = vmatpush1.bf16.msra.mxu0 0
  %224 = vmatprep.subr.bf16.mxu0 0
  %225 = vmatpush1.bf16.msra.mxu0 0
  %226 = vmatprep.mubr.bf16.mxu0 0
  %227 = vmatmul.mubr.bf16.gmra.mrb[0].mxu0 %v122
  %v228 = vpop.f32.mrb[0].mxu0
  %v229 = vadd.f32 0.0, %v228
  %v230 = vpop.f32.mrb[0].mxu0
  %v231 = vpop.f32.mrb[0].mxu0
  %v232 = vadd.f32 0.0, %v231
  %v233 = vpop.f32.mrb[0].mxu0
  %234 = vmatprep.mubr.bf16.mxu0 0
  %235 = vmatmul.mubr.bf16.gmra.mrb[0].mxu0 %v123
  %v236 = vpop.f32.mrb[0].mxu0
  %v237 = vadd.f32 0.0, %v236
  %v238 = vpop.f32.mrb[0].mxu0
  %v239 = vpop.f32.mrb[0].mxu0
  %v240 = vadd.f32 0.0, %v239
  %v241 = vpop.f32.mrb[0].mxu0
  %242 = vmatprep.mubr.bf16.mxu0 0
  %243 = vmatmul.mubr.bf16.gmra.mrb[0].mxu0 %v124
  %v244 = vpop.f32.mrb[0].mxu0
  %v245 = vadd.f32 0.0, %v244
  %v246 = vpop.f32.mrb[0].mxu0
  %v247 = vpop.f32.mrb[0].mxu0
  %v248 = vadd.f32 0.0, %v247
  %v249 = vpop.f32.mrb[0].mxu0
  %250 = vmatprep.mubr.bf16.mxu0 0
  %251 = vmatmul.mubr.bf16.gmra.mrb[0].mxu0 %v125
  %v252 = vpop.f32.mrb[0].mxu0
  %v253 = vadd.f32 0.0, %v252
  %v254 = vpop.f32.mrb[0].mxu0
  %v255 = vpop.f32.mrb[0].mxu0
  %v256 = vadd.f32 0.0, %v255
  %v257 = vpop.f32.mrb[0].mxu0
  %258 = vmatprep.mubr.bf16.mxu0 0
  %259 = vmatmul.mubr.bf16.gmra.mrb[0].mxu0 %v126
  %v260 = vpop.f32.mrb[0].mxu0
  %v261 = vadd.f32 0.0, %v260
  %v262 = vpop.f32.mrb[0].mxu0
  %v263 = vpop.f32.mrb[0].mxu0
  %v264 = vadd.f32 0.0, %v263
  %v265 = vpop.f32.mrb[0].mxu0
  %266 = vmatprep.mubr.bf16.mxu0 0
  %267 = vmatmul.mubr.bf16.gmra.mrb[0].mxu0 %v127
  %v268 = vpop.f32.mrb[0].mxu0
  %v269 = vadd.f32 0.0, %v268
  %v270 = vpop.f32.mrb[0].mxu0
  %v271 = vpop.f32.mrb[0].mxu0
  %v272 = vadd.f32 0.0, %v271
  %v273 = vpop.f32.mrb[0].mxu0
  %274 = vmatprep.mubr.bf16.mxu0 0
  %275 = vmatmul.mubr.bf16.gmra.mrb[0].mxu0 %v128
  %v276 = vpop.f32.mrb[0].mxu0
  %v277 = vadd.f32 0.0, %v276
  %v278 = vpop.f32.mrb[0].mxu0
  %v279 = vpop.f32.mrb[0].mxu0
  %v280 = vadd.f32 0.0, %v279
  %v281 = vpop.f32.mrb[0].mxu0
  %282 = vmatprep.mubr.bf16.mxu0 0
  %283 = vmatmul.mubr.bf16.gmra.mrb[0].mxu0 %v129
  %v284 = vpop.f32.mrb[0].mxu0
  %v285 = vadd.f32 0.0, %v284
  %v286 = vpop.f32.mrb[0].mxu0
  %v287 = vpop.f32.mrb[0].mxu0
  %v288 = vadd.f32 0.0, %v287
  %v289 = vpop.f32.mrb[0].mxu0
  %290 = vdwg.mxu0
  %v291 = vpack.c.bf16 %v232, %v229
  %v292 = vpack.c.bf16 %v240, %v237
  %v293 = vpack.c.bf16 %v248, %v245
  %v294 = vpack.c.bf16 %v256, %v253
  %v295 = vpack.c.bf16 %v264, %v261
  %v296 = vpack.c.bf16 %v272, %v269
  %v297 = vpack.c.bf16 %v280, %v277
  %v298 = vpack.c.bf16 %v288, %v285
  %v307 = vunpack.c.l.b16 %v291
  %v308 = vunpack.c.h.b16 %v291
  %v309 = vunpack.c.l.b16 %v292
  %v310 = vunpack.c.h.b16 %v292
  %v311 = vunpack.c.l.b16 %v293
  %v312 = vunpack.c.h.b16 %v293
  %v313 = vunpack.c.l.b16 %v294
  %v314 = vunpack.c.h.b16 %v294
  %v315 = vunpack.c.l.b16 %v295
  %v316 = vunpack.c.h.b16 %v295
  %v317 = vunpack.c.l.b16 %v296
  %v318 = vunpack.c.h.b16 %v296
  %v319 = vunpack.c.l.b16 %v297
  %v320 = vunpack.c.h.b16 %v297
  %v321 = vunpack.c.l.b16 %v298
  %v322 = vunpack.c.h.b16 %v298
  %v323 = vpack.c.b16 %v307, %v307
  %v324 = vpack.c.b16 %v308, %v308
  %v325 = vpack.c.b16 %v309, %v309
  %v326 = vpack.c.b16 %v310, %v310
  %v327 = vpack.c.b16 %v311, %v311
  %v328 = vpack.c.b16 %v312, %v312
  %v329 = vpack.c.b16 %v313, %v313
  %v330 = vpack.c.b16 %v314, %v314
  %v331 = vpack.c.b16 %v315, %v315
  %v332 = vpack.c.b16 %v316, %v316
  %v333 = vpack.c.b16 %v317, %v317
  %v334 = vpack.c.b16 %v318, %v318
  %v335 = vpack.c.b16 %v319, %v319
  %v336 = vpack.c.b16 %v320, %v320
  %v337 = vpack.c.b16 %v321, %v321
  %v338 = vpack.c.b16 %v322, %v322
  %355 = vst [vmem:[%s6] sm:$0xf] %v323
  %356 = vst [vmem:[%s6 + $0x4] sm:$0xf] %v324
  %357 = vst [vmem:[%s6 + $0x8] sm:$0xf] %v325
  %358 = vst [vmem:[%s6 + $0xc] sm:$0xf] %v326
  %359 = vst [vmem:[%s6 + $0x10] sm:$0xf] %v327
  %360 = vst [vmem:[%s6 + $0x14] sm:$0xf] %v328
  %361 = vst [vmem:[%s6 + $0x18] sm:$0xf] %v329
  %362 = vst [vmem:[%s6 + $0x1c] sm:$0xf] %v330
  %363 = vst [vmem:[%s6 + $0x20] sm:$0xf] %v331
  %364 = vst [vmem:[%s6 + $0x24] sm:$0xf] %v332
  %365 = vst [vmem:[%s6 + $0x28] sm:$0xf] %v333
  %366 = vst [vmem:[%s6 + $0x2c] sm:$0xf] %v334
  %367 = vst [vmem:[%s6 + $0x30] sm:$0xf] %v335
  %368 = vst [vmem:[%s6 + $0x34] sm:$0xf] %v336
  %369 = vst [vmem:[%s6 + $0x38] sm:$0xf] %v337
  %370 = vst [vmem:[%s6 + $0x3c] sm:$0xf] %v338
  %v371 = vadd.f32 %v229, %v232
  %v372 = vadd.f32 %v371, %v237
  %v373 = vadd.f32 %v372, %v240
  %v374 = vadd.f32 %v373, %v245
  %v375 = vadd.f32 %v374, %v248
  %v376 = vadd.f32 %v375, %v253
  %v377 = vadd.f32 %v376, %v256
  %v378 = vadd.f32 %v377, %v261
  %v379 = vadd.f32 %v378, %v264
  %v380 = vadd.f32 %v379, %v269
  %v381 = vadd.f32 %v380, %v272
  %v382 = vadd.f32 %v381, %v277
  %v383 = vadd.f32 %v382, %v280
  %v384 = vadd.f32 %v383, %v285
  %v385 = vadd.f32 %v384, %v288
  %v386 = vrot.slane %v385, 4
  %v387 = vadd.f32 %v385, %v386
  %v388 = vrot.slane %v387, 2
  %v389 = vadd.f32 %v387, %v388
  %v390 = vrot.slane %v389, 1
  %v391 = vadd.f32 %v389, %v390
  %v392 = vmul.f32 %v229, %v229
  %v393 = vmul.f32 %v232, %v232
  %v394 = vmul.f32 %v237, %v237
  %v395 = vmul.f32 %v240, %v240
  %v396 = vmul.f32 %v245, %v245
  %v397 = vmul.f32 %v248, %v248
  %v398 = vmul.f32 %v253, %v253
  %v399 = vmul.f32 %v256, %v256
  %v400 = vmul.f32 %v261, %v261
  %v401 = vmul.f32 %v264, %v264
  %v402 = vmul.f32 %v269, %v269
  %v403 = vmul.f32 %v272, %v272
  %v404 = vmul.f32 %v277, %v277
  %v405 = vmul.f32 %v280, %v280
  %v406 = vmul.f32 %v285, %v285
  %v407 = vmul.f32 %v288, %v288
  %v408 = vadd.f32 %v392, %v393
  %v409 = vadd.f32 %v408, %v394
  %v410 = vadd.f32 %v409, %v395
  %v411 = vadd.f32 %v410, %v396
  %v412 = vadd.f32 %v411, %v397
  %v413 = vadd.f32 %v412, %v398
  %v414 = vadd.f32 %v413, %v399
  %v415 = vadd.f32 %v414, %v400
  %v416 = vadd.f32 %v415, %v401
  %v417 = vadd.f32 %v416, %v402
  %v418 = vadd.f32 %v417, %v403
  %v419 = vadd.f32 %v418, %v404
  %v420 = vadd.f32 %v419, %v405
  %v421 = vadd.f32 %v420, %v406
  %v422 = vadd.f32 %v421, %v407
  %v423 = vrot.slane %v422, 4
  %v424 = vadd.f32 %v422, %v423
  %v425 = vrot.slane %v424, 2
  %v426 = vadd.f32 %v424, %v425
  %v427 = vrot.slane %v426, 1
  %v428 = vadd.f32 %v426, %v427
  %vm429 = vcmask 1040384
  %v430 = vsel %vm429, %v391, %v428
  %431 = vst [vmem:[%s7] sm:$0x3] %v430
  %v432 = vld [vmem:[%s1] sm:$0xf]
  %v433 = vld [vmem:[%s1 + $0x4] sm:$0xf]
  %v434 = vld [vmem:[%s1 + $0x8] sm:$0xf]
  %v435 = vld [vmem:[%s1 + $0xc] sm:$0xf]
  %v436 = vld [vmem:[%s1 + $0x10] sm:$0xf]
  %v437 = vld [vmem:[%s1 + $0x14] sm:$0xf]
  %v438 = vld [vmem:[%s1 + $0x18] sm:$0xf]
  %v439 = vld [vmem:[%s1 + $0x1c] sm:$0xf]
  %v440 = vld [vmem:[%s1 + $0x20] sm:$0xf]
  %v441 = vld [vmem:[%s1 + $0x24] sm:$0xf]
  %v442 = vld [vmem:[%s1 + $0x28] sm:$0xf]
  %v443 = vld [vmem:[%s1 + $0x2c] sm:$0xf]
  %v444 = vld [vmem:[%s1 + $0x30] sm:$0xf]
  %v445 = vld [vmem:[%s1 + $0x34] sm:$0xf]
  %v446 = vld [vmem:[%s1 + $0x38] sm:$0xf]
  %v447 = vld [vmem:[%s1 + $0x3c] sm:$0xf]
  %v448 = vld [vmem:[%s3] sm:$0xf]
  %v449 = vld [vmem:[%s3 + $0x4] sm:$0xf]
  %v450 = vld [vmem:[%s3 + $0x8] sm:$0xf]
  %v451 = vld [vmem:[%s3 + $0xc] sm:$0xf]
  %v452 = vld [vmem:[%s3 + $0x10] sm:$0xf]
  %v453 = vld [vmem:[%s3 + $0x14] sm:$0xf]
  %v454 = vld [vmem:[%s3 + $0x18] sm:$0xf]
  %v455 = vld [vmem:[%s3 + $0x1c] sm:$0xf]
  %v456 = vld [vmem:[%s3 + $0x20] sm:$0xf]
  %v457 = vld [vmem:[%s3 + $0x24] sm:$0xf]
  %v458 = vld [vmem:[%s3 + $0x28] sm:$0xf]
  %v459 = vld [vmem:[%s3 + $0x2c] sm:$0xf]
  %v460 = vld [vmem:[%s3 + $0x30] sm:$0xf]
  %v461 = vld [vmem:[%s3 + $0x34] sm:$0xf]
  %v462 = vld [vmem:[%s3 + $0x38] sm:$0xf]
  %v463 = vld [vmem:[%s3 + $0x3c] sm:$0xf]
  %v480 = vunpack.c.l.b16 %v432
  %v481 = vunpack.c.l.b16 %v433
  %v482 = vunpack.c.l.b16 %v434
  %v483 = vunpack.c.l.b16 %v435
  %v484 = vunpack.c.l.b16 %v436
  %v485 = vunpack.c.l.b16 %v437
  %v486 = vunpack.c.l.b16 %v438
  %v487 = vunpack.c.l.b16 %v439
  %v488 = vunpack.c.l.b16 %v440
  %v489 = vunpack.c.l.b16 %v441
  %v490 = vunpack.c.l.b16 %v442
  %v491 = vunpack.c.l.b16 %v443
  %v492 = vunpack.c.l.b16 %v444
  %v493 = vunpack.c.l.b16 %v445
  %v494 = vunpack.c.l.b16 %v446
  %v495 = vunpack.c.l.b16 %v447
  %v496 = vpack.c.b16 %v481, %v480
  %v497 = vpack.c.b16 %v483, %v482
  %v498 = vpack.c.b16 %v485, %v484
  %v499 = vpack.c.b16 %v487, %v486
  %v500 = vpack.c.b16 %v489, %v488
  %v501 = vpack.c.b16 %v491, %v490
  %v502 = vpack.c.b16 %v493, %v492
  %v503 = vpack.c.b16 %v495, %v494
  %v528 = vunpack.c.l.b16 %v448
  %v529 = vunpack.c.l.b16 %v449
  %v530 = vunpack.c.l.b16 %v450
  %v531 = vunpack.c.l.b16 %v451
  %v532 = vunpack.c.l.b16 %v452
  %v533 = vunpack.c.l.b16 %v453
  %v534 = vunpack.c.l.b16 %v454
  %v535 = vunpack.c.l.b16 %v455
  %v536 = vunpack.c.l.b16 %v456
  %v537 = vunpack.c.l.b16 %v457
  %v538 = vunpack.c.l.b16 %v458
  %v539 = vunpack.c.l.b16 %v459
  %v540 = vunpack.c.l.b16 %v460
  %v541 = vunpack.c.l.b16 %v461
  %v542 = vunpack.c.l.b16 %v462
  %v543 = vunpack.c.l.b16 %v463
  %v544 = vpack.c.b16 %v529, %v528
  %v545 = vpack.c.b16 %v531, %v530
  %v546 = vpack.c.b16 %v533, %v532
  %v547 = vpack.c.b16 %v535, %v534
  %v548 = vpack.c.b16 %v537, %v536
  %v549 = vpack.c.b16 %v539, %v538
  %v550 = vpack.c.b16 %v541, %v540
  %v551 = vpack.c.b16 %v543, %v542
  %560 = vmatprep.subr.bf16.mxu0 0
  %561 = vmatpush1.bf16.msra.mxu0 %v544
  %562 = vmatprep.subr.bf16.mxu0 0
  %563 = vmatpush1.bf16.msra.mxu0 %v545
  %564 = vmatprep.subr.bf16.mxu0 0
  %565 = vmatpush1.bf16.msra.mxu0 %v546
  %566 = vmatprep.subr.bf16.mxu0 0
  %567 = vmatpush1.bf16.msra.mxu0 %v547
  %568 = vmatprep.subr.bf16.mxu0 0
  %569 = vmatpush1.bf16.msra.mxu0 %v548
  %570 = vmatprep.subr.bf16.mxu0 0
  %571 = vmatpush1.bf16.msra.mxu0 %v549
  %572 = vmatprep.subr.bf16.mxu0 0
  %573 = vmatpush1.bf16.msra.mxu0 %v550
  %574 = vmatprep.subr.bf16.mxu0 0
  %575 = vmatpush1.bf16.msra.mxu0 %v551
  %576 = vmatprep.subr.bf16.mxu0 0
  %577 = vmatpush1.bf16.msra.mxu0 0
  %578 = vmatprep.subr.bf16.mxu0 0
  %579 = vmatpush1.bf16.msra.mxu0 0
  %580 = vmatprep.subr.bf16.mxu0 0
  %581 = vmatpush1.bf16.msra.mxu0 0
  %582 = vmatprep.subr.bf16.mxu0 0
  %583 = vmatpush1.bf16.msra.mxu0 0
  %584 = vmatprep.subr.bf16.mxu0 0
  %585 = vmatpush1.bf16.msra.mxu0 0
  %586 = vmatprep.subr.bf16.mxu0 0
  %587 = vmatpush1.bf16.msra.mxu0 0
  %588 = vmatprep.subr.bf16.mxu0 0
  %589 = vmatpush1.bf16.msra.mxu0 0
  %590 = vmatprep.subr.bf16.mxu0 0
  %591 = vmatpush1.bf16.msra.mxu0 0
  %592 = vmatprep.mubr.bf16.mxu0 0
  %593 = vmatmul.mubr.bf16.gmra.mrb[0].mxu0 %v496
  %v594 = vpop.f32.mrb[0].mxu0
  %v595 = vadd.f32 0.0, %v594
  %v596 = vpop.f32.mrb[0].mxu0
  %v597 = vpop.f32.mrb[0].mxu0
  %v598 = vadd.f32 0.0, %v597
  %v599 = vpop.f32.mrb[0].mxu0
  %600 = vmatprep.mubr.bf16.mxu0 0
  %601 = vmatmul.mubr.bf16.gmra.mrb[0].mxu0 %v497
  %v602 = vpop.f32.mrb[0].mxu0
  %v603 = vadd.f32 0.0, %v602
  %v604 = vpop.f32.mrb[0].mxu0
  %v605 = vpop.f32.mrb[0].mxu0
  %v606 = vadd.f32 0.0, %v605
  %v607 = vpop.f32.mrb[0].mxu0
  %608 = vmatprep.mubr.bf16.mxu0 0
  %609 = vmatmul.mubr.bf16.gmra.mrb[0].mxu0 %v498
  %v610 = vpop.f32.mrb[0].mxu0
  %v611 = vadd.f32 0.0, %v610
  %v612 = vpop.f32.mrb[0].mxu0
  %v613 = vpop.f32.mrb[0].mxu0
  %v614 = vadd.f32 0.0, %v613
  %v615 = vpop.f32.mrb[0].mxu0
  %616 = vmatprep.mubr.bf16.mxu0 0
  %617 = vmatmul.mubr.bf16.gmra.mrb[0].mxu0 %v499
  %v618 = vpop.f32.mrb[0].mxu0
  %v619 = vadd.f32 0.0, %v618
  %v620 = vpop.f32.mrb[0].mxu0
  %v621 = vpop.f32.mrb[0].mxu0
  %v622 = vadd.f32 0.0, %v621
  %v623 = vpop.f32.mrb[0].mxu0
  %624 = vmatprep.mubr.bf16.mxu0 0
  %625 = vmatmul.mubr.bf16.gmra.mrb[0].mxu0 %v500
  %v626 = vpop.f32.mrb[0].mxu0
  %v627 = vadd.f32 0.0, %v626
  %v628 = vpop.f32.mrb[0].mxu0
  %v629 = vpop.f32.mrb[0].mxu0
  %v630 = vadd.f32 0.0, %v629
  %v631 = vpop.f32.mrb[0].mxu0
  %632 = vmatprep.mubr.bf16.mxu0 0
  %633 = vmatmul.mubr.bf16.gmra.mrb[0].mxu0 %v501
  %v634 = vpop.f32.mrb[0].mxu0
  %v635 = vadd.f32 0.0, %v634
  %v636 = vpop.f32.mrb[0].mxu0
  %v637 = vpop.f32.mrb[0].mxu0
  %v638 = vadd.f32 0.0, %v637
  %v639 = vpop.f32.mrb[0].mxu0
  %640 = vmatprep.mubr.bf16.mxu0 0
  %641 = vmatmul.mubr.bf16.gmra.mrb[0].mxu0 %v502
  %v642 = vpop.f32.mrb[0].mxu0
  %v643 = vadd.f32 0.0, %v642
  %v644 = vpop.f32.mrb[0].mxu0
  %v645 = vpop.f32.mrb[0].mxu0
  %v646 = vadd.f32 0.0, %v645
  %v647 = vpop.f32.mrb[0].mxu0
  %648 = vmatprep.mubr.bf16.mxu0 0
  %649 = vmatmul.mubr.bf16.gmra.mrb[0].mxu0 %v503
  %v650 = vpop.f32.mrb[0].mxu0
  %v651 = vadd.f32 0.0, %v650
  %v652 = vpop.f32.mrb[0].mxu0
  %v653 = vpop.f32.mrb[0].mxu0
  %v654 = vadd.f32 0.0, %v653
  %v655 = vpop.f32.mrb[0].mxu0
  %656 = vdwg.mxu0
  %v657 = vpack.c.bf16 %v598, %v595
  %v658 = vpack.c.bf16 %v606, %v603
  %v659 = vpack.c.bf16 %v614, %v611
  %v660 = vpack.c.bf16 %v622, %v619
  %v661 = vpack.c.bf16 %v630, %v627
  %v662 = vpack.c.bf16 %v638, %v635
  %v663 = vpack.c.bf16 %v646, %v643
  %v664 = vpack.c.bf16 %v654, %v651
  %v673 = vunpack.c.l.b16 %v657
  %v674 = vunpack.c.h.b16 %v657
  %v675 = vunpack.c.l.b16 %v658
  %v676 = vunpack.c.h.b16 %v658
  %v677 = vunpack.c.l.b16 %v659
  %v678 = vunpack.c.h.b16 %v659
  %v679 = vunpack.c.l.b16 %v660
  %v680 = vunpack.c.h.b16 %v660
  %v681 = vunpack.c.l.b16 %v661
  %v682 = vunpack.c.h.b16 %v661
  %v683 = vunpack.c.l.b16 %v662
  %v684 = vunpack.c.h.b16 %v662
  %v685 = vunpack.c.l.b16 %v663
  %v686 = vunpack.c.h.b16 %v663
  %v687 = vunpack.c.l.b16 %v664
  %v688 = vunpack.c.h.b16 %v664
  %v689 = vpack.c.b16 %v673, %v673
  %v690 = vpack.c.b16 %v674, %v674
  %v691 = vpack.c.b16 %v675, %v675
  %v692 = vpack.c.b16 %v676, %v676
  %v693 = vpack.c.b16 %v677, %v677
  %v694 = vpack.c.b16 %v678, %v678
  %v695 = vpack.c.b16 %v679, %v679
  %v696 = vpack.c.b16 %v680, %v680
  %v697 = vpack.c.b16 %v681, %v681
  %v698 = vpack.c.b16 %v682, %v682
  %v699 = vpack.c.b16 %v683, %v683
  %v700 = vpack.c.b16 %v684, %v684
  %v701 = vpack.c.b16 %v685, %v685
  %v702 = vpack.c.b16 %v686, %v686
  %v703 = vpack.c.b16 %v687, %v687
  %v704 = vpack.c.b16 %v688, %v688
  %721 = vst [vmem:[%s8] sm:$0xf] %v689
  %722 = vst [vmem:[%s8 + $0x4] sm:$0xf] %v690
  %723 = vst [vmem:[%s8 + $0x8] sm:$0xf] %v691
  %724 = vst [vmem:[%s8 + $0xc] sm:$0xf] %v692
  %725 = vst [vmem:[%s8 + $0x10] sm:$0xf] %v693
  %726 = vst [vmem:[%s8 + $0x14] sm:$0xf] %v694
  %727 = vst [vmem:[%s8 + $0x18] sm:$0xf] %v695
  %728 = vst [vmem:[%s8 + $0x1c] sm:$0xf] %v696
  %729 = vst [vmem:[%s8 + $0x20] sm:$0xf] %v697
  %730 = vst [vmem:[%s8 + $0x24] sm:$0xf] %v698
  %731 = vst [vmem:[%s8 + $0x28] sm:$0xf] %v699
  %732 = vst [vmem:[%s8 + $0x2c] sm:$0xf] %v700
  %733 = vst [vmem:[%s8 + $0x30] sm:$0xf] %v701
  %734 = vst [vmem:[%s8 + $0x34] sm:$0xf] %v702
  %735 = vst [vmem:[%s8 + $0x38] sm:$0xf] %v703
  %736 = vst [vmem:[%s8 + $0x3c] sm:$0xf] %v704
  %v737 = vadd.f32 %v595, %v598
  %v738 = vadd.f32 %v737, %v603
  %v739 = vadd.f32 %v738, %v606
  %v740 = vadd.f32 %v739, %v611
  %v741 = vadd.f32 %v740, %v614
  %v742 = vadd.f32 %v741, %v619
  %v743 = vadd.f32 %v742, %v622
  %v744 = vadd.f32 %v743, %v627
  %v745 = vadd.f32 %v744, %v630
  %v746 = vadd.f32 %v745, %v635
  %v747 = vadd.f32 %v746, %v638
  %v748 = vadd.f32 %v747, %v643
  %v749 = vadd.f32 %v748, %v646
  %v750 = vadd.f32 %v749, %v651
  %v751 = vadd.f32 %v750, %v654
  %v752 = vrot.slane %v751, 4
  %v753 = vadd.f32 %v751, %v752
  %v754 = vrot.slane %v753, 2
  %v755 = vadd.f32 %v753, %v754
  %v756 = vrot.slane %v755, 1
  %v757 = vadd.f32 %v755, %v756
  %v758 = vmul.f32 %v595, %v595
  %v759 = vmul.f32 %v598, %v598
  %v760 = vmul.f32 %v603, %v603
  %v761 = vmul.f32 %v606, %v606
  %v762 = vmul.f32 %v611, %v611
  %v763 = vmul.f32 %v614, %v614
  %v764 = vmul.f32 %v619, %v619
  %v765 = vmul.f32 %v622, %v622
  %v766 = vmul.f32 %v627, %v627
  %v767 = vmul.f32 %v630, %v630
  %v768 = vmul.f32 %v635, %v635
  %v769 = vmul.f32 %v638, %v638
  %v770 = vmul.f32 %v643, %v643
  %v771 = vmul.f32 %v646, %v646
  %v772 = vmul.f32 %v651, %v651
  %v773 = vmul.f32 %v654, %v654
  %v774 = vadd.f32 %v758, %v759
  %v775 = vadd.f32 %v774, %v760
  %v776 = vadd.f32 %v775, %v761
  %v777 = vadd.f32 %v776, %v762
  %v778 = vadd.f32 %v777, %v763
  %v779 = vadd.f32 %v778, %v764
  %v780 = vadd.f32 %v779, %v765
  %v781 = vadd.f32 %v780, %v766
  %v782 = vadd.f32 %v781, %v767
  %v783 = vadd.f32 %v782, %v768
  %v784 = vadd.f32 %v783, %v769
  %v785 = vadd.f32 %v784, %v770
  %v786 = vadd.f32 %v785, %v771
  %v787 = vadd.f32 %v786, %v772
  %v788 = vadd.f32 %v787, %v773
  %v789 = vrot.slane %v788, 4
  %v790 = vadd.f32 %v788, %v789
  %v791 = vrot.slane %v790, 2
  %v792 = vadd.f32 %v790, %v791
  %v793 = vrot.slane %v792, 1
  %v794 = vadd.f32 %v792, %v793
  %v795 = vsel %vm429, %v757, %v794
  %796 = vst [vmem:[%s9] sm:$0x3] %v795
  // Predicated region
  $region26: #{bottleneck_forward.6} parent=0 // pred_check
    _
  $region27: #{bottleneck_forward.6} parent=0 // pred_check_branch
    %798 = sbr.rel (0) target = $region29
  $region28: #{bottleneck_forward.6} parent=0 // pred_region
    _
  $region29: #{bottleneck_forward.6} parent=0 // pred_fallthru
    _
  // Predicated region
  $region30: #{bottleneck_forward.6} parent=0 // pred_check
    _
  $region31: #{bottleneck_forward.6} parent=0 // pred_check_branch
    %800 = sbr.rel (0) target = $region33
  $region32: #{bottleneck_forward.6} parent=0 // pred_region
    _
  $region33: #{bottleneck_forward.6} parent=0 // pred_fallthru
    _
  // Predicated region
  $region34: #{bottleneck_forward.6} parent=0 // pred_check
    _
  $region35: #{bottleneck_forward.6} parent=0 // pred_check_branch
    %802 = sbr.rel (0) target = $region37
  $region36: #{bottleneck_forward.6} parent=0 // pred_region
    _
  $region37: #{bottleneck_forward.6} parent=0 // pred_fallthru
    _
  // Predicated region
  $region38: #{bottleneck_forward.6} parent=0 // pred_check
    _
  $region39: #{bottleneck_forward.6} parent=0 // pred_check_branch
    %804 = sbr.rel (0) target = $region41
  $region40: #{bottleneck_forward.6} parent=0 // pred_region
    _
  $region41: #{bottleneck_forward.6} parent=0 // pred_fallthru
    _
  // Predicated region
  $region42: #{bottleneck_forward.6} parent=0 // pred_check
    _
  $region43: #{bottleneck_forward.6} parent=0 // pred_check_branch
    %806 = sbr.rel (0) target = $region45
  $region44: #{bottleneck_forward.6} parent=0 // pred_region
    _
  $region45: #{bottleneck_forward.6} parent=0 // pred_fallthru
    _
  // Predicated region
  $region46: #{bottleneck_forward.6} parent=0 // pred_check
    _
  $region47: #{bottleneck_forward.6} parent=0 // pred_check_branch
    %808 = sbr.rel (0) target = $region49
  $region48: #{bottleneck_forward.6} parent=0 // pred_region
    _
  $region49: #{bottleneck_forward.6} parent=0 // pred_fallthru
    _
  // Predicated region
  $region50: #{bottleneck_forward.6} parent=0 // pred_check
    _
  $region51: #{bottleneck_forward.6} parent=0 // pred_check_branch
    %810 = sbr.rel (0) target = $region53
  $region52: #{bottleneck_forward.6} parent=0 // pred_region
    _
  $region53: #{bottleneck_forward.6} parent=0 // pred_fallthru
    _
  // Predicated region
  $region54: #{bottleneck_forward.6} parent=0 // pred_check
    _
  $region55: #{bottleneck_forward.6} parent=0 // pred_check_branch
    %812 = sbr.rel (0) target = $region57
  $region56: #{bottleneck_forward.6} parent=0 // pred_region
    _
  $region57: #{bottleneck_forward.6} parent=0 // pred_fallthru
    _

// kernel: bottleneck_forward.5
$region0: #{bottleneck_forward.5}
  #allocation0 [shape = 'u32[]', space=smem, size = 0x4, offset = 0x4, fixed_abs, tag = 'smem constant byte address 0x4 - core index']
  #allocation1 [shape = 'u32[144,128]{1,0:T(1,128)}', space=vmem, size = 0x12000, scoped, tag = 'internal scratch']
  %s0 = inlined_call_operand.vmem [shape: bf16[4,2,9,9,128], index: 0, kind: input, shape index: {}]
  %s1 = inlined_call_operand.vmem [shape: bf16[9,128,128], index: 1, kind: input, shape index: {}]
  %s2 = inlined_call_operand.vmem [shape: bf16[2,8,8,128], index: 2, kind: output, shape index: {0}]
  %s3 = inlined_call_operand.vmem [shape: f32[1,2,128], index: 3, kind: output, shape index: {1}]
  %4 = xla_tuple %s2, %s3
  %s5 = sld [smem:[#allocation0]]
  $region26: #{bottleneck_forward.5} parent=0
    _
  %s7 = ssub.s32 1, %s5
  %s8 = scalar_select 0, %s7, %s5
  // Predicated region
  $region2: #{bottleneck_forward.5} parent=0 // pred_check
    _
  $region3: #{bottleneck_forward.5} parent=0 // pred_check_branch
    %10 = sbr.rel (0) target = $region5
  $region4: #{bottleneck_forward.5} parent=0 // pred_region
    _
  $region5: #{bottleneck_forward.5} parent=0 // pred_fallthru
    _
  // Predicated region
  $region6: #{bottleneck_forward.5} parent=0 // pred_check
    _
  $region7: #{bottleneck_forward.5} parent=0 // pred_check_branch
    %12 = sbr.rel (0) target = $region9
  $region8: #{bottleneck_forward.5} parent=0 // pred_region
    _
  $region9: #{bottleneck_forward.5} parent=0 // pred_fallthru
    _
  %s13 = sadd.s32 0, 0
  %p14 = scmp.lt.s32.totalorder %s13, 0
  %s15 = scalar_select %p14, %s13, 0
  %s16 = smul.addr %s15, 2
  %s17 = scalar_lea.vmem %s3, %s16
  %s18 = sadd.s32 0, 0
  %p19 = scmp.lt.s32.totalorder %s18, 0
  %s20 = scalar_select %p19, %s18, 0
  %s21 = smul.addr %s20, 2
  %s22 = scalar_lea.vmem %s3, %s21
  %s23 = sadd.s32 0, 0
  %s25 = smul.u32 0, 8
  %s26 = smul.u32 %s25, 2
  %s27 = smul.addr %s26, 4
  %s28 = scalar_lea.vmem %s0, %s27
  %v29 = vld [vmem:[%s28] sm:$0xf]
  %v30 = vld [vmem:[%s28 + $0x8] sm:$0xf]
  %v31 = vld [vmem:[%s28 + $0x10] sm:$0xf]
  %v32 = vld [vmem:[%s28 + $0x18] sm:$0xf]
  %v33 = vld [vmem:[%s28 + $0x20] sm:$0xf]
  %v34 = vld [vmem:[%s28 + $0x28] sm:$0xf]
  %v35 = vld [vmem:[%s28 + $0x30] sm:$0xf]
  %v36 = vld [vmem:[%s28 + $0x38] sm:$0xf]
  %v37 = vld [vmem:[%s28 + $0x48] sm:$0xf]
  %v38 = vld [vmem:[%s28 + $0x50] sm:$0xf]
  %v39 = vld [vmem:[%s28 + $0x58] sm:$0xf]
  %v40 = vld [vmem:[%s28 + $0x60] sm:$0xf]
  %v41 = vld [vmem:[%s28 + $0x68] sm:$0xf]
  %v42 = vld [vmem:[%s28 + $0x70] sm:$0xf]
  %v43 = vld [vmem:[%s28 + $0x78] sm:$0xf]
  %v44 = vld [vmem:[%s28 + $0x80] sm:$0xf]
  %v45 = vld [vmem:[%s1] sm:$0xf]
  %v46 = vld [vmem:[%s1 + $0x4] sm:$0xf]
  %v47 = vld [vmem:[%s1 + $0x8] sm:$0xf]
  %v48 = vld [vmem:[%s1 + $0xc] sm:$0xf]
  %v49 = vld [vmem:[%s1 + $0x10] sm:$0xf]
  %v50 = vld [vmem:[%s1 + $0x14] sm:$0xf]
  %v51 = vld [vmem:[%s1 + $0x18] sm:$0xf]
  %v52 = vld [vmem:[%s1 + $0x1c] sm:$0xf]
  %v53 = vld [vmem:[%s1 + $0x20] sm:$0xf]
  %v54 = vld [vmem:[%s1 + $0x24] sm:$0xf]
  %v55 = vld [vmem:[%s1 + $0x28] sm:$0xf]
  %v56 = vld [vmem:[%s1 + $0x2c] sm:$0xf]
  %v57 = vld [vmem:[%s1 + $0x30] sm:$0xf]
  %v58 = vld [vmem:[%s1 + $0x34] sm:$0xf]
  %v59 = vld [vmem:[%s1 + $0x38] sm:$0xf]
  %v60 = vld [vmem:[%s1 + $0x3c] sm:$0xf]
  %s61 = sadd.s32 %s26, 36
  %s62 = smul.addr %s61, 4
  %s63 = scalar_lea.vmem %s0, %s62
  %v64 = vld [vmem:[%s63] sm:$0xf]
  %v65 = vld [vmem:[%s63 + $0x8] sm:$0xf]
  %v66 = vld [vmem:[%s63 + $0x10] sm:$0xf]
  %v67 = vld [vmem:[%s63 + $0x18] sm:$0xf]
  %v68 = vld [vmem:[%s63 + $0x20] sm:$0xf]
  %v69 = vld [vmem:[%s63 + $0x28] sm:$0xf]
  %v70 = vld [vmem:[%s63 + $0x30] sm:$0xf]
  %v71 = vld [vmem:[%s63 + $0x38] sm:$0xf]
  %v72 = vld [vmem:[%s63 + $0x48] sm:$0xf]
  %v73 = vld [vmem:[%s63 + $0x50] sm:$0xf]
  %v74 = vld [vmem:[%s63 + $0x58] sm:$0xf]
  %v75 = vld [vmem:[%s63 + $0x60] sm:$0xf]
  %v76 = vld [vmem:[%s63 + $0x68] sm:$0xf]
  %v77 = vld [vmem:[%s63 + $0x70] sm:$0xf]
  %v78 = vld [vmem:[%s63 + $0x78] sm:$0xf]
  %v79 = vld [vmem:[%s63 + $0x80] sm:$0xf]
  %s80 = scalar_lea.vmem %s1, 64
  %v81 = vld [vmem:[%s80] sm:$0xf]
  %v82 = vld [vmem:[%s80 + $0x4] sm:$0xf]
  %v83 = vld [vmem:[%s80 + $0x8] sm:$0xf]
  %v84 = vld [vmem:[%s80 + $0xc] sm:$0xf]
  %v85 = vld [vmem:[%s80 + $0x10] sm:$0xf]
  %v86 = vld [vmem:[%s80 + $0x14] sm:$0xf]
  %v87 = vld [vmem:[%s80 + $0x18] sm:$0xf]
  %v88 = vld [vmem:[%s80 + $0x1c] sm:$0xf]
  %v89 = vld [vmem:[%s80 + $0x20] sm:$0xf]
  %v90 = vld [vmem:[%s80 + $0x24] sm:$0xf]
  %v91 = vld [vmem:[%s80 + $0x28] sm:$0xf]
  %v92 = vld [vmem:[%s80 + $0x2c] sm:$0xf]
  %v93 = vld [vmem:[%s80 + $0x30] sm:$0xf]
  %v94 = vld [vmem:[%s80 + $0x34] sm:$0xf]
  %v95 = vld [vmem:[%s80 + $0x38] sm:$0xf]
  %v96 = vld [vmem:[%s80 + $0x3c] sm:$0xf]
  %v113 = vunpack.c.l.b16 %v64
  %v114 = vunpack.c.l.b16 %v65
  %v115 = vunpack.c.l.b16 %v66
  %v116 = vunpack.c.l.b16 %v67
  %v117 = vunpack.c.l.b16 %v68
  %v118 = vunpack.c.l.b16 %v69
  %v119 = vunpack.c.l.b16 %v70
  %v120 = vunpack.c.l.b16 %v71
  %v121 = vunpack.c.l.b16 %v72
  %v122 = vunpack.c.l.b16 %v73
  %v123 = vunpack.c.l.b16 %v74
  %v124 = vunpack.c.l.b16 %v75
  %v125 = vunpack.c.l.b16 %v76
  %v126 = vunpack.c.l.b16 %v77
  %v127 = vunpack.c.l.b16 %v78
  %v128 = vunpack.c.l.b16 %v79
  %v129 = vpack.c.b16 %v114, %v113
  %v130 = vpack.c.b16 %v116, %v115
  %v131 = vpack.c.b16 %v118, %v117
  %v132 = vpack.c.b16 %v120, %v119
  %v133 = vpack.c.b16 %v122, %v121
  %v134 = vpack.c.b16 %v124, %v123
  %v135 = vpack.c.b16 %v126, %v125
  %v136 = vpack.c.b16 %v128, %v127
  %v161 = vunpack.c.l.b16 %v81
  %v162 = vunpack.c.l.b16 %v82
  %v163 = vunpack.c.l.b16 %v83
  %v164 = vunpack.c.l.b16 %v84
  %v165 = vunpack.c.l.b16 %v85
  %v166 = vunpack.c.l.b16 %v86
  %v167 = vunpack.c.l.b16 %v87
  %v168 = vunpack.c.l.b16 %v88
  %v169 = vunpack.c.l.b16 %v89
  %v170 = vunpack.c.l.b16 %v90
  %v171 = vunpack.c.l.b16 %v91
  %v172 = vunpack.c.l.b16 %v92
  %v173 = vunpack.c.l.b16 %v93
  %v174 = vunpack.c.l.b16 %v94
  %v175 = vunpack.c.l.b16 %v95
  %v176 = vunpack.c.l.b16 %v96
  %v177 = vpack.c.b16 %v162, %v161
  %v178 = vpack.c.b16 %v164, %v163
  %v179 = vpack.c.b16 %v166, %v165
  %v180 = vpack.c.b16 %v168, %v167
  %v181 = vpack.c.b16 %v170, %v169
  %v182 = vpack.c.b16 %v172, %v171
  %v183 = vpack.c.b16 %v174, %v173
  %v184 = vpack.c.b16 %v176, %v175
  %193 = vmatprep.subr.bf16.mxu0 0
  %194 = vmatpush1.bf16.msra.mxu0 %v177
  %195 = vmatprep.subr.bf16.mxu0 0
  %196 = vmatpush1.bf16.msra.mxu0 %v178
  %197 = vmatprep.subr.bf16.mxu0 0
  %198 = vmatpush1.bf16.msra.mxu0 %v179
  %199 = vmatprep.subr.bf16.mxu0 0
  %200 = vmatpush1.bf16.msra.mxu0 %v180
  %201 = vmatprep.subr.bf16.mxu0 0
  %202 = vmatpush1.bf16.msra.mxu0 %v181
  %203 = vmatprep.subr.bf16.mxu0 0
  %204 = vmatpush1.bf16.msra.mxu0 %v182
  %205 = vmatprep.subr.bf16.mxu0 0
  %206 = vmatpush1.bf16.msra.mxu0 %v183
  %207 = vmatprep.subr.bf16.mxu0 0
  %208 = vmatpush1.bf16.msra.mxu0 %v184
  %209 = vmatprep.subr.bf16.mxu0 0
  %210 = vmatpush1.bf16.msra.mxu0 0
  %211 = vmatprep.subr.bf16.mxu0 0
  %212 = vmatpush1.bf16.msra.mxu0 0
  %213 = vmatprep.subr.bf16.mxu0 0
  %214 = vmatpush1.bf16.msra.mxu0 0
  %215 = vmatprep.subr.bf16.mxu0 0
  %216 = vmatpush1.bf16.msra.mxu0 0
  %217 = vmatprep.subr.bf16.mxu0 0
  %218 = vmatpush1.bf16.msra.mxu0 0
  %219 = vmatprep.subr.bf16.mxu0 0
  %220 = vmatpush1.bf16.msra.mxu0 0
  %221 = vmatprep.subr.bf16.mxu0 0
  %222 = vmatpush1.bf16.msra.mxu0 0
  %223 = vmatprep.subr.bf16.mxu0 0
  %224 = vmatpush1.bf16.msra.mxu0 0
  %225 = vmatprep.mubr.bf16.mxu0 0
  %226 = vmatmul.mubr.bf16.gmra.mrb[0].mxu0 %v129
  %v227 = vpop.f32.mrb[0].mxu0
  %v228 = vadd.f32 0.0, %v227
  %v229 = vpop.f32.mrb[0].mxu0
  %v230 = vpop.f32.mrb[0].mxu0
  %v231 = vadd.f32 0.0, %v230
  %v232 = vpop.f32.mrb[0].mxu0
  %233 = vmatprep.mubr.bf16.mxu0 0
  %234 = vmatmul.mubr.bf16.gmra.mrb[0].mxu0 %v130
  %v235 = vpop.f32.mrb[0].mxu0
  %v236 = vadd.f32 0.0, %v235
  %v237 = vpop.f32.mrb[0].mxu0
  %v238 = vpop.f32.mrb[0].mxu0
  %v239 = vadd.f32 0.0, %v238
  %v240 = vpop.f32.mrb[0].mxu0
  %241 = vmatprep.mubr.bf16.mxu0 0
  %242 = vmatmul.mubr.bf16.gmra.mrb[0].mxu0 %v131
  %v243 = vpop.f32.mrb[0].mxu0
  %v244 = vadd.f32 0.0, %v243
  %v245 = vpop.f32.mrb[0].mxu0
  %v246 = vpop.f32.mrb[0].mxu0
  %v247 = vadd.f32 0.0, %v246
  %v248 = vpop.f32.mrb[0].mxu0
  %249 = vmatprep.mubr.bf16.mxu0 0
  %250 = vmatmul.mubr.bf16.gmra.mrb[0].mxu0 %v132
  %v251 = vpop.f32.mrb[0].mxu0
  %v252 = vadd.f32 0.0, %v251
  %v253 = vpop.f32.mrb[0].mxu0
  %v254 = vpop.f32.mrb[0].mxu0
  %v255 = vadd.f32 0.0, %v254
  %v256 = vpop.f32.mrb[0].mxu0
  %257 = vmatprep.mubr.bf16.mxu0 0
  %258 = vmatmul.mubr.bf16.gmra.mrb[0].mxu0 %v133
  %v259 = vpop.f32.mrb[0].mxu0
  %v260 = vadd.f32 0.0, %v259
  %v261 = vpop.f32.mrb[0].mxu0
  %v262 = vpop.f32.mrb[0].mxu0
  %v263 = vadd.f32 0.0, %v262
  %v264 = vpop.f32.mrb[0].mxu0
  %265 = vmatprep.mubr.bf16.mxu0 0
  %266 = vmatmul.mubr.bf16.gmra.mrb[0].mxu0 %v134
  %v267 = vpop.f32.mrb[0].mxu0
  %v268 = vadd.f32 0.0, %v267
  %v269 = vpop.f32.mrb[0].mxu0
  %v270 = vpop.f32.mrb[0].mxu0
  %v271 = vadd.f32 0.0, %v270
  %v272 = vpop.f32.mrb[0].mxu0
  %273 = vmatprep.mubr.bf16.mxu0 0
  %274 = vmatmul.mubr.bf16.gmra.mrb[0].mxu0 %v135
  %v275 = vpop.f32.mrb[0].mxu0
  %v276 = vadd.f32 0.0, %v275
  %v277 = vpop.f32.mrb[0].mxu0
  %v278 = vpop.f32.mrb[0].mxu0
  %v279 = vadd.f32 0.0, %v278
  %v280 = vpop.f32.mrb[0].mxu0
  %281 = vmatprep.mubr.bf16.mxu0 0
  %282 = vmatmul.mubr.bf16.gmra.mrb[0].mxu0 %v136
  %v283 = vpop.f32.mrb[0].mxu0
  %v284 = vadd.f32 0.0, %v283
  %v285 = vpop.f32.mrb[0].mxu0
  %v286 = vpop.f32.mrb[0].mxu0
  %v287 = vadd.f32 0.0, %v286
  %v288 = vpop.f32.mrb[0].mxu0
  %289 = vdwg.mxu0
  %v306 = vunpack.c.l.b16 %v29
  %v307 = vunpack.c.l.b16 %v30
  %v308 = vunpack.c.l.b16 %v31
  %v309 = vunpack.c.l.b16 %v32
  %v310 = vunpack.c.l.b16 %v33
  %v311 = vunpack.c.l.b16 %v34
  %v312 = vunpack.c.l.b16 %v35
  %v313 = vunpack.c.l.b16 %v36
  %v314 = vunpack.c.l.b16 %v37
  %v315 = vunpack.c.l.b16 %v38
  %v316 = vunpack.c.l.b16 %v39
  %v317 = vunpack.c.l.b16 %v40
  %v318 = vunpack.c.l.b16 %v41
  %v319 = vunpack.c.l.b16 %v42
  %v320 = vunpack.c.l.b16 %v43
  %v321 = vunpack.c.l.b16 %v44
  %v322 = vpack.c.b16 %v307, %v306
  %v323 = vpack.c.b16 %v309, %v308
  %v324 = vpack.c.b16 %v311, %v310
  %v325 = vpack.c.b16 %v313, %v312
  %v326 = vpack.c.b16 %v315, %v314
  %v327 = vpack.c.b16 %v317, %v316
  %v328 = vpack.c.b16 %v319, %v318
  %v329 = vpack.c.b16 %v321, %v320
  %v354 = vunpack.c.l.b16 %v45
  %v355 = vunpack.c.l.b16 %v46
  %v356 = vunpack.c.l.b16 %v47
  %v357 = vunpack.c.l.b16 %v48
  %v358 = vunpack.c.l.b16 %v49
  %v359 = vunpack.c.l.b16 %v50
  %v360 = vunpack.c.l.b16 %v51
  %v361 = vunpack.c.l.b16 %v52
  %v362 = vunpack.c.l.b16 %v53
  %v363 = vunpack.c.l.b16 %v54
  %v364 = vunpack.c.l.b16 %v55
  %v365 = vunpack.c.l.b16 %v56
  %v366 = vunpack.c.l.b16 %v57
  %v367 = vunpack.c.l.b16 %v58
  %v368 = vunpack.c.l.b16 %v59
  %v369 = vunpack.c.l.b16 %v60
  %v370 = vpack.c.b16 %v355, %v354
  %v371 = vpack.c.b16 %v357, %v356
  %v372 = vpack.c.b16 %v359, %v358
  %v373 = vpack.c.b16 %v361, %v360
  %v374 = vpack.c.b16 %v363, %v362
  %v375 = vpack.c.b16 %v365, %v364
  %v376 = vpack.c.b16 %v367, %v366
  %v377 = vpack.c.b16 %v369, %v368
  %386 = vmatprep.subr.bf16.mxu0 0
  %387 = vmatpush1.bf16.msra.mxu0 %v370
  %388 = vmatprep.subr.bf16.mxu0 0
  %389 = vmatpush1.bf16.msra.mxu0 %v371
  %390 = vmatprep.subr.bf16.mxu0 0
  %391 = vmatpush1.bf16.msra.mxu0 %v372
  %392 = vmatprep.subr.bf16.mxu0 0
  %393 = vmatpush1.bf16.msra.mxu0 %v373
  %394 = vmatprep.subr.bf16.mxu0 0
  %395 = vmatpush1.bf16.msra.mxu0 %v374
  %396 = vmatprep.subr.bf16.mxu0 0
  %397 = vmatpush1.bf16.msra.mxu0 %v375
  %398 = vmatprep.subr.bf16.mxu0 0
  %399 = vmatpush1.bf16.msra.mxu0 %v376
  %400 = vmatprep.subr.bf16.mxu0 0
  %401 = vmatpush1.bf16.msra.mxu0 %v377
  %402 = vmatprep.subr.bf16.mxu0 0
  %403 = vmatpush1.bf16.msra.mxu0 0
  %404 = vmatprep.subr.bf16.mxu0 0
  %405 = vmatpush1.bf16.msra.mxu0 0
  %406 = vmatprep.subr.bf16.mxu0 0
  %407 = vmatpush1.bf16.msra.mxu0 0
  %408 = vmatprep.subr.bf16.mxu0 0
  %409 = vmatpush1.bf16.msra.mxu0 0
  %410 = vmatprep.subr.bf16.mxu0 0
  %411 = vmatpush1.bf16.msra.mxu0 0
  %412 = vmatprep.subr.bf16.mxu0 0
  %413 = vmatpush1.bf16.msra.mxu0 0
  %414 = vmatprep.subr.bf16.mxu0 0
  %415 = vmatpush1.bf16.msra.mxu0 0
  %416 = vmatprep.subr.bf16.mxu0 0
  %417 = vmatpush1.bf16.msra.mxu0 0
  %418 = vmatprep.mubr.bf16.mxu0 0
  %419 = vmatmul.mubr.bf16.gmra.mrb[0].mxu0 %v322
  %v420 = vpop.f32.mrb[0].mxu0
  %v421 = vadd.f32 %v228, %v420
  %v422 = vpop.f32.mrb[0].mxu0
  %v423 = vpop.f32.mrb[0].mxu0
  %v424 = vadd.f32 %v231, %v423
  %v425 = vpop.f32.mrb[0].mxu0
  %426 = vmatprep.mubr.bf16.mxu0 0
  %427 = vmatmul.mubr.bf16.gmra.mrb[0].mxu0 %v323
  %v428 = vpop.f32.mrb[0].mxu0
  %v429 = vadd.f32 %v236, %v428
  %v430 = vpop.f32.mrb[0].mxu0
  %v431 = vpop.f32.mrb[0].mxu0
  %v432 = vadd.f32 %v239, %v431
  %v433 = vpop.f32.mrb[0].mxu0
  %434 = vmatprep.mubr.bf16.mxu0 0
  %435 = vmatmul.mubr.bf16.gmra.mrb[0].mxu0 %v324
  %v436 = vpop.f32.mrb[0].mxu0
  %v437 = vadd.f32 %v244, %v436
  %v438 = vpop.f32.mrb[0].mxu0
  %v439 = vpop.f32.mrb[0].mxu0
  %v440 = vadd.f32 %v247, %v439
  %v441 = vpop.f32.mrb[0].mxu0
  %442 = vmatprep.mubr.bf16.mxu0 0
  %443 = vmatmul.mubr.bf16.gmra.mrb[0].mxu0 %v325
  %v444 = vpop.f32.mrb[0].mxu0
  %v445 = vadd.f32 %v252, %v444
  %v446 = vpop.f32.mrb[0].mxu0
  %v447 = vpop.f32.mrb[0].mxu0
  %v448 = vadd.f32 %v255, %v447
  %v449 = vpop.f32.mrb[0].mxu0
  %450 = vmatprep.mubr.bf16.mxu0 0
  %451 = vmatmul.mubr.bf16.gmra.mrb[0].mxu0 %v326
  %v452 = vpop.f32.mrb[0].mxu0
  %v453 = vadd.f32 %v260, %v452
  %v454 = vpop.f32.mrb[0].mxu0
  %v455 = vpop.f32.mrb[0].mxu0
  %v456 = vadd.f32 %v263, %v455
  %v457 = vpop.f32.mrb[0].mxu0
  %458 = vmatprep.mubr.bf16.mxu0 0
  %459 = vmatmul.mubr.bf16.gmra.mrb[0].mxu0 %v327
  %v460 = vpop.f32.mrb[0].mxu0
  %v461 = vadd.f32 %v268, %v460
  %v462 = vpop.f32.mrb[0].mxu0
  %v463 = vpop.f32.mrb[0].mxu0
  %v464 = vadd.f32 %v271, %v463
  %v465 = vpop.f32.mrb[0].mxu0
  %466 = vmatprep.mubr.bf16.mxu0 0
  %467 = vmatmul.mubr.bf16.gmra.mrb[0].mxu0 %v328
  %v468 = vpop.f32.mrb[0].mxu0
  %v469 = vadd.f32 %v276, %v468
  %v470 = vpop.f32.mrb[0].mxu0
  %v471 = vpop.f32.mrb[0].mxu0
  %v472 = vadd.f32 %v279, %v471
  %v473 = vpop.f32.mrb[0].mxu0
  %474 = vmatprep.mubr.bf16.mxu0 0
  %475 = vmatmul.mubr.bf16.gmra.mrb[0].mxu0 %v329
  %v476 = vpop.f32.mrb[0].mxu0
  %v477 = vadd.f32 %v284, %v476
  %v478 = vpop.f32.mrb[0].mxu0
  %v479 = vpop.f32.mrb[0].mxu0
  %v480 = vadd.f32 %v287, %v479
  %v481 = vpop.f32.mrb[0].mxu0
  %482 = vdwg.mxu0
  %v483 = vld [vmem:[%s28] sm:$0xf]
  %v484 = vld [vmem:[%s28 + $0x4] sm:$0x1]
  %v485 = vld [vmem:[%s28 + $0x8] sm:$0xf]
  %v486 = vld [vmem:[%s28 + $0xc] sm:$0x1]
  %v487 = vld [vmem:[%s28 + $0x10] sm:$0xf]
  %v488 = vld [vmem:[%s28 + $0x14] sm:$0x1]
  %v489 = vld [vmem:[%s28 + $0x18] sm:$0xf]
  %v490 = vld [vmem:[%s28 + $0x1c] sm:$0x1]
  %v491 = vld [vmem:[%s28 + $0x20] sm:$0xf]
  %v492 = vld [vmem:[%s28 + $0x24] sm:$0x1]
  %v493 = vld [vmem:[%s28 + $0x28] sm:$0xf]
  %v494 = vld [vmem:[%s28 + $0x2c] sm:$0x1]
  %v495 = vld [vmem:[%s28 + $0x30] sm:$0xf]
  %v496 = vld [vmem:[%s28 + $0x34] sm:$0x1]
  %v497 = vld [vmem:[%s28 + $0x38] sm:$0xf]
  %v498 = vld [vmem:[%s28 + $0x3c] sm:$0x1]
  %v499 = vld [vmem:[%s28 + $0x48] sm:$0xf]
  %v500 = vld [vmem:[%s28 + $0x4c] sm:$0x1]
  %v501 = vld [vmem:[%s28 + $0x50] sm:$0xf]
  %v502 = vld [vmem:[%s28 + $0x54] sm:$0x1]
  %v503 = vld [vmem:[%s28 + $0x58] sm:$0xf]
  %v504 = vld [vmem:[%s28 + $0x5c] sm:$0x1]
  %v505 = vld [vmem:[%s28 + $0x60] sm:$0xf]
  %v506 = vld [vmem:[%s28 + $0x64] sm:$0x1]
  %v507 = vld [vmem:[%s28 + $0x68] sm:$0xf]
  %v508 = vld [vmem:[%s28 + $0x6c] sm:$0x1]
  %v509 = vld [vmem:[%s28 + $0x70] sm:$0xf]
  %v510 = vld [vmem:[%s28 + $0x74] sm:$0x1]
  %v511 = vld [vmem:[%s28 + $0x78] sm:$0xf]
  %v512 = vld [vmem:[%s28 + $0x7c] sm:$0x1]
  %v513 = vld [vmem:[%s28 + $0x80] sm:$0xf]
  %v514 = vld [vmem:[%s28 + $0x84] sm:$0x1]
  %vm515 = vsmask.f32 3328
  %vm516 = vsmask.f32 7440
  %vm517 = vmor %vm515, %vm516
  %v519 = vshrl.u32 %v483, 16
  %v521 = vrot.slane %v519, 4
  %v522 = vshll.u32 %v483, 16
  %v524 = vrot.slane %v522, 5
  %v525 = vor.u32 %v521, %v524
  %v526 = vrot.slane %v525, 4
  %v528 = vshll.u32 %v484, 16
  %v530 = vrot.slane %v528, 5
  %v531 = vsel %vm517, %v526, %v530
  %v533 = vshrl.u32 %v485, 16
  %v535 = vrot.slane %v533, 4
  %v536 = vshll.u32 %v485, 16
  %v538 = vrot.slane %v536, 5
  %v539 = vor.u32 %v535, %v538
  %v540 = vrot.slane %v539, 4
  %v542 = vshll.u32 %v486, 16
  %v544 = vrot.slane %v542, 5
  %v545 = vsel %vm517, %v540, %v544
  %v547 = vshrl.u32 %v487, 16
  %v549 = vrot.slane %v547, 4
  %v550 = vshll.u32 %v487, 16
  %v552 = vrot.slane %v550, 5
  %v553 = vor.u32 %v549, %v552
  %v554 = vrot.slane %v553, 4
  %v556 = vshll.u32 %v488, 16
  %v558 = vrot.slane %v556, 5
  %v559 = vsel %vm517, %v554, %v558
  %v561 = vshrl.u32 %v489, 16
  %v563 = vrot.slane %v561, 4
  %v564 = vshll.u32 %v489, 16
  %v566 = vrot.slane %v564, 5
  %v567 = vor.u32 %v563, %v566
  %v568 = vrot.slane %v567, 4
  %v570 = vshll.u32 %v490, 16
  %v572 = vrot.slane %v570, 5
  %v573 = vsel %vm517, %v568, %v572
  %v575 = vshrl.u32 %v491, 16
  %v577 = vrot.slane %v575, 4
  %v578 = vshll.u32 %v491, 16
  %v580 = vrot.slane %v578, 5
  %v581 = vor.u32 %v577, %v580
  %v582 = vrot.slane %v581, 4
  %v584 = vshll.u32 %v492, 16
  %v586 = vrot.slane %v584, 5
  %v587 = vsel %vm517, %v582, %v586
  %v589 = vshrl.u32 %v493, 16
  %v591 = vrot.slane %v589, 4
  %v592 = vshll.u32 %v493, 16
  %v594 = vrot.slane %v592, 5
  %v595 = vor.u32 %v591, %v594
  %v596 = vrot.slane %v595, 4
  %v598 = vshll.u32 %v494, 16
  %v600 = vrot.slane %v598, 5
  %v601 = vsel %vm517, %v596, %v600
  %v603 = vshrl.u32 %v495, 16
  %v605 = vrot.slane %v603, 4
  %v606 = vshll.u32 %v495, 16
  %v608 = vrot.slane %v606, 5
  %v609 = vor.u32 %v605, %v608
  %v610 = vrot.slane %v609, 4
  %v612 = vshll.u32 %v496, 16
  %v614 = vrot.slane %v612, 5
  %v615 = vsel %vm517, %v610, %v614
  %v617 = vshrl.u32 %v497, 16
  %v619 = vrot.slane %v617, 4
  %v620 = vshll.u32 %v497, 16
  %v622 = vrot.slane %v620, 5
  %v623 = vor.u32 %v619, %v622
  %v624 = vrot.slane %v623, 4
  %v626 = vshll.u32 %v498, 16
  %v628 = vrot.slane %v626, 5
  %v629 = vsel %vm517, %v624, %v628
  %v631 = vshrl.u32 %v499, 16
  %v633 = vrot.slane %v631, 4
  %v634 = vshll.u32 %v499, 16
  %v636 = vrot.slane %v634, 5
  %v637 = vor.u32 %v633, %v636
  %v638 = vrot.slane %v637, 4
  %v640 = vshll.u32 %v500, 16
  %v642 = vrot.slane %v640, 5
  %v643 = vsel %vm517, %v638, %v642
  %v645 = vshrl.u32 %v501, 16
  %v647 = vrot.slane %v645, 4
  %v648 = vshll.u32 %v501, 16
  %v650 = vrot.slane %v648, 5
  %v651 = vor.u32 %v647, %v650
  %v652 = vrot.slane %v651, 4
  %v654 = vshll.u32 %v502, 16
  %v656 = vrot.slane %v654, 5
  %v657 = vsel %vm517, %v652, %v656
  %v659 = vshrl.u32 %v503, 16
  %v661 = vrot.slane %v659, 4
  %v662 = vshll.u32 %v503, 16
  %v664 = vrot.slane %v662, 5
  %v665 = vor.u32 %v661, %v664
  %v666 = vrot.slane %v665, 4
  %v668 = vshll.u32 %v504, 16
  %v670 = vrot.slane %v668, 5
  %v671 = vsel %vm517, %v666, %v670
  %v673 = vshrl.u32 %v505, 16
  %v675 = vrot.slane %v673, 4
  %v676 = vshll.u32 %v505, 16
  %v678 = vrot.slane %v676, 5
  %v679 = vor.u32 %v675, %v678
  %v680 = vrot.slane %v679, 4
  %v682 = vshll.u32 %v506, 16
  %v684 = vrot.slane %v682, 5
  %v685 = vsel %vm517, %v680, %v684
  %v687 = vshrl.u32 %v507, 16
  %v689 = vrot.slane %v687, 4
  %v690 = vshll.u32 %v507, 16
  %v692 = vrot.slane %v690, 5
  %v693 = vor.u32 %v689, %v692
  %v694 = vrot.slane %v693, 4
  %v696 = vshll.u32 %v508, 16
  %v698 = vrot.slane %v696, 5
  %v699 = vsel %vm517, %v694, %v698
  %v701 = vshrl.u32 %v509, 16
  %v703 = vrot.slane %v701, 4
  %v704 = vshll.u32 %v509, 16
  %v706 = vrot.slane %v704, 5
  %v707 = vor.u32 %v703, %v706
  %v708 = vrot.slane %v707, 4
  %v710 = vshll.u32 %v510, 16
  %v712 = vrot.slane %v710, 5
  %v713 = vsel %vm517, %v708, %v712
  %v715 = vshrl.u32 %v511, 16
  %v717 = vrot.slane %v715, 4
  %v718 = vshll.u32 %v511, 16
  %v720 = vrot.slane %v718, 5
  %v721 = vor.u32 %v717, %v720
  %v722 = vrot.slane %v721, 4
  %v724 = vshll.u32 %v512, 16
  %v726 = vrot.slane %v724, 5
  %v727 = vsel %vm517, %v722, %v726
  %v729 = vshrl.u32 %v513, 16
  %v731 = vrot.slane %v729, 4
  %v732 = vshll.u32 %v513, 16
  %v734 = vrot.slane %v732, 5
  %v735 = vor.u32 %v731, %v734
  %v736 = vrot.slane %v735, 4
  %v738 = vshll.u32 %v514, 16
  %v740 = vrot.slane %v738, 5
  %v741 = vsel %vm517, %v736, %v740
  %s742 = scalar_lea.vmem %s1, 128
  %v743 = vld [vmem:[%s742] sm:$0xf]
  %v744 = vld [vmem:[%s742 + $0x4] sm:$0xf]
  %v745 = vld [vmem:[%s742 + $0x8] sm:$0xf]
  %v746 = vld [vmem:[%s742 + $0xc] sm:$0xf]
  %v747 = vld [vmem:[%s742 + $0x10] sm:$0xf]
  %v748 = vld [vmem:[%s742 + $0x14] sm:$0xf]
  %v749 = vld [vmem:[%s742 + $0x18] sm:$0xf]
  %v750 = vld [vmem:[%s742 + $0x1c] sm:$0xf]
  %v751 = vld [vmem:[%s742 + $0x20] sm:$0xf]
  %v752 = vld [vmem:[%s742 + $0x24] sm:$0xf]
  %v753 = vld [vmem:[%s742 + $0x28] sm:$0xf]
  %v754 = vld [vmem:[%s742 + $0x2c] sm:$0xf]
  %v755 = vld [vmem:[%s742 + $0x30] sm:$0xf]
  %v756 = vld [vmem:[%s742 + $0x34] sm:$0xf]
  %v757 = vld [vmem:[%s742 + $0x38] sm:$0xf]
  %v758 = vld [vmem:[%s742 + $0x3c] sm:$0xf]
  %v759 = vunpack.c.l.b16 %v531
  %v760 = vunpack.c.l.b16 %v545
  %v761 = vunpack.c.l.b16 %v559
  %v762 = vunpack.c.l.b16 %v573
  %v763 = vunpack.c.l.b16 %v587
  %v764 = vunpack.c.l.b16 %v601
  %v765 = vunpack.c.l.b16 %v615
  %v766 = vunpack.c.l.b16 %v629
  %v767 = vunpack.c.l.b16 %v643
  %v768 = vunpack.c.l.b16 %v657
  %v769 = vunpack.c.l.b16 %v671
  %v770 = vunpack.c.l.b16 %v685
  %v771 = vunpack.c.l.b16 %v699
  %v772 = vunpack.c.l.b16 %v713
  %v773 = vunpack.c.l.b16 %v727
  %v774 = vunpack.c.l.b16 %v741
  %v775 = vpack.c.b16 %v760, %v759
  %v776 = vpack.c.b16 %v762, %v761
  %v777 = vpack.c.b16 %v764, %v763
  %v778 = vpack.c.b16 %v766, %v765
  %v779 = vpack.c.b16 %v768, %v767
  %v780 = vpack.c.b16 %v770, %v769
  %v781 = vpack.c.b16 %v772, %v771
  %v782 = vpack.c.b16 %v774, %v773
  %v807 = vunpack.c.l.b16 %v743
  %v808 = vunpack.c.l.b16 %v744
  %v809 = vunpack.c.l.b16 %v745
  %v810 = vunpack.c.l.b16 %v746
  %v811 = vunpack.c.l.b16 %v747
  %v812 = vunpack.c.l.b16 %v748
  %v813 = vunpack.c.l.b16 %v749
  %v814 = vunpack.c.l.b16 %v750
  %v815 = vunpack.c.l.b16 %v751
  %v816 = vunpack.c.l.b16 %v752
  %v817 = vunpack.c.l.b16 %v753
  %v818 = vunpack.c.l.b16 %v754
  %v819 = vunpack.c.l.b16 %v755
  %v820 = vunpack.c.l.b16 %v756
  %v821 = vunpack.c.l.b16 %v757
  %v822 = vunpack.c.l.b16 %v758
  %v823 = vpack.c.b16 %v808, %v807
  %v824 = vpack.c.b16 %v810, %v809
  %v825 = vpack.c.b16 %v812, %v811
  %v826 = vpack.c.b16 %v814, %v813
  %v827 = vpack.c.b16 %v816, %v815
  %v828 = vpack.c.b16 %v818, %v817
  %v829 = vpack.c.b16 %v820, %v819
  %v830 = vpack.c.b16 %v822, %v821
  %839 = vmatprep.subr.bf16.mxu0 0
  %840 = vmatpush1.bf16.msra.mxu0 %v823
  %841 = vmatprep.subr.bf16.mxu0 0
  %842 = vmatpush1.bf16.msra.mxu0 %v824
  %843 = vmatprep.subr.bf16.mxu0 0
  %844 = vmatpush1.bf16.msra.mxu0 %v825
  %845 = vmatprep.subr.bf16.mxu0 0
  %846 = vmatpush1.bf16.msra.mxu0 %v826
  %847 = vmatprep.subr.bf16.mxu0 0
  %848 = vmatpush1.bf16.msra.mxu0 %v827
  %849 = vmatprep.subr.bf16.mxu0 0
  %850 = vmatpush1.bf16.msra.mxu0 %v828
  %851 = vmatprep.subr.bf16.mxu0 0
  %852 = vmatpush1.bf16.msra.mxu0 %v829
  %853 = vmatprep.subr.bf16.mxu0 0
  %854 = vmatpush1.bf16.msra.mxu0 %v830
  %855 = vmatprep.subr.bf16.mxu0 0
  %856 = vmatpush1.bf16.msra.mxu0 0
  %857 = vmatprep.subr.bf16.mxu0 0
  %858 = vmatpush1.bf16.msra.mxu0 0
  %859 = vmatprep.subr.bf16.mxu0 0
  %860 = vmatpush1.bf16.msra.mxu0 0
  %861 = vmatprep.subr.bf16.mxu0 0
  %862 = vmatpush1.bf16.msra.mxu0 0
  %863 = vmatprep.subr.bf16.mxu0 0
  %864 = vmatpush1.bf16.msra.mxu0 0
  %865 = vmatprep.subr.bf16.mxu0 0
  %866 = vmatpush1.bf16.msra.mxu0 0
  %867 = vmatprep.subr.bf16.mxu0 0
  %868 = vmatpush1.bf16.msra.mxu0 0
  %869 = vmatprep.subr.bf16.mxu0 0
  %870 = vmatpush1.bf16.msra.mxu0 0
  %871 = vmatprep.mubr.bf16.mxu0 0
  %872 = vmatmul.mubr.bf16.gmra.mrb[0].mxu0 %v775
  %v873 = vpop.f32.mrb[0].mxu0
  %v874 = vadd.f32 0.0, %v873
  %v875 = vpop.f32.mrb[0].mxu0
  %v876 = vpop.f32.mrb[0].mxu0
  %v877 = vadd.f32 0.0, %v876
  %v878 = vpop.f32.mrb[0].mxu0
  %879 = vmatprep.mubr.bf16.mxu0 0
  %880 = vmatmul.mubr.bf16.gmra.mrb[0].mxu0 %v776
  %v881 = vpop.f32.mrb[0].mxu0
  %v882 = vadd.f32 0.0, %v881
  %v883 = vpop.f32.mrb[0].mxu0
  %v884 = vpop.f32.mrb[0].mxu0
  %v885 = vadd.f32 0.0, %v884
  %v886 = vpop.f32.mrb[0].mxu0
  %887 = vmatprep.mubr.bf16.mxu0 0
  %888 = vmatmul.mubr.bf16.gmra.mrb[0].mxu0 %v777
  %v889 = vpop.f32.mrb[0].mxu0
  %v890 = vadd.f32 0.0, %v889
  %v891 = vpop.f32.mrb[0].mxu0
  %v892 = vpop.f32.mrb[0].mxu0
  %v893 = vadd.f32 0.0, %v892
  %v894 = vpop.f32.mrb[0].mxu0
  %895 = vmatprep.mubr.bf16.mxu0 0
  %896 = vmatmul.mubr.bf16.gmra.mrb[0].mxu0 %v778
  %v897 = vpop.f32.mrb[0].mxu0
  %v898 = vadd.f32 0.0, %v897
  %v899 = vpop.f32.mrb[0].mxu0
  %v900 = vpop.f32.mrb[0].mxu0
  %v901 = vadd.f32 0.0, %v900
  %v902 = vpop.f32.mrb[0].mxu0
  %903 = vmatprep.mubr.bf16.mxu0 0
  %904 = vmatmul.mubr.bf16.gmra.mrb[0].mxu0 %v779
  %v905 = vpop.f32.mrb[0].mxu0
  %v906 = vadd.f32 0.0, %v905
  %v907 = vpop.f32.mrb[0].mxu0
  %v908 = vpop.f32.mrb[0].mxu0
  %v909 = vadd.f32 0.0, %v908
  %v910 = vpop.f32.mrb[0].mxu0
  %911 = vmatprep.mubr.bf16.mxu0 0
  %912 = vmatmul.mubr.bf16.gmra.mrb[0].mxu0 %v780
  %v913 = vpop.f32.mrb[0].mxu0
  %v914 = vadd.f32 0.0, %v913
  %v915 = vpop.f32.mrb[0].mxu0
  %v916 = vpop.f32.mrb[0].mxu0
  %v917 = vadd.f32 0.0, %v916
  %v918 = vpop.f32.mrb[0].mxu0
  %919 = vmatprep.mubr.bf16.mxu0 0
  %920 = vmatmul.mubr.bf16.gmra.mrb[0].mxu0 %v781
  %v921 = vpop.f32.mrb[0].mxu0
  %v922 = vadd.f32 0.0, %v921
  %v923 = vpop.f32.mrb[0].mxu0
  %v924 = vpop.f32.mrb[0].mxu0
  %v925 = vadd.f32 0.0, %v924
  %v926 = vpop.f32.mrb[0].mxu0
  %927 = vmatprep.mubr.bf16.mxu0 0
  %928 = vmatmul.mubr.bf16.gmra.mrb[0].mxu0 %v782
  %v929 = vpop.f32.mrb[0].mxu0
  %v930 = vadd.f32 0.0, %v929
  %v931 = vpop.f32.mrb[0].mxu0
  %v932 = vpop.f32.mrb[0].mxu0
  %v933 = vadd.f32 0.0, %v932
  %v934 = vpop.f32.mrb[0].mxu0
  %935 = vdwg.mxu0
  %v936 = vadd.f32 %v421, %v874
  %v937 = vadd.f32 %v424, %v877
  %v938 = vadd.f32 %v429, %v882
  %v939 = vadd.f32 %v432, %v885
  %v940 = vadd.f32 %v437, %v890
  %v941 = vadd.f32 %v440, %v893
  %v942 = vadd.f32 %v445, %v898
  %v943 = vadd.f32 %v448, %v901
  %v944 = vadd.f32 %v453, %v906
  %v945 = vadd.f32 %v456, %v909
  %v946 = vadd.f32 %v461, %v914
  %v947 = vadd.f32 %v464, %v917
  %v948 = vadd.f32 %v469, %v922
  %v949 = vadd.f32 %v472, %v925
  %v950 = vadd.f32 %v477, %v930
  %v951 = vadd.f32 %v480, %v933
  %s952 = sadd.s32 %s26, 72
  %s953 = smul.addr %s952, 4
  %s954 = scalar_lea.vmem %s0, %s953
  %v955 = vld [vmem:[%s954] sm:$0xf]
  %v956 = vld [vmem:[%s954 + $0x8] sm:$0xf]
  %v957 = vld [vmem:[%s954 + $0x10] sm:$0xf]
  %v958 = vld [vmem:[%s954 + $0x18] sm:$0xf]
  %v959 = vld [vmem:[%s954 + $0x20] sm:$0xf]
  %v960 = vld [vmem:[%s954 + $0x28] sm:$0xf]
  %v961 = vld [vmem:[%s954 + $0x30] sm:$0xf]
  %v962 = vld [vmem:[%s954 + $0x38] sm:$0xf]
  %v963 = vld [vmem:[%s954 + $0x48] sm:$0xf]
  %v964 = vld [vmem:[%s954 + $0x50] sm:$0xf]
  %v965 = vld [vmem:[%s954 + $0x58] sm:$0xf]
  %v966 = vld [vmem:[%s954 + $0x60] sm:$0xf]
  %v967 = vld [vmem:[%s954 + $0x68] sm:$0xf]
  %v968 = vld [vmem:[%s954 + $0x70] sm:$0xf]
  %v969 = vld [vmem:[%s954 + $0x78] sm:$0xf]
  %v970 = vld [vmem:[%s954 + $0x80] sm:$0xf]
  %s971 = scalar_lea.vmem %s1, 192
  %v972 = vld [vmem:[%s971] sm:$0xf]
  %v973 = vld [vmem:[%s971 + $0x4] sm:$0xf]
  %v974 = vld [vmem:[%s971 + $0x8] sm:$0xf]
  %v975 = vld [vmem:[%s971 + $0xc] sm:$0xf]
  %v976 = vld [vmem:[%s971 + $0x10] sm:$0xf]
  %v977 = vld [vmem:[%s971 + $0x14] sm:$0xf]
  %v978 = vld [vmem:[%s971 + $0x18] sm:$0xf]
  %v979 = vld [vmem:[%s971 + $0x1c] sm:$0xf]
  %v980 = vld [vmem:[%s971 + $0x20] sm:$0xf]
  %v981 = vld [vmem:[%s971 + $0x24] sm:$0xf]
  %v982 = vld [vmem:[%s971 + $0x28] sm:$0xf]
  %v983 = vld [vmem:[%s971 + $0x2c] sm:$0xf]
  %v984 = vld [vmem:[%s971 + $0x30] sm:$0xf]
  %v985 = vld [vmem:[%s971 + $0x34] sm:$0xf]
  %v986 = vld [vmem:[%s971 + $0x38] sm:$0xf]
  %v987 = vld [vmem:[%s971 + $0x3c] sm:$0xf]
  %v1004 = vunpack.c.l.b16 %v955
  %v1005 = vunpack.c.l.b16 %v956
  %v1006 = vunpack.c.l.b16 %v957
  %v1007 = vunpack.c.l.b16 %v958
  %v1008 = vunpack.c.l.b16 %v959
  %v1009 = vunpack.c.l.b16 %v960
  %v1010 = vunpack.c.l.b16 %v961
  %v1011 = vunpack.c.l.b16 %v962
  %v1012 = vunpack.c.l.b16 %v963
  %v1013 = vunpack.c.l.b16 %v964
  %v1014 = vunpack.c.l.b16 %v965
  %v1015 = vunpack.c.l.b16 %v966
  %v1016 = vunpack.c.l.b16 %v967
  %v1017 = vunpack.c.l.b16 %v968
  %v1018 = vunpack.c.l.b16 %v969
  %v1019 = vunpack.c.l.b16 %v970
  %v1020 = vpack.c.b16 %v1005, %v1004
  %v1021 = vpack.c.b16 %v1007, %v1006
  %v1022 = vpack.c.b16 %v1009, %v1008
  %v1023 = vpack.c.b16 %v1011, %v1010
  %v1024 = vpack.c.b16 %v1013, %v1012
  %v1025 = vpack.c.b16 %v1015, %v1014
  %v1026 = vpack.c.b16 %v1017, %v1016
  %v1027 = vpack.c.b16 %v1019, %v1018
  %v1052 = vunpack.c.l.b16 %v972
  %v1053 = vunpack.c.l.b16 %v973
  %v1054 = vunpack.c.l.b16 %v974
  %v1055 = vunpack.c.l.b16 %v975
  %v1056 = vunpack.c.l.b16 %v976
  %v1057 = vunpack.c.l.b16 %v977
  %v1058 = vunpack.c.l.b16 %v978
  %v1059 = vunpack.c.l.b16 %v979
  %v1060 = vunpack.c.l.b16 %v980
  %v1061 = vunpack.c.l.b16 %v981
  %v1062 = vunpack.c.l.b16 %v982
  %v1063 = vunpack.c.l.b16 %v983
  %v1064 = vunpack.c.l.b16 %v984
  %v1065 = vunpack.c.l.b16 %v985
  %v1066 = vunpack.c.l.b16 %v986
  %v1067 = vunpack.c.l.b16 %v987
  %v1068 = vpack.c.b16 %v1053, %v1052
  %v1069 = vpack.c.b16 %v1055, %v1054
  %v1070 = vpack.c.b16 %v1057, %v1056
  %v1071 = vpack.c.b16 %v1059, %v1058
  %v1072 = vpack.c.b16 %v1061, %v1060
  %v1073 = vpack.c.b16 %v1063, %v1062
  %v1074 = vpack.c.b16 %v1065, %v1064
  %v1075 = vpack.c.b16 %v1067, %v1066
  %1084 = vmatprep.subr.bf16.mxu0 0
  %1085 = vmatpush1.bf16.msra.mxu0 %v1068
  %1086 = vmatprep.subr.bf16.mxu0 0
  %1087 = vmatpush1.bf16.msra.mxu0 %v1069
  %1088 = vmatprep.subr.bf16.mxu0 0
  %1089 = vmatpush1.bf16.msra.mxu0 %v1070
  %1090 = vmatprep.subr.bf16.mxu0 0
  %1091 = vmatpush1.bf16.msra.mxu0 %v1071
  %1092 = vmatprep.subr.bf16.mxu0 0
  %1093 = vmatpush1.bf16.msra.mxu0 %v1072
  %1094 = vmatprep.subr.bf16.mxu0 0
  %1095 = vmatpush1.bf16.msra.mxu0 %v1073
  %1096 = vmatprep.subr.bf16.mxu0 0
  %1097 = vmatpush1.bf16.msra.mxu0 %v1074
  %1098 = vmatprep.subr.bf16.mxu0 0
  %1099 = vmatpush1.bf16.msra.mxu0 %v1075
  %1100 = vmatprep.subr.bf16.mxu0 0
  %1101 = vmatpush1.bf16.msra.mxu0 0
  %1102 = vmatprep.subr.bf16.mxu0 0
  %1103 = vmatpush1.bf16.msra.mxu0 0
  %1104 = vmatprep.subr.bf16.mxu0 0
  %1105 = vmatpush1.bf16.msra.mxu0 0
  %1106 = vmatprep.subr.bf16.mxu0 0
  %1107 = vmatpush1.bf16.msra.mxu0 0
  %1108 = vmatprep.subr.bf16.mxu0 0
  %1109 = vmatpush1.bf16.msra.mxu0 0
  %1110 = vmatprep.subr.bf16.mxu0 0
  %1111 = vmatpush1.bf16.msra.mxu0 0
  %1112 = vmatprep.subr.bf16.mxu0 0
  %1113 = vmatpush1.bf16.msra.mxu0 0
  %1114 = vmatprep.subr.bf16.mxu0 0
  %1115 = vmatpush1.bf16.msra.mxu0 0
  %1116 = vmatprep.mubr.bf16.mxu0 0
  %1117 = vmatmul.mubr.bf16.gmra.mrb[0].mxu0 %v1020
  %v1118 = vpop.f32.mrb[0].mxu0
  %v1119 = vadd.f32 0.0, %v1118
  %v1120 = vpop.f32.mrb[0].mxu0
  %v1121 = vpop.f32.mrb[0].mxu0
  %v1122 = vadd.f32 0.0, %v1121
  %v1123 = vpop.f32.mrb[0].mxu0
  %1124 = vmatprep.mubr.bf16.mxu0 0
  %1125 = vmatmul.mubr.bf16.gmra.mrb[0].mxu0 %v1021
  %v1126 = vpop.f32.mrb[0].mxu0
  %v1127 = vadd.f32 0.0, %v1126
  %v1128 = vpop.f32.mrb[0].mxu0
  %v1129 = vpop.f32.mrb[0].mxu0
  %v1130 = vadd.f32 0.0, %v1129
  %v1131 = vpop.f32.mrb[0].mxu0
  %1132 = vmatprep.mubr.bf16.mxu0 0
  %1133 = vmatmul.mubr.bf16.gmra.mrb[0].mxu0 %v1022
  %v1134 = vpop.f32.mrb[0].mxu0
  %v1135 = vadd.f32 0.0, %v1134
  %v1136 = vpop.f32.mrb[0].mxu0
  %v1137 = vpop.f32.mrb[0].mxu0
  %v1138 = vadd.f32 0.0, %v1137
  %v1139 = vpop.f32.mrb[0].mxu0
  %1140 = vmatprep.mubr.bf16.mxu0 0
  %1141 = vmatmul.mubr.bf16.gmra.mrb[0].mxu0 %v1023
  %v1142 = vpop.f32.mrb[0].mxu0
  %v1143 = vadd.f32 0.0, %v1142
  %v1144 = vpop.f32.mrb[0].mxu0
  %v1145 = vpop.f32.mrb[0].mxu0
  %v1146 = vadd.f32 0.0, %v1145
  %v1147 = vpop.f32.mrb[0].mxu0
  %1148 = vmatprep.mubr.bf16.mxu0 0
  %1149 = vmatmul.mubr.bf16.gmra.mrb[0].mxu0 %v1024
  %v1150 = vpop.f32.mrb[0].mxu0
  %v1151 = vadd.f32 0.0, %v1150
  %v1152 = vpop.f32.mrb[0].mxu0
  %v1153 = vpop.f32.mrb[0].mxu0
  %v1154 = vadd.f32 0.0, %v1153
  %v1155 = vpop.f32.mrb[0].mxu0
  %1156 = vmatprep.mubr.bf16.mxu0 0
  %1157 = vmatmul.mubr.bf16.gmra.mrb[0].mxu0 %v1025
  %v1158 = vpop.f32.mrb[0].mxu0
  %v1159 = vadd.f32 0.0, %v1158
  %v1160 = vpop.f32.mrb[0].mxu0
  %v1161 = vpop.f32.mrb[0].mxu0
  %v1162 = vadd.f32 0.0, %v1161
  %v1163 = vpop.f32.mrb[0].mxu0
  %1164 = vmatprep.mubr.bf16.mxu0 0
  %1165 = vmatmul.mubr.bf16.gmra.mrb[0].mxu0 %v1026
  %v1166 = vpop.f32.mrb[0].mxu0
  %v1167 = vadd.f32 0.0, %v1166
  %v1168 = vpop.f32.mrb[0].mxu0
  %v1169 = vpop.f32.mrb[0].mxu0
  %v1170 = vadd.f32 0.0, %v1169
  %v1171 = vpop.f32.mrb[0].mxu0
  %1172 = vmatprep.mubr.bf16.mxu0 0
  %1173 = vmatmul.mubr.bf16.gmra.mrb[0].mxu0 %v1027
  %v1174 = vpop.f32.mrb[0].mxu0
  %v1175 = vadd.f32 0.0, %v1174
  %v1176 = vpop.f32.mrb[0].mxu0
  %v1177 = vpop.f32.mrb[0].mxu0
  %v1178 = vadd.f32 0.0, %v1177
  %v1179 = vpop.f32.mrb[0].mxu0
  %1180 = vdwg.mxu0
  %v1181 = vadd.f32 %v936, %v1119
  %v1182 = vadd.f32 %v937, %v1122
  %v1183 = vadd.f32 %v938, %v1127
  %v1184 = vadd.f32 %v939, %v1130
  %v1185 = vadd.f32 %v940, %v1135
  %v1186 = vadd.f32 %v941, %v1138
  %v1187 = vadd.f32 %v942, %v1143
  %v1188 = vadd.f32 %v943, %v1146
  %v1189 = vadd.f32 %v944, %v1151
  %v1190 = vadd.f32 %v945, %v1154
  %v1191 = vadd.f32 %v946, %v1159
  %v1192 = vadd.f32 %v947, %v1162
  %v1193 = vadd.f32 %v948, %v1167
  %v1194 = vadd.f32 %v949, %v1170
  %v1195 = vadd.f32 %v950, %v1175
  %v1196 = vadd.f32 %v951, %v1178
  %s1197 = sadd.s32 %s26, 108
  %s1198 = smul.addr %s1197, 4
  %s1199 = scalar_lea.vmem %s0, %s1198
  %v1200 = vld [vmem:[%s1199] sm:$0xf]
  %v1201 = vld [vmem:[%s1199 + $0x8] sm:$0xf]
  %v1202 = vld [vmem:[%s1199 + $0x10] sm:$0xf]
  %v1203 = vld [vmem:[%s1199 + $0x18] sm:$0xf]
  %v1204 = vld [vmem:[%s1199 + $0x20] sm:$0xf]
  %v1205 = vld [vmem:[%s1199 + $0x28] sm:$0xf]
  %v1206 = vld [vmem:[%s1199 + $0x30] sm:$0xf]
  %v1207 = vld [vmem:[%s1199 + $0x38] sm:$0xf]
  %v1208 = vld [vmem:[%s1199 + $0x48] sm:$0xf]
  %v1209 = vld [vmem:[%s1199 + $0x50] sm:$0xf]
  %v1210 = vld [vmem:[%s1199 + $0x58] sm:$0xf]
  %v1211 = vld [vmem:[%s1199 + $0x60] sm:$0xf]
  %v1212 = vld [vmem:[%s1199 + $0x68] sm:$0xf]
  %v1213 = vld [vmem:[%s1199 + $0x70] sm:$0xf]
  %v1214 = vld [vmem:[%s1199 + $0x78] sm:$0xf]
  %v1215 = vld [vmem:[%s1199 + $0x80] sm:$0xf]
  %s1216 = scalar_lea.vmem %s1, 256
  %v1217 = vld [vmem:[%s1216] sm:$0xf]
  %v1218 = vld [vmem:[%s1216 + $0x4] sm:$0xf]
  %v1219 = vld [vmem:[%s1216 + $0x8] sm:$0xf]
  %v1220 = vld [vmem:[%s1216 + $0xc] sm:$0xf]
  %v1221 = vld [vmem:[%s1216 + $0x10] sm:$0xf]
  %v1222 = vld [vmem:[%s1216 + $0x14] sm:$0xf]
  %v1223 = vld [vmem:[%s1216 + $0x18] sm:$0xf]
  %v1224 = vld [vmem:[%s1216 + $0x1c] sm:$0xf]
  %v1225 = vld [vmem:[%s1216 + $0x20] sm:$0xf]
  %v1226 = vld [vmem:[%s1216 + $0x24] sm:$0xf]
  %v1227 = vld [vmem:[%s1216 + $0x28] sm:$0xf]
  %v1228 = vld [vmem:[%s1216 + $0x2c] sm:$0xf]
  %v1229 = vld [vmem:[%s1216 + $0x30] sm:$0xf]
  %v1230 = vld [vmem:[%s1216 + $0x34] sm:$0xf]
  %v1231 = vld [vmem:[%s1216 + $0x38] sm:$0xf]
  %v1232 = vld [vmem:[%s1216 + $0x3c] sm:$0xf]
  %v1249 = vunpack.c.l.b16 %v1200
  %v1250 = vunpack.c.l.b16 %v1201
  %v1251 = vunpack.c.l.b16 %v1202
  %v1252 = vunpack.c.l.b16 %v1203
  %v1253 = vunpack.c.l.b16 %v1204
  %v1254 = vunpack.c.l.b16 %v1205
  %v1255 = vunpack.c.l.b16 %v1206
  %v1256 = vunpack.c.l.b16 %v1207
  %v1257 = vunpack.c.l.b16 %v1208
  %v1258 = vunpack.c.l.b16 %v1209
  %v1259 = vunpack.c.l.b16 %v1210
  %v1260 = vunpack.c.l.b16 %v1211
  %v1261 = vunpack.c.l.b16 %v1212
  %v1262 = vunpack.c.l.b16 %v1213
  %v1263 = vunpack.c.l.b16 %v1214
  %v1264 = vunpack.c.l.b16 %v1215
  %v1265 = vpack.c.b16 %v1250, %v1249
  %v1266 = vpack.c.b16 %v1252, %v1251
  %v1267 = vpack.c.b16 %v1254, %v1253
  %v1268 = vpack.c.b16 %v1256, %v1255
  %v1269 = vpack.c.b16 %v1258, %v1257
  %v1270 = vpack.c.b16 %v1260, %v1259
  %v1271 = vpack.c.b16 %v1262, %v1261
  %v1272 = vpack.c.b16 %v1264, %v1263
  %v1297 = vunpack.c.l.b16 %v1217
  %v1298 = vunpack.c.l.b16 %v1218
  %v1299 = vunpack.c.l.b16 %v1219
  %v1300 = vunpack.c.l.b16 %v1220
  %v1301 = vunpack.c.l.b16 %v1221
  %v1302 = vunpack.c.l.b16 %v1222
  %v1303 = vunpack.c.l.b16 %v1223
  %v1304 = vunpack.c.l.b16 %v1224
  %v1305 = vunpack.c.l.b16 %v1225
  %v1306 = vunpack.c.l.b16 %v1226
  %v1307 = vunpack.c.l.b16 %v1227
  %v1308 = vunpack.c.l.b16 %v1228
  %v1309 = vunpack.c.l.b16 %v1229
  %v1310 = vunpack.c.l.b16 %v1230
  %v1311 = vunpack.c.l.b16 %v1231
  %v1312 = vunpack.c.l.b16 %v1232
  %v1313 = vpack.c.b16 %v1298, %v1297
  %v1314 = vpack.c.b16 %v1300, %v1299
  %v1315 = vpack.c.b16 %v1302, %v1301
  %v1316 = vpack.c.b16 %v1304, %v1303
  %v1317 = vpack.c.b16 %v1306, %v1305
  %v1318 = vpack.c.b16 %v1308, %v1307
  %v1319 = vpack.c.b16 %v1310, %v1309
  %v1320 = vpack.c.b16 %v1312, %v1311
  %1329 = vmatprep.subr.bf16.mxu0 0
  %1330 = vmatpush1.bf16.msra.mxu0 %v1313
  %1331 = vmatprep.subr.bf16.mxu0 0
  %1332 = vmatpush1.bf16.msra.mxu0 %v1314
  %1333 = vmatprep.subr.bf16.mxu0 0
  %1334 = vmatpush1.bf16.msra.mxu0 %v1315
  %1335 = vmatprep.subr.bf16.mxu0 0
  %1336 = vmatpush1.bf16.msra.mxu0 %v1316
  %1337 = vmatprep.subr.bf16.mxu0 0
  %1338 = vmatpush1.bf16.msra.mxu0 %v1317
  %1339 = vmatprep.subr.bf16.mxu0 0
  %1340 = vmatpush1.bf16.msra.mxu0 %v1318
  %1341 = vmatprep.subr.bf16.mxu0 0
  %1342 = vmatpush1.bf16.msra.mxu0 %v1319
  %1343 = vmatprep.subr.bf16.mxu0 0
  %1344 = vmatpush1.bf16.msra.mxu0 %v1320
  %1345 = vmatprep.subr.bf16.mxu0 0
  %1346 = vmatpush1.bf16.msra.mxu0 0
  %1347 = vmatprep.subr.bf16.mxu0 0
  %1348 = vmatpush1.bf16.msra.mxu0 0
  %1349 = vmatprep.subr.bf16.mxu0 0
  %1350 = vmatpush1.bf16.msra.mxu0 0
  %1351 = vmatprep.subr.bf16.mxu0 0
  %1352 = vmatpush1.bf16.msra.mxu0 0
  %1353 = vmatprep.subr.bf16.mxu0 0
  %1354 = vmatpush1.bf16.msra.mxu0 0
  %1355 = vmatprep.subr.bf16.mxu0 0
  %1356 = vmatpush1.bf16.msra.mxu0 0
  %1357 = vmatprep.subr.bf16.mxu0 0
  %1358 = vmatpush1.bf16.msra.mxu0 0
  %1359 = vmatprep.subr.bf16.mxu0 0
  %1360 = vmatpush1.bf16.msra.mxu0 0
  %1361 = vmatprep.mubr.bf16.mxu0 0
  %1362 = vmatmul.mubr.bf16.gmra.mrb[0].mxu0 %v1265
  %v1363 = vpop.f32.mrb[0].mxu0
  %v1364 = vadd.f32 0.0, %v1363
  %v1365 = vpop.f32.mrb[0].mxu0
  %v1366 = vpop.f32.mrb[0].mxu0
  %v1367 = vadd.f32 0.0, %v1366
  %v1368 = vpop.f32.mrb[0].mxu0
  %1369 = vmatprep.mubr.bf16.mxu0 0
  %1370 = vmatmul.mubr.bf16.gmra.mrb[0].mxu0 %v1266
  %v1371 = vpop.f32.mrb[0].mxu0
  %v1372 = vadd.f32 0.0, %v1371
  %v1373 = vpop.f32.mrb[0].mxu0
  %v1374 = vpop.f32.mrb[0].mxu0
  %v1375 = vadd.f32 0.0, %v1374
  %v1376 = vpop.f32.mrb[0].mxu0
  %1377 = vmatprep.mubr.bf16.mxu0 0
  %1378 = vmatmul.mubr.bf16.gmra.mrb[0].mxu0 %v1267
  %v1379 = vpop.f32.mrb[0].mxu0
  %v1380 = vadd.f32 0.0, %v1379
  %v1381 = vpop.f32.mrb[0].mxu0
  %v1382 = vpop.f32.mrb[0].mxu0
  %v1383 = vadd.f32 0.0, %v1382
  %v1384 = vpop.f32.mrb[0].mxu0
  %1385 = vmatprep.mubr.bf16.mxu0 0
  %1386 = vmatmul.mubr.bf16.gmra.mrb[0].mxu0 %v1268
  %v1387 = vpop.f32.mrb[0].mxu0
  %v1388 = vadd.f32 0.0, %v1387
  %v1389 = vpop.f32.mrb[0].mxu0
  %v1390 = vpop.f32.mrb[0].mxu0
  %v1391 = vadd.f32 0.0, %v1390
  %v1392 = vpop.f32.mrb[0].mxu0
  %1393 = vmatprep.mubr.bf16.mxu0 0
  %1394 = vmatmul.mubr.bf16.gmra.mrb[0].mxu0 %v1269
  %v1395 = vpop.f32.mrb[0].mxu0
  %v1396 = vadd.f32 0.0, %v1395
  %v1397 = vpop.f32.mrb[0].mxu0
  %v1398 = vpop.f32.mrb[0].mxu0
  %v1399 = vadd.f32 0.0, %v1398
  %v1400 = vpop.f32.mrb[0].mxu0
  %1401 = vmatprep.mubr.bf16.mxu0 0
  %1402 = vmatmul.mubr.bf16.gmra.mrb[0].mxu0 %v1270
  %v1403 = vpop.f32.mrb[0].mxu0
  %v1404 = vadd.f32 0.0, %v1403
  %v1405 = vpop.f32.mrb[0].mxu0
  %v1406 = vpop.f32.mrb[0].mxu0
  %v1407 = vadd.f32 0.0, %v1406
  %v1408 = vpop.f32.mrb[0].mxu0
  %1409 = vmatprep.mubr.bf16.mxu0 0
  %1410 = vmatmul.mubr.bf16.gmra.mrb[0].mxu0 %v1271
  %v1411 = vpop.f32.mrb[0].mxu0
  %v1412 = vadd.f32 0.0, %v1411
  %v1413 = vpop.f32.mrb[0].mxu0
  %v1414 = vpop.f32.mrb[0].mxu0
  %v1415 = vadd.f32 0.0, %v1414
  %v1416 = vpop.f32.mrb[0].mxu0
  %1417 = vmatprep.mubr.bf16.mxu0 0
  %1418 = vmatmul.mubr.bf16.gmra.mrb[0].mxu0 %v1272
  %v1419 = vpop.f32.mrb[0].mxu0
  %v1420 = vadd.f32 0.0, %v1419
  %v1421 = vpop.f32.mrb[0].mxu0
  %v1422 = vpop.f32.mrb[0].mxu0
  %v1423 = vadd.f32 0.0, %v1422
  %v1424 = vpop.f32.mrb[0].mxu0
  %1425 = vdwg.mxu0
  %v1426 = vadd.f32 %v1181, %v1364
  %v1427 = vadd.f32 %v1182, %v1367
  %v1428 = vadd.f32 %v1183, %v1372
  %v1429 = vadd.f32 %v1184, %v1375
  %v1430 = vadd.f32 %v1185, %v1380
  %v1431 = vadd.f32 %v1186, %v1383
  %v1432 = vadd.f32 %v1187, %v1388
  %v1433 = vadd.f32 %v1188, %v1391
  %v1434 = vadd.f32 %v1189, %v1396
  %v1435 = vadd.f32 %v1190, %v1399
  %v1436 = vadd.f32 %v1191, %v1404
  %v1437 = vadd.f32 %v1192, %v1407
  %v1438 = vadd.f32 %v1193, %v1412
  %v1439 = vadd.f32 %v1194, %v1415
  %v1440 = vadd.f32 %v1195, %v1420
  %v1441 = vadd.f32 %v1196, %v1423
  %v1442 = vld [vmem:[%s954] sm:$0xf]
  %v1443 = vld [vmem:[%s954 + $0x4] sm:$0x1]
  %v1444 = vld [vmem:[%s954 + $0x8] sm:$0xf]
  %v1445 = vld [vmem:[%s954 + $0xc] sm:$0x1]
  %v1446 = vld [vmem:[%s954 + $0x10] sm:$0xf]
  %v1447 = vld [vmem:[%s954 + $0x14] sm:$0x1]
  %v1448 = vld [vmem:[%s954 + $0x18] sm:$0xf]
  %v1449 = vld [vmem:[%s954 + $0x1c] sm:$0x1]
  %v1450 = vld [vmem:[%s954 + $0x20] sm:$0xf]
  %v1451 = vld [vmem:[%s954 + $0x24] sm:$0x1]
  %v1452 = vld [vmem:[%s954 + $0x28] sm:$0xf]
  %v1453 = vld [vmem:[%s954 + $0x2c] sm:$0x1]
  %v1454 = vld [vmem:[%s954 + $0x30] sm:$0xf]
  %v1455 = vld [vmem:[%s954 + $0x34] sm:$0x1]
  %v1456 = vld [vmem:[%s954 + $0x38] sm:$0xf]
  %v1457 = vld [vmem:[%s954 + $0x3c] sm:$0x1]
  %v1458 = vld [vmem:[%s954 + $0x48] sm:$0xf]
  %v1459 = vld [vmem:[%s954 + $0x4c] sm:$0x1]
  %v1460 = vld [vmem:[%s954 + $0x50] sm:$0xf]
  %v1461 = vld [vmem:[%s954 + $0x54] sm:$0x1]
  %v1462 = vld [vmem:[%s954 + $0x58] sm:$0xf]
  %v1463 = vld [vmem:[%s954 + $0x5c] sm:$0x1]
  %v1464 = vld [vmem:[%s954 + $0x60] sm:$0xf]
  %v1465 = vld [vmem:[%s954 + $0x64] sm:$0x1]
  %v1466 = vld [vmem:[%s954 + $0x68] sm:$0xf]
  %v1467 = vld [vmem:[%s954 + $0x6c] sm:$0x1]
  %v1468 = vld [vmem:[%s954 + $0x70] sm:$0xf]
  %v1469 = vld [vmem:[%s954 + $0x74] sm:$0x1]
  %v1470 = vld [vmem:[%s954 + $0x78] sm:$0xf]
  %v1471 = vld [vmem:[%s954 + $0x7c] sm:$0x1]
  %v1472 = vld [vmem:[%s954 + $0x80] sm:$0xf]
  %v1473 = vld [vmem:[%s954 + $0x84] sm:$0x1]
  %v1475 = vshrl.u32 %v1442, 16
  %v1477 = vrot.slane %v1475, 4
  %v1478 = vshll.u32 %v1442, 16
  %v1480 = vrot.slane %v1478, 5
  %v1481 = vor.u32 %v1477, %v1480
  %v1482 = vrot.slane %v1481, 4
  %v1484 = vshll.u32 %v1443, 16
  %v1486 = vrot.slane %v1484, 5
  %v1487 = vsel %vm517, %v1482, %v1486
  %v1489 = vshrl.u32 %v1444, 16
  %v1491 = vrot.slane %v1489, 4
  %v1492 = vshll.u32 %v1444, 16
  %v1494 = vrot.slane %v1492, 5
  %v1495 = vor.u32 %v1491, %v1494
  %v1496 = vrot.slane %v1495, 4
  %v1498 = vshll.u32 %v1445, 16
  %v1500 = vrot.slane %v1498, 5
  %v1501 = vsel %vm517, %v1496, %v1500
  %v1503 = vshrl.u32 %v1446, 16
  %v1505 = vrot.slane %v1503, 4
  %v1506 = vshll.u32 %v1446, 16
  %v1508 = vrot.slane %v1506, 5
  %v1509 = vor.u32 %v1505, %v1508
  %v1510 = vrot.slane %v1509, 4
  %v1512 = vshll.u32 %v1447, 16
  %v1514 = vrot.slane %v1512, 5
  %v1515 = vsel %vm517, %v1510, %v1514
  %v1517 = vshrl.u32 %v1448, 16
  %v1519 = vrot.slane %v1517, 4
  %v1520 = vshll.u32 %v1448, 16
  %v1522 = vrot.slane %v1520, 5
  %v1523 = vor.u32 %v1519, %v1522
  %v1524 = vrot.slane %v1523, 4
  %v1526 = vshll.u32 %v1449, 16
  %v1528 = vrot.slane %v1526, 5
  %v1529 = vsel %vm517, %v1524, %v1528
  %v1531 = vshrl.u32 %v1450, 16
  %v1533 = vrot.slane %v1531, 4
  %v1534 = vshll.u32 %v1450, 16
  %v1536 = vrot.slane %v1534, 5
  %v1537 = vor.u32 %v1533, %v1536
  %v1538 = vrot.slane %v1537, 4
  %v1540 = vshll.u32 %v1451, 16
  %v1542 = vrot.slane %v1540, 5
  %v1543 = vsel %vm517, %v1538, %v1542
  %v1545 = vshrl.u32 %v1452, 16
  %v1547 = vrot.slane %v1545, 4
  %v1548 = vshll.u32 %v1452, 16
  %v1550 = vrot.slane %v1548, 5
  %v1551 = vor.u32 %v1547, %v1550
  %v1552 = vrot.slane %v1551, 4
  %v1554 = vshll.u32 %v1453, 16
  %v1556 = vrot.slane %v1554, 5
  %v1557 = vsel %vm517, %v1552, %v1556
  %v1559 = vshrl.u32 %v1454, 16
  %v1561 = vrot.slane %v1559, 4
  %v1562 = vshll.u32 %v1454, 16
  %v1564 = vrot.slane %v1562, 5
  %v1565 = vor.u32 %v1561, %v1564
  %v1566 = vrot.slane %v1565, 4
  %v1568 = vshll.u32 %v1455, 16
  %v1570 = vrot.slane %v1568, 5
  %v1571 = vsel %vm517, %v1566, %v1570
  %v1573 = vshrl.u32 %v1456, 16
  %v1575 = vrot.slane %v1573, 4
  %v1576 = vshll.u32 %v1456, 16
  %v1578 = vrot.slane %v1576, 5
  %v1579 = vor.u32 %v1575, %v1578
  %v1580 = vrot.slane %v1579, 4
  %v1582 = vshll.u32 %v1457, 16
  %v1584 = vrot.slane %v1582, 5
  %v1585 = vsel %vm517, %v1580, %v1584
  %v1587 = vshrl.u32 %v1458, 16
  %v1589 = vrot.slane %v1587, 4
  %v1590 = vshll.u32 %v1458, 16
  %v1592 = vrot.slane %v1590, 5
  %v1593 = vor.u32 %v1589, %v1592
  %v1594 = vrot.slane %v1593, 4
  %v1596 = vshll.u32 %v1459, 16
  %v1598 = vrot.slane %v1596, 5
  %v1599 = vsel %vm517, %v1594, %v1598
  %v1601 = vshrl.u32 %v1460, 16
  %v1603 = vrot.slane %v1601, 4
  %v1604 = vshll.u32 %v1460, 16
  %v1606 = vrot.slane %v1604, 5
  %v1607 = vor.u32 %v1603, %v1606
  %v1608 = vrot.slane %v1607, 4
  %v1610 = vshll.u32 %v1461, 16
  %v1612 = vrot.slane %v1610, 5
  %v1613 = vsel %vm517, %v1608, %v1612
  %v1615 = vshrl.u32 %v1462, 16
  %v1617 = vrot.slane %v1615, 4
  %v1618 = vshll.u32 %v1462, 16
  %v1620 = vrot.slane %v1618, 5
  %v1621 = vor.u32 %v1617, %v1620
  %v1622 = vrot.slane %v1621, 4
  %v1624 = vshll.u32 %v1463, 16
  %v1626 = vrot.slane %v1624, 5
  %v1627 = vsel %vm517, %v1622, %v1626
  %v1629 = vshrl.u32 %v1464, 16
  %v1631 = vrot.slane %v1629, 4
  %v1632 = vshll.u32 %v1464, 16
  %v1634 = vrot.slane %v1632, 5
  %v1635 = vor.u32 %v1631, %v1634
  %v1636 = vrot.slane %v1635, 4
  %v1638 = vshll.u32 %v1465, 16
  %v1640 = vrot.slane %v1638, 5
  %v1641 = vsel %vm517, %v1636, %v1640
  %v1643 = vshrl.u32 %v1466, 16
  %v1645 = vrot.slane %v1643, 4
  %v1646 = vshll.u32 %v1466, 16
  %v1648 = vrot.slane %v1646, 5
  %v1649 = vor.u32 %v1645, %v1648
  %v1650 = vrot.slane %v1649, 4
  %v1652 = vshll.u32 %v1467, 16
  %v1654 = vrot.slane %v1652, 5
  %v1655 = vsel %vm517, %v1650, %v1654
  %v1657 = vshrl.u32 %v1468, 16
  %v1659 = vrot.slane %v1657, 4
  %v1660 = vshll.u32 %v1468, 16
  %v1662 = vrot.slane %v1660, 5
  %v1663 = vor.u32 %v1659, %v1662
  %v1664 = vrot.slane %v1663, 4
  %v1666 = vshll.u32 %v1469, 16
  %v1668 = vrot.slane %v1666, 5
  %v1669 = vsel %vm517, %v1664, %v1668
  %v1671 = vshrl.u32 %v1470, 16
  %v1673 = vrot.slane %v1671, 4
  %v1674 = vshll.u32 %v1470, 16
  %v1676 = vrot.slane %v1674, 5
  %v1677 = vor.u32 %v1673, %v1676
  %v1678 = vrot.slane %v1677, 4
  %v1680 = vshll.u32 %v1471, 16
  %v1682 = vrot.slane %v1680, 5
  %v1683 = vsel %vm517, %v1678, %v1682
  %v1685 = vshrl.u32 %v1472, 16
  %v1687 = vrot.slane %v1685, 4
  %v1688 = vshll.u32 %v1472, 16
  %v1690 = vrot.slane %v1688, 5
  %v1691 = vor.u32 %v1687, %v1690
  %v1692 = vrot.slane %v1691, 4
  %v1694 = vshll.u32 %v1473, 16
  %v1696 = vrot.slane %v1694, 5
  %v1697 = vsel %vm517, %v1692, %v1696
  %s1698 = scalar_lea.vmem %s1, 320
  %v1699 = vld [vmem:[%s1698] sm:$0xf]
  %v1700 = vld [vmem:[%s1698 + $0x4] sm:$0xf]
  %v1701 = vld [vmem:[%s1698 + $0x8] sm:$0xf]
  %v1702 = vld [vmem:[%s1698 + $0xc] sm:$0xf]
  %v1703 = vld [vmem:[%s1698 + $0x10] sm:$0xf]
  %v1704 = vld [vmem:[%s1698 + $0x14] sm:$0xf]
  %v1705 = vld [vmem:[%s1698 + $0x18] sm:$0xf]
  %v1706 = vld [vmem:[%s1698 + $0x1c] sm:$0xf]
  %v1707 = vld [vmem:[%s1698 + $0x20] sm:$0xf]
  %v1708 = vld [vmem:[%s1698 + $0x24] sm:$0xf]
  %v1709 = vld [vmem:[%s1698 + $0x28] sm:$0xf]
  %v1710 = vld [vmem:[%s1698 + $0x2c] sm:$0xf]
  %v1711 = vld [vmem:[%s1698 + $0x30] sm:$0xf]
  %v1712 = vld [vmem:[%s1698 + $0x34] sm:$0xf]
  %v1713 = vld [vmem:[%s1698 + $0x38] sm:$0xf]
  %v1714 = vld [vmem:[%s1698 + $0x3c] sm:$0xf]
  %v1715 = vunpack.c.l.b16 %v1487
  %v1716 = vunpack.c.l.b16 %v1501
  %v1717 = vunpack.c.l.b16 %v1515
  %v1718 = vunpack.c.l.b16 %v1529
  %v1719 = vunpack.c.l.b16 %v1543
  %v1720 = vunpack.c.l.b16 %v1557
  %v1721 = vunpack.c.l.b16 %v1571
  %v1722 = vunpack.c.l.b16 %v1585
  %v1723 = vunpack.c.l.b16 %v1599
  %v1724 = vunpack.c.l.b16 %v1613
  %v1725 = vunpack.c.l.b16 %v1627
  %v1726 = vunpack.c.l.b16 %v1641
  %v1727 = vunpack.c.l.b16 %v1655
  %v1728 = vunpack.c.l.b16 %v1669
  %v1729 = vunpack.c.l.b16 %v1683
  %v1730 = vunpack.c.l.b16 %v1697
  %v1731 = vpack.c.b16 %v1716, %v1715
  %v1732 = vpack.c.b16 %v1718, %v1717
  %v1733 = vpack.c.b16 %v1720, %v1719
  %v1734 = vpack.c.b16 %v1722, %v1721
  %v1735 = vpack.c.b16 %v1724, %v1723
  %v1736 = vpack.c.b16 %v1726, %v1725
  %v1737 = vpack.c.b16 %v1728, %v1727
  %v1738 = vpack.c.b16 %v1730, %v1729
  %v1763 = vunpack.c.l.b16 %v1699
  %v1764 = vunpack.c.l.b16 %v1700
  %v1765 = vunpack.c.l.b16 %v1701
  %v1766 = vunpack.c.l.b16 %v1702
  %v1767 = vunpack.c.l.b16 %v1703
  %v1768 = vunpack.c.l.b16 %v1704
  %v1769 = vunpack.c.l.b16 %v1705
  %v1770 = vunpack.c.l.b16 %v1706
  %v1771 = vunpack.c.l.b16 %v1707
  %v1772 = vunpack.c.l.b16 %v1708
  %v1773 = vunpack.c.l.b16 %v1709
  %v1774 = vunpack.c.l.b16 %v1710
  %v1775 = vunpack.c.l.b16 %v1711
  %v1776 = vunpack.c.l.b16 %v1712
  %v1777 = vunpack.c.l.b16 %v1713
  %v1778 = vunpack.c.l.b16 %v1714
  %v1779 = vpack.c.b16 %v1764, %v1763
  %v1780 = vpack.c.b16 %v1766, %v1765
  %v1781 = vpack.c.b16 %v1768, %v1767
  %v1782 = vpack.c.b16 %v1770, %v1769
  %v1783 = vpack.c.b16 %v1772, %v1771
  %v1784 = vpack.c.b16 %v1774, %v1773
  %v1785 = vpack.c.b16 %v1776, %v1775
  %v1786 = vpack.c.b16 %v1778, %v1777
  %1795 = vmatprep.subr.bf16.mxu0 0
  %1796 = vmatpush1.bf16.msra.mxu0 %v1779
  %1797 = vmatprep.subr.bf16.mxu0 0
  %1798 = vmatpush1.bf16.msra.mxu0 %v1780
  %1799 = vmatprep.subr.bf16.mxu0 0
  %1800 = vmatpush1.bf16.msra.mxu0 %v1781
  %1801 = vmatprep.subr.bf16.mxu0 0
  %1802 = vmatpush1.bf16.msra.mxu0 %v1782
  %1803 = vmatprep.subr.bf16.mxu0 0
  %1804 = vmatpush1.bf16.msra.mxu0 %v1783
  %1805 = vmatprep.subr.bf16.mxu0 0
  %1806 = vmatpush1.bf16.msra.mxu0 %v1784
  %1807 = vmatprep.subr.bf16.mxu0 0
  %1808 = vmatpush1.bf16.msra.mxu0 %v1785
  %1809 = vmatprep.subr.bf16.mxu0 0
  %1810 = vmatpush1.bf16.msra.mxu0 %v1786
  %1811 = vmatprep.subr.bf16.mxu0 0
  %1812 = vmatpush1.bf16.msra.mxu0 0
  %1813 = vmatprep.subr.bf16.mxu0 0
  %1814 = vmatpush1.bf16.msra.mxu0 0
  %1815 = vmatprep.subr.bf16.mxu0 0
  %1816 = vmatpush1.bf16.msra.mxu0 0
  %1817 = vmatprep.subr.bf16.mxu0 0
  %1818 = vmatpush1.bf16.msra.mxu0 0
  %1819 = vmatprep.subr.bf16.mxu0 0
  %1820 = vmatpush1.bf16.msra.mxu0 0
  %1821 = vmatprep.subr.bf16.mxu0 0
  %1822 = vmatpush1.bf16.msra.mxu0 0
  %1823 = vmatprep.subr.bf16.mxu0 0
  %1824 = vmatpush1.bf16.msra.mxu0 0
  %1825 = vmatprep.subr.bf16.mxu0 0
  %1826 = vmatpush1.bf16.msra.mxu0 0
  %1827 = vmatprep.mubr.bf16.mxu0 0
  %1828 = vmatmul.mubr.bf16.gmra.mrb[0].mxu0 %v1731
  %v1829 = vpop.f32.mrb[0].mxu0
  %v1830 = vadd.f32 0.0, %v1829
  %v1831 = vpop.f32.mrb[0].mxu0
  %v1832 = vpop.f32.mrb[0].mxu0
  %v1833 = vadd.f32 0.0, %v1832
  %v1834 = vpop.f32.mrb[0].mxu0
  %1835 = vmatprep.mubr.bf16.mxu0 0
  %1836 = vmatmul.mubr.bf16.gmra.mrb[0].mxu0 %v1732
  %v1837 = vpop.f32.mrb[0].mxu0
  %v1838 = vadd.f32 0.0, %v1837
  %v1839 = vpop.f32.mrb[0].mxu0
  %v1840 = vpop.f32.mrb[0].mxu0
  %v1841 = vadd.f32 0.0, %v1840
  %v1842 = vpop.f32.mrb[0].mxu0
  %1843 = vmatprep.mubr.bf16.mxu0 0
  %1844 = vmatmul.mubr.bf16.gmra.mrb[0].mxu0 %v1733
  %v1845 = vpop.f32.mrb[0].mxu0
  %v1846 = vadd.f32 0.0, %v1845
  %v1847 = vpop.f32.mrb[0].mxu0
  %v1848 = vpop.f32.mrb[0].mxu0
  %v1849 = vadd.f32 0.0, %v1848
  %v1850 = vpop.f32.mrb[0].mxu0
  %1851 = vmatprep.mubr.bf16.mxu0 0
  %1852 = vmatmul.mubr.bf16.gmra.mrb[0].mxu0 %v1734
  %v1853 = vpop.f32.mrb[0].mxu0
  %v1854 = vadd.f32 0.0, %v1853
  %v1855 = vpop.f32.mrb[0].mxu0
  %v1856 = vpop.f32.mrb[0].mxu0
  %v1857 = vadd.f32 0.0, %v1856
  %v1858 = vpop.f32.mrb[0].mxu0
  %1859 = vmatprep.mubr.bf16.mxu0 0
  %1860 = vmatmul.mubr.bf16.gmra.mrb[0].mxu0 %v1735
  %v1861 = vpop.f32.mrb[0].mxu0
  %v1862 = vadd.f32 0.0, %v1861
  %v1863 = vpop.f32.mrb[0].mxu0
  %v1864 = vpop.f32.mrb[0].mxu0
  %v1865 = vadd.f32 0.0, %v1864
  %v1866 = vpop.f32.mrb[0].mxu0
  %1867 = vmatprep.mubr.bf16.mxu0 0
  %1868 = vmatmul.mubr.bf16.gmra.mrb[0].mxu0 %v1736
  %v1869 = vpop.f32.mrb[0].mxu0
  %v1870 = vadd.f32 0.0, %v1869
  %v1871 = vpop.f32.mrb[0].mxu0
  %v1872 = vpop.f32.mrb[0].mxu0
  %v1873 = vadd.f32 0.0, %v1872
  %v1874 = vpop.f32.mrb[0].mxu0
  %1875 = vmatprep.mubr.bf16.mxu0 0
  %1876 = vmatmul.mubr.bf16.gmra.mrb[0].mxu0 %v1737
  %v1877 = vpop.f32.mrb[0].mxu0
  %v1878 = vadd.f32 0.0, %v1877
  %v1879 = vpop.f32.mrb[0].mxu0
  %v1880 = vpop.f32.mrb[0].mxu0
  %v1881 = vadd.f32 0.0, %v1880
  %v1882 = vpop.f32.mrb[0].mxu0
  %1883 = vmatprep.mubr.bf16.mxu0 0
  %1884 = vmatmul.mubr.bf16.gmra.mrb[0].mxu0 %v1738
  %v1885 = vpop.f32.mrb[0].mxu0
  %v1886 = vadd.f32 0.0, %v1885
  %v1887 = vpop.f32.mrb[0].mxu0
  %v1888 = vpop.f32.mrb[0].mxu0
  %v1889 = vadd.f32 0.0, %v1888
  %v1890 = vpop.f32.mrb[0].mxu0
  %1891 = vdwg.mxu0
  %v1892 = vadd.f32 %v1426, %v1830
  %v1893 = vadd.f32 %v1427, %v1833
  %v1894 = vadd.f32 %v1428, %v1838
  %v1895 = vadd.f32 %v1429, %v1841
  %v1896 = vadd.f32 %v1430, %v1846
  %v1897 = vadd.f32 %v1431, %v1849
  %v1898 = vadd.f32 %v1432, %v1854
  %v1899 = vadd.f32 %v1433, %v1857
  %v1900 = vadd.f32 %v1434, %v1862
  %v1901 = vadd.f32 %v1435, %v1865
  %v1902 = vadd.f32 %v1436, %v1870
  %v1903 = vadd.f32 %v1437, %v1873
  %v1904 = vadd.f32 %v1438, %v1878
  %v1905 = vadd.f32 %v1439, %v1881
  %v1906 = vadd.f32 %v1440, %v1886
  %v1907 = vadd.f32 %v1441, %v1889
  %s1908 = sadd.s32 %s25, 1
  %s1909 = smul.u32 %s1908, 2
  %s1910 = smul.addr %s1909, 4
  %s1911 = scalar_lea.vmem %s0, %s1910
  %v1912 = vld [vmem:[%s1911] sm:$0xf]
  %v1913 = vld [vmem:[%s1911 + $0x8] sm:$0xf]
  %v1914 = vld [vmem:[%s1911 + $0x10] sm:$0xf]
  %v1915 = vld [vmem:[%s1911 + $0x18] sm:$0xf]
  %v1916 = vld [vmem:[%s1911 + $0x20] sm:$0xf]
  %v1917 = vld [vmem:[%s1911 + $0x28] sm:$0xf]
  %v1918 = vld [vmem:[%s1911 + $0x30] sm:$0xf]
  %v1919 = vld [vmem:[%s1911 + $0x38] sm:$0xf]
  %v1920 = vld [vmem:[%s1911 + $0x48] sm:$0xf]
  %v1921 = vld [vmem:[%s1911 + $0x50] sm:$0xf]
  %v1922 = vld [vmem:[%s1911 + $0x58] sm:$0xf]
  %v1923 = vld [vmem:[%s1911 + $0x60] sm:$0xf]
  %v1924 = vld [vmem:[%s1911 + $0x68] sm:$0xf]
  %v1925 = vld [vmem:[%s1911 + $0x70] sm:$0xf]
  %v1926 = vld [vmem:[%s1911 + $0x78] sm:$0xf]
  %v1927 = vld [vmem:[%s1911 + $0x80] sm:$0xf]
  %s1928 = scalar_lea.vmem %s1, 384
  %v1929 = vld [vmem:[%s1928] sm:$0xf]
  %v1930 = vld [vmem:[%s1928 + $0x4] sm:$0xf]
  %v1931 = vld [vmem:[%s1928 + $0x8] sm:$0xf]
  %v1932 = vld [vmem:[%s1928 + $0xc] sm:$0xf]
  %v1933 = vld [vmem:[%s1928 + $0x10] sm:$0xf]
  %v1934 = vld [vmem:[%s1928 + $0x14] sm:$0xf]
  %v1935 = vld [vmem:[%s1928 + $0x18] sm:$0xf]
  %v1936 = vld [vmem:[%s1928 + $0x1c] sm:$0xf]
  %v1937 = vld [vmem:[%s1928 + $0x20] sm:$0xf]
  %v1938 = vld [vmem:[%s1928 + $0x24] sm:$0xf]
  %v1939 = vld [vmem:[%s1928 + $0x28] sm:$0xf]
  %v1940 = vld [vmem:[%s1928 + $0x2c] sm:$0xf]
  %v1941 = vld [vmem:[%s1928 + $0x30] sm:$0xf]
  %v1942 = vld [vmem:[%s1928 + $0x34] sm:$0xf]
  %v1943 = vld [vmem:[%s1928 + $0x38] sm:$0xf]
  %v1944 = vld [vmem:[%s1928 + $0x3c] sm:$0xf]
  %v1961 = vunpack.c.l.b16 %v1912
  %v1962 = vunpack.c.l.b16 %v1913
  %v1963 = vunpack.c.l.b16 %v1914
  %v1964 = vunpack.c.l.b16 %v1915
  %v1965 = vunpack.c.l.b16 %v1916
  %v1966 = vunpack.c.l.b16 %v1917
  %v1967 = vunpack.c.l.b16 %v1918
  %v1968 = vunpack.c.l.b16 %v1919
  %v1969 = vunpack.c.l.b16 %v1920
  %v1970 = vunpack.c.l.b16 %v1921
  %v1971 = vunpack.c.l.b16 %v1922
  %v1972 = vunpack.c.l.b16 %v1923
  %v1973 = vunpack.c.l.b16 %v1924
  %v1974 = vunpack.c.l.b16 %v1925
  %v1975 = vunpack.c.l.b16 %v1926
  %v1976 = vunpack.c.l.b16 %v1927
  %v1977 = vpack.c.b16 %v1962, %v1961
  %v1978 = vpack.c.b16 %v1964, %v1963
  %v1979 = vpack.c.b16 %v1966, %v1965
  %v1980 = vpack.c.b16 %v1968, %v1967
  %v1981 = vpack.c.b16 %v1970, %v1969
  %v1982 = vpack.c.b16 %v1972, %v1971
  %v1983 = vpack.c.b16 %v1974, %v1973
  %v1984 = vpack.c.b16 %v1976, %v1975
  %v2009 = vunpack.c.l.b16 %v1929
  %v2010 = vunpack.c.l.b16 %v1930
  %v2011 = vunpack.c.l.b16 %v1931
  %v2012 = vunpack.c.l.b16 %v1932
  %v2013 = vunpack.c.l.b16 %v1933
  %v2014 = vunpack.c.l.b16 %v1934
  %v2015 = vunpack.c.l.b16 %v1935
  %v2016 = vunpack.c.l.b16 %v1936
  %v2017 = vunpack.c.l.b16 %v1937
  %v2018 = vunpack.c.l.b16 %v1938
  %v2019 = vunpack.c.l.b16 %v1939
  %v2020 = vunpack.c.l.b16 %v1940
  %v2021 = vunpack.c.l.b16 %v1941
  %v2022 = vunpack.c.l.b16 %v1942
  %v2023 = vunpack.c.l.b16 %v1943
  %v2024 = vunpack.c.l.b16 %v1944
  %v2025 = vpack.c.b16 %v2010, %v2009
  %v2026 = vpack.c.b16 %v2012, %v2011
  %v2027 = vpack.c.b16 %v2014, %v2013
  %v2028 = vpack.c.b16 %v2016, %v2015
  %v2029 = vpack.c.b16 %v2018, %v2017
  %v2030 = vpack.c.b16 %v2020, %v2019
  %v2031 = vpack.c.b16 %v2022, %v2021
  %v2032 = vpack.c.b16 %v2024, %v2023
  %2041 = vmatprep.subr.bf16.mxu0 0
  %2042 = vmatpush1.bf16.msra.mxu0 %v2025
  %2043 = vmatprep.subr.bf16.mxu0 0
  %2044 = vmatpush1.bf16.msra.mxu0 %v2026
  %2045 = vmatprep.subr.bf16.mxu0 0
  %2046 = vmatpush1.bf16.msra.mxu0 %v2027
  %2047 = vmatprep.subr.bf16.mxu0 0
  %2048 = vmatpush1.bf16.msra.mxu0 %v2028
  %2049 = vmatprep.subr.bf16.mxu0 0
  %2050 = vmatpush1.bf16.msra.mxu0 %v2029
  %2051 = vmatprep.subr.bf16.mxu0 0
  %2052 = vmatpush1.bf16.msra.mxu0 %v2030
  %2053 = vmatprep.subr.bf16.mxu0 0
  %2054 = vmatpush1.bf16.msra.mxu0 %v2031
  %2055 = vmatprep.subr.bf16.mxu0 0
  %2056 = vmatpush1.bf16.msra.mxu0 %v2032
  %2057 = vmatprep.subr.bf16.mxu0 0
  %2058 = vmatpush1.bf16.msra.mxu0 0
  %2059 = vmatprep.subr.bf16.mxu0 0
  %2060 = vmatpush1.bf16.msra.mxu0 0
  %2061 = vmatprep.subr.bf16.mxu0 0
  %2062 = vmatpush1.bf16.msra.mxu0 0
  %2063 = vmatprep.subr.bf16.mxu0 0
  %2064 = vmatpush1.bf16.msra.mxu0 0
  %2065 = vmatprep.subr.bf16.mxu0 0
  %2066 = vmatpush1.bf16.msra.mxu0 0
  %2067 = vmatprep.subr.bf16.mxu0 0
  %2068 = vmatpush1.bf16.msra.mxu0 0
  %2069 = vmatprep.subr.bf16.mxu0 0
  %2070 = vmatpush1.bf16.msra.mxu0 0
  %2071 = vmatprep.subr.bf16.mxu0 0
  %2072 = vmatpush1.bf16.msra.mxu0 0
  %2073 = vmatprep.mubr.bf16.mxu0 0
  %2074 = vmatmul.mubr.bf16.gmra.mrb[0].mxu0 %v1977
  %v2075 = vpop.f32.mrb[0].mxu0
  %v2076 = vadd.f32 0.0, %v2075
  %v2077 = vpop.f32.mrb[0].mxu0
  %v2078 = vpop.f32.mrb[0].mxu0
  %v2079 = vadd.f32 0.0, %v2078
  %v2080 = vpop.f32.mrb[0].mxu0
  %2081 = vmatprep.mubr.bf16.mxu0 0
  %2082 = vmatmul.mubr.bf16.gmra.mrb[0].mxu0 %v1978
  %v2083 = vpop.f32.mrb[0].mxu0
  %v2084 = vadd.f32 0.0, %v2083
  %v2085 = vpop.f32.mrb[0].mxu0
  %v2086 = vpop.f32.mrb[0].mxu0
  %v2087 = vadd.f32 0.0, %v2086
  %v2088 = vpop.f32.mrb[0].mxu0
  %2089 = vmatprep.mubr.bf16.mxu0 0
  %2090 = vmatmul.mubr.bf16.gmra.mrb[0].mxu0 %v1979
  %v2091 = vpop.f32.mrb[0].mxu0
  %v2092 = vadd.f32 0.0, %v2091
  %v2093 = vpop.f32.mrb[0].mxu0
  %v2094 = vpop.f32.mrb[0].mxu0
  %v2095 = vadd.f32 0.0, %v2094
  %v2096 = vpop.f32.mrb[0].mxu0
  %2097 = vmatprep.mubr.bf16.mxu0 0
  %2098 = vmatmul.mubr.bf16.gmra.mrb[0].mxu0 %v1980
  %v2099 = vpop.f32.mrb[0].mxu0
  %v2100 = vadd.f32 0.0, %v2099
  %v2101 = vpop.f32.mrb[0].mxu0
  %v2102 = vpop.f32.mrb[0].mxu0
  %v2103 = vadd.f32 0.0, %v2102
  %v2104 = vpop.f32.mrb[0].mxu0
  %2105 = vmatprep.mubr.bf16.mxu0 0
  %2106 = vmatmul.mubr.bf16.gmra.mrb[0].mxu0 %v1981
  %v2107 = vpop.f32.mrb[0].mxu0
  %v2108 = vadd.f32 0.0, %v2107
  %v2109 = vpop.f32.mrb[0].mxu0
  %v2110 = vpop.f32.mrb[0].mxu0
  %v2111 = vadd.f32 0.0, %v2110
  %v2112 = vpop.f32.mrb[0].mxu0
  %2113 = vmatprep.mubr.bf16.mxu0 0
  %2114 = vmatmul.mubr.bf16.gmra.mrb[0].mxu0 %v1982
  %v2115 = vpop.f32.mrb[0].mxu0
  %v2116 = vadd.f32 0.0, %v2115
  %v2117 = vpop.f32.mrb[0].mxu0
  %v2118 = vpop.f32.mrb[0].mxu0
  %v2119 = vadd.f32 0.0, %v2118
  %v2120 = vpop.f32.mrb[0].mxu0
  %2121 = vmatprep.mubr.bf16.mxu0 0
  %2122 = vmatmul.mubr.bf16.gmra.mrb[0].mxu0 %v1983
  %v2123 = vpop.f32.mrb[0].mxu0
  %v2124 = vadd.f32 0.0, %v2123
  %v2125 = vpop.f32.mrb[0].mxu0
  %v2126 = vpop.f32.mrb[0].mxu0
  %v2127 = vadd.f32 0.0, %v2126
  %v2128 = vpop.f32.mrb[0].mxu0
  %2129 = vmatprep.mubr.bf16.mxu0 0
  %2130 = vmatmul.mubr.bf16.gmra.mrb[0].mxu0 %v1984
  %v2131 = vpop.f32.mrb[0].mxu0
  %v2132 = vadd.f32 0.0, %v2131
  %v2133 = vpop.f32.mrb[0].mxu0
  %v2134 = vpop.f32.mrb[0].mxu0
  %v2135 = vadd.f32 0.0, %v2134
  %v2136 = vpop.f32.mrb[0].mxu0
  %2137 = vdwg.mxu0
  %v2138 = vadd.f32 %v1892, %v2076
  %v2139 = vadd.f32 %v1893, %v2079
  %v2140 = vadd.f32 %v1894, %v2084
  %v2141 = vadd.f32 %v1895, %v2087
  %v2142 = vadd.f32 %v1896, %v2092
  %v2143 = vadd.f32 %v1897, %v2095
  %v2144 = vadd.f32 %v1898, %v2100
  %v2145 = vadd.f32 %v1899, %v2103
  %v2146 = vadd.f32 %v1900, %v2108
  %v2147 = vadd.f32 %v1901, %v2111
  %v2148 = vadd.f32 %v1902, %v2116
  %v2149 = vadd.f32 %v1903, %v2119
  %v2150 = vadd.f32 %v1904, %v2124
  %v2151 = vadd.f32 %v1905, %v2127
  %v2152 = vadd.f32 %v1906, %v2132
  %v2153 = vadd.f32 %v1907, %v2135
  %s2154 = sadd.s32 %s1909, 36
  %s2155 = smul.addr %s2154, 4
  %s2156 = scalar_lea.vmem %s0, %s2155
  %v2157 = vld [vmem:[%s2156] sm:$0xf]
  %v2158 = vld [vmem:[%s2156 + $0x8] sm:$0xf]
  %v2159 = vld [vmem:[%s2156 + $0x10] sm:$0xf]
  %v2160 = vld [vmem:[%s2156 + $0x18] sm:$0xf]
  %v2161 = vld [vmem:[%s2156 + $0x20] sm:$0xf]
  %v2162 = vld [vmem:[%s2156 + $0x28] sm:$0xf]
  %v2163 = vld [vmem:[%s2156 + $0x30] sm:$0xf]
  %v2164 = vld [vmem:[%s2156 + $0x38] sm:$0xf]
  %v2165 = vld [vmem:[%s2156 + $0x48] sm:$0xf]
  %v2166 = vld [vmem:[%s2156 + $0x50] sm:$0xf]
  %v2167 = vld [vmem:[%s2156 + $0x58] sm:$0xf]
  %v2168 = vld [vmem:[%s2156 + $0x60] sm:$0xf]
  %v2169 = vld [vmem:[%s2156 + $0x68] sm:$0xf]
  %v2170 = vld [vmem:[%s2156 + $0x70] sm:$0xf]
  %v2171 = vld [vmem:[%s2156 + $0x78] sm:$0xf]
  %v2172 = vld [vmem:[%s2156 + $0x80] sm:$0xf]
  %s2173 = scalar_lea.vmem %s1, 448
  %v2174 = vld [vmem:[%s2173] sm:$0xf]
  %v2175 = vld [vmem:[%s2173 + $0x4] sm:$0xf]
  %v2176 = vld [vmem:[%s2173 + $0x8] sm:$0xf]
  %v2177 = vld [vmem:[%s2173 + $0xc] sm:$0xf]
  %v2178 = vld [vmem:[%s2173 + $0x10] sm:$0xf]
  %v2179 = vld [vmem:[%s2173 + $0x14] sm:$0xf]
  %v2180 = vld [vmem:[%s2173 + $0x18] sm:$0xf]
  %v2181 = vld [vmem:[%s2173 + $0x1c] sm:$0xf]
  %v2182 = vld [vmem:[%s2173 + $0x20] sm:$0xf]
  %v2183 = vld [vmem:[%s2173 + $0x24] sm:$0xf]
  %v2184 = vld [vmem:[%s2173 + $0x28] sm:$0xf]
  %v2185 = vld [vmem:[%s2173 + $0x2c] sm:$0xf]
  %v2186 = vld [vmem:[%s2173 + $0x30] sm:$0xf]
  %v2187 = vld [vmem:[%s2173 + $0x34] sm:$0xf]
  %v2188 = vld [vmem:[%s2173 + $0x38] sm:$0xf]
  %v2189 = vld [vmem:[%s2173 + $0x3c] sm:$0xf]
  %v2206 = vunpack.c.l.b16 %v2157
  %v2207 = vunpack.c.l.b16 %v2158
  %v2208 = vunpack.c.l.b16 %v2159
  %v2209 = vunpack.c.l.b16 %v2160
  %v2210 = vunpack.c.l.b16 %v2161
  %v2211 = vunpack.c.l.b16 %v2162
  %v2212 = vunpack.c.l.b16 %v2163
  %v2213 = vunpack.c.l.b16 %v2164
  %v2214 = vunpack.c.l.b16 %v2165
  %v2215 = vunpack.c.l.b16 %v2166
  %v2216 = vunpack.c.l.b16 %v2167
  %v2217 = vunpack.c.l.b16 %v2168
  %v2218 = vunpack.c.l.b16 %v2169
  %v2219 = vunpack.c.l.b16 %v2170
  %v2220 = vunpack.c.l.b16 %v2171
  %v2221 = vunpack.c.l.b16 %v2172
  %v2222 = vpack.c.b16 %v2207, %v2206
  %v2223 = vpack.c.b16 %v2209, %v2208
  %v2224 = vpack.c.b16 %v2211, %v2210
  %v2225 = vpack.c.b16 %v2213, %v2212
  %v2226 = vpack.c.b16 %v2215, %v2214
  %v2227 = vpack.c.b16 %v2217, %v2216
  %v2228 = vpack.c.b16 %v2219, %v2218
  %v2229 = vpack.c.b16 %v2221, %v2220
  %v2254 = vunpack.c.l.b16 %v2174
  %v2255 = vunpack.c.l.b16 %v2175
  %v2256 = vunpack.c.l.b16 %v2176
  %v2257 = vunpack.c.l.b16 %v2177
  %v2258 = vunpack.c.l.b16 %v2178
  %v2259 = vunpack.c.l.b16 %v2179
  %v2260 = vunpack.c.l.b16 %v2180
  %v2261 = vunpack.c.l.b16 %v2181
  %v2262 = vunpack.c.l.b16 %v2182
  %v2263 = vunpack.c.l.b16 %v2183
  %v2264 = vunpack.c.l.b16 %v2184
  %v2265 = vunpack.c.l.b16 %v2185
  %v2266 = vunpack.c.l.b16 %v2186
  %v2267 = vunpack.c.l.b16 %v2187
  %v2268 = vunpack.c.l.b16 %v2188
  %v2269 = vunpack.c.l.b16 %v2189
  %v2270 = vpack.c.b16 %v2255, %v2254
  %v2271 = vpack.c.b16 %v2257, %v2256
  %v2272 = vpack.c.b16 %v2259, %v2258
  %v2273 = vpack.c.b16 %v2261, %v2260
  %v2274 = vpack.c.b16 %v2263, %v2262
  %v2275 = vpack.c.b16 %v2265, %v2264
  %v2276 = vpack.c.b16 %v2267, %v2266
  %v2277 = vpack.c.b16 %v2269, %v2268
  %2286 = vmatprep.subr.bf16.mxu0 0
  %2287 = vmatpush1.bf16.msra.mxu0 %v2270
  %2288 = vmatprep.subr.bf16.mxu0 0
  %2289 = vmatpush1.bf16.msra.mxu0 %v2271
  %2290 = vmatprep.subr.bf16.mxu0 0
  %2291 = vmatpush1.bf16.msra.mxu0 %v2272
  %2292 = vmatprep.subr.bf16.mxu0 0
  %2293 = vmatpush1.bf16.msra.mxu0 %v2273
  %2294 = vmatprep.subr.bf16.mxu0 0
  %2295 = vmatpush1.bf16.msra.mxu0 %v2274
  %2296 = vmatprep.subr.bf16.mxu0 0
  %2297 = vmatpush1.bf16.msra.mxu0 %v2275
  %2298 = vmatprep.subr.bf16.mxu0 0
  %2299 = vmatpush1.bf16.msra.mxu0 %v2276
  %2300 = vmatprep.subr.bf16.mxu0 0
  %2301 = vmatpush1.bf16.msra.mxu0 %v2277
  %2302 = vmatprep.subr.bf16.mxu0 0
  %2303 = vmatpush1.bf16.msra.mxu0 0
  %2304 = vmatprep.subr.bf16.mxu0 0
  %2305 = vmatpush1.bf16.msra.mxu0 0
  %2306 = vmatprep.subr.bf16.mxu0 0
  %2307 = vmatpush1.bf16.msra.mxu0 0
  %2308 = vmatprep.subr.bf16.mxu0 0
  %2309 = vmatpush1.bf16.msra.mxu0 0
  %2310 = vmatprep.subr.bf16.mxu0 0
  %2311 = vmatpush1.bf16.msra.mxu0 0
  %2312 = vmatprep.subr.bf16.mxu0 0
  %2313 = vmatpush1.bf16.msra.mxu0 0
  %2314 = vmatprep.subr.bf16.mxu0 0
  %2315 = vmatpush1.bf16.msra.mxu0 0
  %2316 = vmatprep.subr.bf16.mxu0 0
  %2317 = vmatpush1.bf16.msra.mxu0 0
  %2318 = vmatprep.mubr.bf16.mxu0 0
  %2319 = vmatmul.mubr.bf16.gmra.mrb[0].mxu0 %v2222
  %v2320 = vpop.f32.mrb[0].mxu0
  %v2321 = vadd.f32 0.0, %v2320
  %v2322 = vpop.f32.mrb[0].mxu0
  %v2323 = vpop.f32.mrb[0].mxu0
  %v2324 = vadd.f32 0.0, %v2323
  %v2325 = vpop.f32.mrb[0].mxu0
  %2326 = vmatprep.mubr.bf16.mxu0 0
  %2327 = vmatmul.mubr.bf16.gmra.mrb[0].mxu0 %v2223
  %v2328 = vpop.f32.mrb[0].mxu0
  %v2329 = vadd.f32 0.0, %v2328
  %v2330 = vpop.f32.mrb[0].mxu0
  %v2331 = vpop.f32.mrb[0].mxu0
  %v2332 = vadd.f32 0.0, %v2331
  %v2333 = vpop.f32.mrb[0].mxu0
  %2334 = vmatprep.mubr.bf16.mxu0 0
  %2335 = vmatmul.mubr.bf16.gmra.mrb[0].mxu0 %v2224
  %v2336 = vpop.f32.mrb[0].mxu0
  %v2337 = vadd.f32 0.0, %v2336
  %v2338 = vpop.f32.mrb[0].mxu0
  %v2339 = vpop.f32.mrb[0].mxu0
  %v2340 = vadd.f32 0.0, %v2339
  %v2341 = vpop.f32.mrb[0].mxu0
  %2342 = vmatprep.mubr.bf16.mxu0 0
  %2343 = vmatmul.mubr.bf16.gmra.mrb[0].mxu0 %v2225
  %v2344 = vpop.f32.mrb[0].mxu0
  %v2345 = vadd.f32 0.0, %v2344
  %v2346 = vpop.f32.mrb[0].mxu0
  %v2347 = vpop.f32.mrb[0].mxu0
  %v2348 = vadd.f32 0.0, %v2347
  %v2349 = vpop.f32.mrb[0].mxu0
  %2350 = vmatprep.mubr.bf16.mxu0 0
  %2351 = vmatmul.mubr.bf16.gmra.mrb[0].mxu0 %v2226
  %v2352 = vpop.f32.mrb[0].mxu0
  %v2353 = vadd.f32 0.0, %v2352
  %v2354 = vpop.f32.mrb[0].mxu0
  %v2355 = vpop.f32.mrb[0].mxu0
  %v2356 = vadd.f32 0.0, %v2355
  %v2357 = vpop.f32.mrb[0].mxu0
  %2358 = vmatprep.mubr.bf16.mxu0 0
  %2359 = vmatmul.mubr.bf16.gmra.mrb[0].mxu0 %v2227
  %v2360 = vpop.f32.mrb[0].mxu0
  %v2361 = vadd.f32 0.0, %v2360
  %v2362 = vpop.f32.mrb[0].mxu0
  %v2363 = vpop.f32.mrb[0].mxu0
  %v2364 = vadd.f32 0.0, %v2363
  %v2365 = vpop.f32.mrb[0].mxu0
  %2366 = vmatprep.mubr.bf16.mxu0 0
  %2367 = vmatmul.mubr.bf16.gmra.mrb[0].mxu0 %v2228
  %v2368 = vpop.f32.mrb[0].mxu0
  %v2369 = vadd.f32 0.0, %v2368
  %v2370 = vpop.f32.mrb[0].mxu0
  %v2371 = vpop.f32.mrb[0].mxu0
  %v2372 = vadd.f32 0.0, %v2371
  %v2373 = vpop.f32.mrb[0].mxu0
  %2374 = vmatprep.mubr.bf16.mxu0 0
  %2375 = vmatmul.mubr.bf16.gmra.mrb[0].mxu0 %v2229
  %v2376 = vpop.f32.mrb[0].mxu0
  %v2377 = vadd.f32 0.0, %v2376
  %v2378 = vpop.f32.mrb[0].mxu0
  %v2379 = vpop.f32.mrb[0].mxu0
  %v2380 = vadd.f32 0.0, %v2379
  %v2381 = vpop.f32.mrb[0].mxu0
  %2382 = vdwg.mxu0
  %v2383 = vadd.f32 %v2138, %v2321
  %v2384 = vadd.f32 %v2139, %v2324
  %v2385 = vadd.f32 %v2140, %v2329
  %v2386 = vadd.f32 %v2141, %v2332
  %v2387 = vadd.f32 %v2142, %v2337
  %v2388 = vadd.f32 %v2143, %v2340
  %v2389 = vadd.f32 %v2144, %v2345
  %v2390 = vadd.f32 %v2145, %v2348
  %v2391 = vadd.f32 %v2146, %v2353
  %v2392 = vadd.f32 %v2147, %v2356
  %v2393 = vadd.f32 %v2148, %v2361
  %v2394 = vadd.f32 %v2149, %v2364
  %v2395 = vadd.f32 %v2150, %v2369
  %v2396 = vadd.f32 %v2151, %v2372
  %v2397 = vadd.f32 %v2152, %v2377
  %v2398 = vadd.f32 %v2153, %v2380
  %v2399 = vld [vmem:[%s1911] sm:$0xf]
  %v2400 = vld [vmem:[%s1911 + $0x4] sm:$0x1]
  %v2401 = vld [vmem:[%s1911 + $0x8] sm:$0xf]
  %v2402 = vld [vmem:[%s1911 + $0xc] sm:$0x1]
  %v2403 = vld [vmem:[%s1911 + $0x10] sm:$0xf]
  %v2404 = vld [vmem:[%s1911 + $0x14] sm:$0x1]
  %v2405 = vld [vmem:[%s1911 + $0x18] sm:$0xf]
  %v2406 = vld [vmem:[%s1911 + $0x1c] sm:$0x1]
  %v2407 = vld [vmem:[%s1911 + $0x20] sm:$0xf]
  %v2408 = vld [vmem:[%s1911 + $0x24] sm:$0x1]
  %v2409 = vld [vmem:[%s1911 + $0x28] sm:$0xf]
  %v2410 = vld [vmem:[%s1911 + $0x2c] sm:$0x1]
  %v2411 = vld [vmem:[%s1911 + $0x30] sm:$0xf]
  %v2412 = vld [vmem:[%s1911 + $0x34] sm:$0x1]
  %v2413 = vld [vmem:[%s1911 + $0x38] sm:$0xf]
  %v2414 = vld [vmem:[%s1911 + $0x3c] sm:$0x1]
  %v2415 = vld [vmem:[%s1911 + $0x48] sm:$0xf]
  %v2416 = vld [vmem:[%s1911 + $0x4c] sm:$0x1]
  %v2417 = vld [vmem:[%s1911 + $0x50] sm:$0xf]
  %v2418 = vld [vmem:[%s1911 + $0x54] sm:$0x1]
  %v2419 = vld [vmem:[%s1911 + $0x58] sm:$0xf]
  %v2420 = vld [vmem:[%s1911 + $0x5c] sm:$0x1]
  %v2421 = vld [vmem:[%s1911 + $0x60] sm:$0xf]
  %v2422 = vld [vmem:[%s1911 + $0x64] sm:$0x1]
  %v2423 = vld [vmem:[%s1911 + $0x68] sm:$0xf]
  %v2424 = vld [vmem:[%s1911 + $0x6c] sm:$0x1]
  %v2425 = vld [vmem:[%s1911 + $0x70] sm:$0xf]
  %v2426 = vld [vmem:[%s1911 + $0x74] sm:$0x1]
  %v2427 = vld [vmem:[%s1911 + $0x78] sm:$0xf]
  %v2428 = vld [vmem:[%s1911 + $0x7c] sm:$0x1]
  %v2429 = vld [vmem:[%s1911 + $0x80] sm:$0xf]
  %v2430 = vld [vmem:[%s1911 + $0x84] sm:$0x1]
  %v2432 = vshrl.u32 %v2399, 16
  %v2434 = vrot.slane %v2432, 4
  %v2435 = vshll.u32 %v2399, 16
  %v2437 = vrot.slane %v2435, 5
  %v2438 = vor.u32 %v2434, %v2437
  %v2439 = vrot.slane %v2438, 4
  %v2441 = vshll.u32 %v2400, 16
  %v2443 = vrot.slane %v2441, 5
  %v2444 = vsel %vm517, %v2439, %v2443
  %v2446 = vshrl.u32 %v2401, 16
  %v2448 = vrot.slane %v2446, 4
  %v2449 = vshll.u32 %v2401, 16
  %v2451 = vrot.slane %v2449, 5
  %v2452 = vor.u32 %v2448, %v2451
  %v2453 = vrot.slane %v2452, 4
  %v2455 = vshll.u32 %v2402, 16
  %v2457 = vrot.slane %v2455, 5
  %v2458 = vsel %vm517, %v2453, %v2457
  %v2460 = vshrl.u32 %v2403, 16
  %v2462 = vrot.slane %v2460, 4
  %v2463 = vshll.u32 %v2403, 16
  %v2465 = vrot.slane %v2463, 5
  %v2466 = vor.u32 %v2462, %v2465
  %v2467 = vrot.slane %v2466, 4
  %v2469 = vshll.u32 %v2404, 16
  %v2471 = vrot.slane %v2469, 5
  %v2472 = vsel %vm517, %v2467, %v2471
  %v2474 = vshrl.u32 %v2405, 16
  %v2476 = vrot.slane %v2474, 4
  %v2477 = vshll.u32 %v2405, 16
  %v2479 = vrot.slane %v2477, 5
  %v2480 = vor.u32 %v2476, %v2479
  %v2481 = vrot.slane %v2480, 4
  %v2483 = vshll.u32 %v2406, 16
  %v2485 = vrot.slane %v2483, 5
  %v2486 = vsel %vm517, %v2481, %v2485
  %v2488 = vshrl.u32 %v2407, 16
  %v2490 = vrot.slane %v2488, 4
  %v2491 = vshll.u32 %v2407, 16
  %v2493 = vrot.slane %v2491, 5
  %v2494 = vor.u32 %v2490, %v2493
  %v2495 = vrot.slane %v2494, 4
  %v2497 = vshll.u32 %v2408, 16
  %v2499 = vrot.slane %v2497, 5
  %v2500 = vsel %vm517, %v2495, %v2499
  %v2502 = vshrl.u32 %v2409, 16
  %v2504 = vrot.slane %v2502, 4
  %v2505 = vshll.u32 %v2409, 16
  %v2507 = vrot.slane %v2505, 5
  %v2508 = vor.u32 %v2504, %v2507
  %v2509 = vrot.slane %v2508, 4
  %v2511 = vshll.u32 %v2410, 16
  %v2513 = vrot.slane %v2511, 5
  %v2514 = vsel %vm517, %v2509, %v2513
  %v2516 = vshrl.u32 %v2411, 16
  %v2518 = vrot.slane %v2516, 4
  %v2519 = vshll.u32 %v2411, 16
  %v2521 = vrot.slane %v2519, 5
  %v2522 = vor.u32 %v2518, %v2521
  %v2523 = vrot.slane %v2522, 4
  %v2525 = vshll.u32 %v2412, 16
  %v2527 = vrot.slane %v2525, 5
  %v2528 = vsel %vm517, %v2523, %v2527
  %v2530 = vshrl.u32 %v2413, 16
  %v2532 = vrot.slane %v2530, 4
  %v2533 = vshll.u32 %v2413, 16
  %v2535 = vrot.slane %v2533, 5
  %v2536 = vor.u32 %v2532, %v2535
  %v2537 = vrot.slane %v2536, 4
  %v2539 = vshll.u32 %v2414, 16
  %v2541 = vrot.slane %v2539, 5
  %v2542 = vsel %vm517, %v2537, %v2541
  %v2544 = vshrl.u32 %v2415, 16
  %v2546 = vrot.slane %v2544, 4
  %v2547 = vshll.u32 %v2415, 16
  %v2549 = vrot.slane %v2547, 5
  %v2550 = vor.u32 %v2546, %v2549
  %v2551 = vrot.slane %v2550, 4
  %v2553 = vshll.u32 %v2416, 16
  %v2555 = vrot.slane %v2553, 5
  %v2556 = vsel %vm517, %v2551, %v2555
  %v2558 = vshrl.u32 %v2417, 16
  %v2560 = vrot.slane %v2558, 4
  %v2561 = vshll.u32 %v2417, 16
  %v2563 = vrot.slane %v2561, 5
  %v2564 = vor.u32 %v2560, %v2563
  %v2565 = vrot.slane %v2564, 4
  %v2567 = vshll.u32 %v2418, 16
  %v2569 = vrot.slane %v2567, 5
  %v2570 = vsel %vm517, %v2565, %v2569
  %v2572 = vshrl.u32 %v2419, 16
  %v2574 = vrot.slane %v2572, 4
  %v2575 = vshll.u32 %v2419, 16
  %v2577 = vrot.slane %v2575, 5
  %v2578 = vor.u32 %v2574, %v2577
  %v2579 = vrot.slane %v2578, 4
  %v2581 = vshll.u32 %v2420, 16
  %v2583 = vrot.slane %v2581, 5
  %v2584 = vsel %vm517, %v2579, %v2583
  %v2586 = vshrl.u32 %v2421, 16
  %v2588 = vrot.slane %v2586, 4
  %v2589 = vshll.u32 %v2421, 16
  %v2591 = vrot.slane %v2589, 5
  %v2592 = vor.u32 %v2588, %v2591
  %v2593 = vrot.slane %v2592, 4
  %v2595 = vshll.u32 %v2422, 16
  %v2597 = vrot.slane %v2595, 5
  %v2598 = vsel %vm517, %v2593, %v2597
  %v2600 = vshrl.u32 %v2423, 16
  %v2602 = vrot.slane %v2600, 4
  %v2603 = vshll.u32 %v2423, 16
  %v2605 = vrot.slane %v2603, 5
  %v2606 = vor.u32 %v2602, %v2605
  %v2607 = vrot.slane %v2606, 4
  %v2609 = vshll.u32 %v2424, 16
  %v2611 = vrot.slane %v2609, 5
  %v2612 = vsel %vm517, %v2607, %v2611
  %v2614 = vshrl.u32 %v2425, 16
  %v2616 = vrot.slane %v2614, 4
  %v2617 = vshll.u32 %v2425, 16
  %v2619 = vrot.slane %v2617, 5
  %v2620 = vor.u32 %v2616, %v2619
  %v2621 = vrot.slane %v2620, 4
  %v2623 = vshll.u32 %v2426, 16
  %v2625 = vrot.slane %v2623, 5
  %v2626 = vsel %vm517, %v2621, %v2625
  %v2628 = vshrl.u32 %v2427, 16
  %v2630 = vrot.slane %v2628, 4
  %v2631 = vshll.u32 %v2427, 16
  %v2633 = vrot.slane %v2631, 5
  %v2634 = vor.u32 %v2630, %v2633
  %v2635 = vrot.slane %v2634, 4
  %v2637 = vshll.u32 %v2428, 16
  %v2639 = vrot.slane %v2637, 5
  %v2640 = vsel %vm517, %v2635, %v2639
  %v2642 = vshrl.u32 %v2429, 16
  %v2644 = vrot.slane %v2642, 4
  %v2645 = vshll.u32 %v2429, 16
  %v2647 = vrot.slane %v2645, 5
  %v2648 = vor.u32 %v2644, %v2647
  %v2649 = vrot.slane %v2648, 4
  %v2651 = vshll.u32 %v2430, 16
  %v2653 = vrot.slane %v2651, 5
  %v2654 = vsel %vm517, %v2649, %v2653
  %s2655 = scalar_lea.vmem %s1, 512
  %v2656 = vld [vmem:[%s2655] sm:$0xf]
  %v2657 = vld [vmem:[%s2655 + $0x4] sm:$0xf]
  %v2658 = vld [vmem:[%s2655 + $0x8] sm:$0xf]
  %v2659 = vld [vmem:[%s2655 + $0xc] sm:$0xf]
  %v2660 = vld [vmem:[%s2655 + $0x10] sm:$0xf]
  %v2661 = vld [vmem:[%s2655 + $0x14] sm:$0xf]
  %v2662 = vld [vmem:[%s2655 + $0x18] sm:$0xf]
  %v2663 = vld [vmem:[%s2655 + $0x1c] sm:$0xf]
  %v2664 = vld [vmem:[%s2655 + $0x20] sm:$0xf]
  %v2665 = vld [vmem:[%s2655 + $0x24] sm:$0xf]
  %v2666 = vld [vmem:[%s2655 + $0x28] sm:$0xf]
  %v2667 = vld [vmem:[%s2655 + $0x2c] sm:$0xf]
  %v2668 = vld [vmem:[%s2655 + $0x30] sm:$0xf]
  %v2669 = vld [vmem:[%s2655 + $0x34] sm:$0xf]
  %v2670 = vld [vmem:[%s2655 + $0x38] sm:$0xf]
  %v2671 = vld [vmem:[%s2655 + $0x3c] sm:$0xf]
  %v2672 = vunpack.c.l.b16 %v2444
  %v2673 = vunpack.c.l.b16 %v2458
  %v2674 = vunpack.c.l.b16 %v2472
  %v2675 = vunpack.c.l.b16 %v2486
  %v2676 = vunpack.c.l.b16 %v2500
  %v2677 = vunpack.c.l.b16 %v2514
  %v2678 = vunpack.c.l.b16 %v2528
  %v2679 = vunpack.c.l.b16 %v2542
  %v2680 = vunpack.c.l.b16 %v2556
  %v2681 = vunpack.c.l.b16 %v2570
  %v2682 = vunpack.c.l.b16 %v2584
  %v2683 = vunpack.c.l.b16 %v2598
  %v2684 = vunpack.c.l.b16 %v2612
  %v2685 = vunpack.c.l.b16 %v2626
  %v2686 = vunpack.c.l.b16 %v2640
  %v2687 = vunpack.c.l.b16 %v2654
  %v2688 = vpack.c.b16 %v2673, %v2672
  %v2689 = vpack.c.b16 %v2675, %v2674
  %v2690 = vpack.c.b16 %v2677, %v2676
  %v2691 = vpack.c.b16 %v2679, %v2678
  %v2692 = vpack.c.b16 %v2681, %v2680
  %v2693 = vpack.c.b16 %v2683, %v2682
  %v2694 = vpack.c.b16 %v2685, %v2684
  %v2695 = vpack.c.b16 %v2687, %v2686
  %v2720 = vunpack.c.l.b16 %v2656
  %v2721 = vunpack.c.l.b16 %v2657
  %v2722 = vunpack.c.l.b16 %v2658
  %v2723 = vunpack.c.l.b16 %v2659
  %v2724 = vunpack.c.l.b16 %v2660
  %v2725 = vunpack.c.l.b16 %v2661
  %v2726 = vunpack.c.l.b16 %v2662
  %v2727 = vunpack.c.l.b16 %v2663
  %v2728 = vunpack.c.l.b16 %v2664
  %v2729 = vunpack.c.l.b16 %v2665
  %v2730 = vunpack.c.l.b16 %v2666
  %v2731 = vunpack.c.l.b16 %v2667
  %v2732 = vunpack.c.l.b16 %v2668
  %v2733 = vunpack.c.l.b16 %v2669
  %v2734 = vunpack.c.l.b16 %v2670
  %v2735 = vunpack.c.l.b16 %v2671
  %v2736 = vpack.c.b16 %v2721, %v2720
  %v2737 = vpack.c.b16 %v2723, %v2722
  %v2738 = vpack.c.b16 %v2725, %v2724
  %v2739 = vpack.c.b16 %v2727, %v2726
  %v2740 = vpack.c.b16 %v2729, %v2728
  %v2741 = vpack.c.b16 %v2731, %v2730
  %v2742 = vpack.c.b16 %v2733, %v2732
  %v2743 = vpack.c.b16 %v2735, %v2734
  %2752 = vmatprep.subr.bf16.mxu0 0
  %2753 = vmatpush1.bf16.msra.mxu0 %v2736
  %2754 = vmatprep.subr.bf16.mxu0 0
  %2755 = vmatpush1.bf16.msra.mxu0 %v2737
  %2756 = vmatprep.subr.bf16.mxu0 0
  %2757 = vmatpush1.bf16.msra.mxu0 %v2738
  %2758 = vmatprep.subr.bf16.mxu0 0
  %2759 = vmatpush1.bf16.msra.mxu0 %v2739
  %2760 = vmatprep.subr.bf16.mxu0 0
  %2761 = vmatpush1.bf16.msra.mxu0 %v2740
  %2762 = vmatprep.subr.bf16.mxu0 0
  %2763 = vmatpush1.bf16.msra.mxu0 %v2741
  %2764 = vmatprep.subr.bf16.mxu0 0
  %2765 = vmatpush1.bf16.msra.mxu0 %v2742
  %2766 = vmatprep.subr.bf16.mxu0 0
  %2767 = vmatpush1.bf16.msra.mxu0 %v2743
  %2768 = vmatprep.subr.bf16.mxu0 0
  %2769 = vmatpush1.bf16.msra.mxu0 0
  %2770 = vmatprep.subr.bf16.mxu0 0
  %2771 = vmatpush1.bf16.msra.mxu0 0
  %2772 = vmatprep.subr.bf16.mxu0 0
  %2773 = vmatpush1.bf16.msra.mxu0 0
  %2774 = vmatprep.subr.bf16.mxu0 0
  %2775 = vmatpush1.bf16.msra.mxu0 0
  %2776 = vmatprep.subr.bf16.mxu0 0
  %2777 = vmatpush1.bf16.msra.mxu0 0
  %2778 = vmatprep.subr.bf16.mxu0 0
  %2779 = vmatpush1.bf16.msra.mxu0 0
  %2780 = vmatprep.subr.bf16.mxu0 0
  %2781 = vmatpush1.bf16.msra.mxu0 0
  %2782 = vmatprep.subr.bf16.mxu0 0
  %2783 = vmatpush1.bf16.msra.mxu0 0
  %2784 = vmatprep.mubr.bf16.mxu0 0
  %2785 = vmatmul.mubr.bf16.gmra.mrb[0].mxu0 %v2688
  %v2786 = vpop.f32.mrb[0].mxu0
  %v2787 = vadd.f32 0.0, %v2786
  %v2788 = vpop.f32.mrb[0].mxu0
  %v2789 = vpop.f32.mrb[0].mxu0
  %v2790 = vadd.f32 0.0, %v2789
  %v2791 = vpop.f32.mrb[0].mxu0
  %2792 = vmatprep.mubr.bf16.mxu0 0
  %2793 = vmatmul.mubr.bf16.gmra.mrb[0].mxu0 %v2689
  %v2794 = vpop.f32.mrb[0].mxu0
  %v2795 = vadd.f32 0.0, %v2794
  %v2796 = vpop.f32.mrb[0].mxu0
  %v2797 = vpop.f32.mrb[0].mxu0
  %v2798 = vadd.f32 0.0, %v2797
  %v2799 = vpop.f32.mrb[0].mxu0
  %2800 = vmatprep.mubr.bf16.mxu0 0
  %2801 = vmatmul.mubr.bf16.gmra.mrb[0].mxu0 %v2690
  %v2802 = vpop.f32.mrb[0].mxu0
  %v2803 = vadd.f32 0.0, %v2802
  %v2804 = vpop.f32.mrb[0].mxu0
  %v2805 = vpop.f32.mrb[0].mxu0
  %v2806 = vadd.f32 0.0, %v2805
  %v2807 = vpop.f32.mrb[0].mxu0
  %2808 = vmatprep.mubr.bf16.mxu0 0
  %2809 = vmatmul.mubr.bf16.gmra.mrb[0].mxu0 %v2691
  %v2810 = vpop.f32.mrb[0].mxu0
  %v2811 = vadd.f32 0.0, %v2810
  %v2812 = vpop.f32.mrb[0].mxu0
  %v2813 = vpop.f32.mrb[0].mxu0
  %v2814 = vadd.f32 0.0, %v2813
  %v2815 = vpop.f32.mrb[0].mxu0
  %2816 = vmatprep.mubr.bf16.mxu0 0
  %2817 = vmatmul.mubr.bf16.gmra.mrb[0].mxu0 %v2692
  %v2818 = vpop.f32.mrb[0].mxu0
  %v2819 = vadd.f32 0.0, %v2818
  %v2820 = vpop.f32.mrb[0].mxu0
  %v2821 = vpop.f32.mrb[0].mxu0
  %v2822 = vadd.f32 0.0, %v2821
  %v2823 = vpop.f32.mrb[0].mxu0
  %2824 = vmatprep.mubr.bf16.mxu0 0
  %2825 = vmatmul.mubr.bf16.gmra.mrb[0].mxu0 %v2693
  %v2826 = vpop.f32.mrb[0].mxu0
  %v2827 = vadd.f32 0.0, %v2826
  %v2828 = vpop.f32.mrb[0].mxu0
  %v2829 = vpop.f32.mrb[0].mxu0
  %v2830 = vadd.f32 0.0, %v2829
  %v2831 = vpop.f32.mrb[0].mxu0
  %2832 = vmatprep.mubr.bf16.mxu0 0
  %2833 = vmatmul.mubr.bf16.gmra.mrb[0].mxu0 %v2694
  %v2834 = vpop.f32.mrb[0].mxu0
  %v2835 = vadd.f32 0.0, %v2834
  %v2836 = vpop.f32.mrb[0].mxu0
  %v2837 = vpop.f32.mrb[0].mxu0
  %v2838 = vadd.f32 0.0, %v2837
  %v2839 = vpop.f32.mrb[0].mxu0
  %2840 = vmatprep.mubr.bf16.mxu0 0
  %2841 = vmatmul.mubr.bf16.gmra.mrb[0].mxu0 %v2695
  %v2842 = vpop.f32.mrb[0].mxu0
  %v2843 = vadd.f32 0.0, %v2842
  %v2844 = vpop.f32.mrb[0].mxu0
  %v2845 = vpop.f32.mrb[0].mxu0
  %v2846 = vadd.f32 0.0, %v2845
  %v2847 = vpop.f32.mrb[0].mxu0
  %2848 = vdwg.mxu0
  %v2849 = vadd.f32 %v2383, %v2787
  %v2850 = vadd.f32 %v2384, %v2790
  %v2851 = vadd.f32 %v2385, %v2795
  %v2852 = vadd.f32 %v2386, %v2798
  %v2853 = vadd.f32 %v2387, %v2803
  %v2854 = vadd.f32 %v2388, %v2806
  %v2855 = vadd.f32 %v2389, %v2811
  %v2856 = vadd.f32 %v2390, %v2814
  %v2857 = vadd.f32 %v2391, %v2819
  %v2858 = vadd.f32 %v2392, %v2822
  %v2859 = vadd.f32 %v2393, %v2827
  %v2860 = vadd.f32 %v2394, %v2830
  %v2861 = vadd.f32 %v2395, %v2835
  %v2862 = vadd.f32 %v2396, %v2838
  %v2863 = vadd.f32 %v2397, %v2843
  %v2864 = vadd.f32 %v2398, %v2846
  %v2865 = vpack.c.bf16 %v2849, %v2849
  %v2866 = vpack.c.bf16 %v2850, %v2850
  %v2867 = vpack.c.bf16 %v2851, %v2851
  %v2868 = vpack.c.bf16 %v2852, %v2852
  %v2869 = vpack.c.bf16 %v2853, %v2853
  %v2870 = vpack.c.bf16 %v2854, %v2854
  %v2871 = vpack.c.bf16 %v2855, %v2855
  %v2872 = vpack.c.bf16 %v2856, %v2856
  %v2873 = vpack.c.bf16 %v2857, %v2857
  %v2874 = vpack.c.bf16 %v2858, %v2858
  %v2875 = vpack.c.bf16 %v2859, %v2859
  %v2876 = vpack.c.bf16 %v2860, %v2860
  %v2877 = vpack.c.bf16 %v2861, %v2861
  %v2878 = vpack.c.bf16 %v2862, %v2862
  %v2879 = vpack.c.bf16 %v2863, %v2863
  %v2880 = vpack.c.bf16 %v2864, %v2864
  %2881 = vst [vmem:[%s2] sm:$0xf] %v2865
  %2882 = vst [vmem:[%s2 + $0x4] sm:$0xf] %v2866
  %2883 = vst [vmem:[%s2 + $0x8] sm:$0xf] %v2867
  %2884 = vst [vmem:[%s2 + $0xc] sm:$0xf] %v2868
  %2885 = vst [vmem:[%s2 + $0x10] sm:$0xf] %v2869
  %2886 = vst [vmem:[%s2 + $0x14] sm:$0xf] %v2870
  %2887 = vst [vmem:[%s2 + $0x18] sm:$0xf] %v2871
  %2888 = vst [vmem:[%s2 + $0x1c] sm:$0xf] %v2872
  %2889 = vst [vmem:[%s2 + $0x20] sm:$0xf] %v2873
  %2890 = vst [vmem:[%s2 + $0x24] sm:$0xf] %v2874
  %2891 = vst [vmem:[%s2 + $0x28] sm:$0xf] %v2875
  %2892 = vst [vmem:[%s2 + $0x2c] sm:$0xf] %v2876
  %2893 = vst [vmem:[%s2 + $0x30] sm:$0xf] %v2877
  %2894 = vst [vmem:[%s2 + $0x34] sm:$0xf] %v2878
  %2895 = vst [vmem:[%s2 + $0x38] sm:$0xf] %v2879
  %2896 = vst [vmem:[%s2 + $0x3c] sm:$0xf] %v2880
  %v2897 = vadd.f32 %v2849, %v2850
  %v2898 = vadd.f32 %v2897, %v2851
  %v2899 = vadd.f32 %v2898, %v2852
  %v2900 = vadd.f32 %v2899, %v2853
  %v2901 = vadd.f32 %v2900, %v2854
  %v2902 = vadd.f32 %v2901, %v2855
  %v2903 = vadd.f32 %v2902, %v2856
  %v2904 = vadd.f32 %v2903, %v2857
  %v2905 = vadd.f32 %v2904, %v2858
  %v2906 = vadd.f32 %v2905, %v2859
  %v2907 = vadd.f32 %v2906, %v2860
  %v2908 = vadd.f32 %v2907, %v2861
  %v2909 = vadd.f32 %v2908, %v2862
  %v2910 = vadd.f32 %v2909, %v2863
  %v2911 = vadd.f32 %v2910, %v2864
  %v2912 = vrot.slane %v2911, 4
  %v2913 = vadd.f32 %v2911, %v2912
  %v2914 = vrot.slane %v2913, 2
  %v2915 = vadd.f32 %v2913, %v2914
  %v2916 = vrot.slane %v2915, 1
  %v2917 = vadd.f32 %v2915, %v2916
  %v2918 = vmul.f32 %v2849, %v2849
  %v2919 = vmul.f32 %v2850, %v2850
  %v2920 = vmul.f32 %v2851, %v2851
  %v2921 = vmul.f32 %v2852, %v2852
  %v2922 = vmul.f32 %v2853, %v2853
  %v2923 = vmul.f32 %v2854, %v2854
  %v2924 = vmul.f32 %v2855, %v2855
  %v2925 = vmul.f32 %v2856, %v2856
  %v2926 = vmul.f32 %v2857, %v2857
  %v2927 = vmul.f32 %v2858, %v2858
  %v2928 = vmul.f32 %v2859, %v2859
  %v2929 = vmul.f32 %v2860, %v2860
  %v2930 = vmul.f32 %v2861, %v2861
  %v2931 = vmul.f32 %v2862, %v2862
  %v2932 = vmul.f32 %v2863, %v2863
  %v2933 = vmul.f32 %v2864, %v2864
  %v2934 = vadd.f32 %v2918, %v2919
  %v2935 = vadd.f32 %v2934, %v2920
  %v2936 = vadd.f32 %v2935, %v2921
  %v2937 = vadd.f32 %v2936, %v2922
  %v2938 = vadd.f32 %v2937, %v2923
  %v2939 = vadd.f32 %v2938, %v2924
  %v2940 = vadd.f32 %v2939, %v2925
  %v2941 = vadd.f32 %v2940, %v2926
  %v2942 = vadd.f32 %v2941, %v2927
  %v2943 = vadd.f32 %v2942, %v2928
  %v2944 = vadd.f32 %v2943, %v2929
  %v2945 = vadd.f32 %v2944, %v2930
  %v2946 = vadd.f32 %v2945, %v2931
  %v2947 = vadd.f32 %v2946, %v2932
  %v2948 = vadd.f32 %v2947, %v2933
  %v2949 = vrot.slane %v2948, 4
  %v2950 = vadd.f32 %v2948, %v2949
  %v2951 = vrot.slane %v2950, 2
  %v2952 = vadd.f32 %v2950, %v2951
  %v2953 = vrot.slane %v2952, 1
  %v2954 = vadd.f32 %v2952, %v2953
  %vm2955 = vcmask 1040384
  %v2956 = vsel %vm2955, %v2917, %v2954
  %2957 = vst [vmem:[%s22] sm:$0x3] %v2956
  %s2958 = sadd.s32 0, 0
  %p2959 = scmp.lt.s32.totalorder %s2958, 0
  %s2960 = scalar_select %p2959, %s2958, 0
  %s2961 = smul.addr %s2960, 2
  %s2962 = scalar_lea.vmem %s3, %s2961
  // Predicated region
  $region10: #{bottleneck_forward.5} parent=0 // pred_check
    _
  $region11: #{bottleneck_forward.5} parent=0 // pred_check_branch
    %2964 = sbr.rel (0) target = $region13
  $region12: #{bottleneck_forward.5} parent=0 // pred_region
    _
  $region13: #{bottleneck_forward.5} parent=0 // pred_fallthru
    _
  // Predicated region
  $region14: #{bottleneck_forward.5} parent=0 // pred_check
    _
  $region15: #{bottleneck_forward.5} parent=0 // pred_check_branch
    %2966 = sbr.rel (0) target = $region17
  $region16: #{bottleneck_forward.5} parent=0 // pred_region
    %s2967 = sadd.s32 0, 0
  $region17: #{bottleneck_forward.5} parent=0 // pred_fallthru
    _
  // Predicated region
  $region18: #{bottleneck_forward.5} parent=0 // pred_check
    _
  $region19: #{bottleneck_forward.5} parent=0 // pred_check_branch
    %2969 = sbr.rel (0) target = $region21
  $region20: #{bottleneck_forward.5} parent=0 // pred_region
    _
  $region21: #{bottleneck_forward.5} parent=0 // pred_fallthru
    _
  // Predicated region
  $region22: #{bottleneck_forward.5} parent=0 // pred_check
    _
  $region23: #{bottleneck_forward.5} parent=0 // pred_check_branch
    %2971 = sbr.rel (0) target = $region25
  $region24: #{bottleneck_forward.5} parent=0 // pred_region
    %s2972 = sadd.s32 0, 0
    %p2973 = scmp.lt.s32.totalorder %s2972, 0
    %s2974 = scalar_select %p2973, %s2972, 0
    %s2975 = smul.addr %s2974, 2
    %s2976 = scalar_lea.vmem %s3, %s2975
  $region25: #{bottleneck_forward.5} parent=0 // pred_fallthru
    _

</llo_original>
